<compile_context>
chip_gen: v7x
topology: tpu7x:2x2x1
jax: 0.10.0
libtpu: 0.0.40
codegen_flags: <defaults>
</compile_context>

<pallas_src>
import functools

import jax
import jax.numpy as jnp
from jax.experimental import pallas as pl
from jax.experimental.pallas import tpu as pltpu

IN_CH = 3
OUT_CH = 6
KH = KW = 3


def _conv_kernel(x_ref, w_ref, b_ref, o_ref, *, width):
    # x_ref: (N, C, H*W)       f32, VMEM (spatial plane flattened -> lane-dense)
    # w_ref: (OC*C*KH*KW,)     f32, SMEM (flattened OIHW order)
    # b_ref: (OC,)             f32, SMEM
    # o_ref: (N, OC, H*W)      f32, VMEM (full frames; valid region sliced by wrapper)
    n, c_in, hw = x_ref.shape
    _, oc_n, _ = o_ref.shape

    # Bias-initialized full-frame accumulators, one per output channel, kept live
    # across all taps (6 x 2 vregs).
    accs = [jnp.full((n, hw), b_ref[oc], dtype=jnp.float32) for oc in range(oc_n)]

    for c in range(c_in):
        plane = x_ref[:, c, :]  # (N, H*W): aligned, unmasked lane-dense load
        for kh in range(KH):
            for kw in range(KW):
                off = kh * width + kw
                # shifted[p] = plane[(p + off) % hw]  (XLU rotate; wrap-around values
                # only pollute the discarded last KH-1 rows / KW-1 cols of each frame).
                shifted = plane if off == 0 else pltpu.roll(plane, hw - off, axis=1)
                for oc in range(oc_n):
                    w_s = w_ref[((oc * c_in + c) * KH + kh) * KW + kw]
                    accs[oc] = accs[oc] + shifted * w_s

    # Single lane-dense (unmasked) store of the whole output slab.
    o_ref[...] = jnp.stack(accs, axis=1).astype(o_ref.dtype)


def conv2d_pallas(x_nchw, weight, bias):
    """x_nchw: (N, 3, H, W) f32; weight: (6, 3, 3, 3) OIHW; bias: (6,). Returns NCHW."""
    n, c, h, w = x_nchw.shape
    assert c == IN_CH
    oh, ow = h - KH + 1, w - KW + 1

    x_flat = x_nchw.reshape(n, c, h * w)  # lane-dense spatial plane (layout plumbing)

    out_flat = pl.pallas_call(
        functools.partial(_conv_kernel, width=w),
        out_shape=jax.ShapeDtypeStruct((n, OUT_CH, h * w), x_nchw.dtype),
        in_specs=[
            pl.BlockSpec(memory_space=pltpu.MemorySpace.VMEM),  # x: whole array in VMEM
            pl.BlockSpec(memory_space=pltpu.MemorySpace.SMEM),  # weights as SMEM scalars
            pl.BlockSpec(memory_space=pltpu.MemorySpace.SMEM),  # bias as SMEM scalars
        ],
        out_specs=pl.BlockSpec(memory_space=pltpu.MemorySpace.VMEM),
    )(x_flat, weight.reshape(-1), bias)

    # Un-flatten and keep the valid (stride-1, VALID padding) region.
    return out_flat.reshape(n, OUT_CH, h, w)[:, :, :oh, :ow]


def init_params(key):
    """Deterministic init matching PyTorch Conv2d default (kaiming-uniform bounds)."""
    kw_key, kb_key = jax.random.split(key)
    fan_in = IN_CH * KH * KW
    bound = 1.0 / jnp.sqrt(float(fan_in))
    weight = jax.random.uniform(
        kw_key, (OUT_CH, IN_CH, KH, KW), jnp.float32, -bound, bound)
    bias = jax.random.uniform(kb_key, (OUT_CH,), jnp.float32, -bound, bound)
    return weight, bias


def reference_conv(x_nchw, weight, bias):
    out = jax.lax.conv_general_dilated(
        x_nchw, weight, window_strides=(1, 1), padding="VALID",
        dimension_numbers=("NCHW", "OIHW", "NCHW"))
    return out + bias[None, :, None, None]


if __name__ == "__main__":
    key = jax.random.PRNGKey(0)
    k_x, k_p = jax.random.split(key)

    # Small shapes consistent with the module: batch=2, in_channels=3, spatial=16.
    x = jax.random.normal(k_x, (2, IN_CH, 16, 16), jnp.float32)
    weight, bias = init_params(k_p)

    out = conv2d_pallas(x, weight, bias)
    out = jax.block_until_ready(out)

    ref = reference_conv(x, weight, bias)
    assert out.shape == (2, OUT_CH, 14, 14), out.shape
    assert jnp.allclose(out, ref, atol=1e-4, rtol=1e-4), "mismatch vs reference conv"

    print("KERNEL_OK")
</pallas_src>

<mosaic_0001>
module attributes {stable_mosaic.version = 11 : i64} {
  func.func @_conv_kernel(%arg0: memref<2x3x256xf32, #tpu.memory_space<vmem>>, %arg1: memref<162xf32, #tpu.memory_space<smem>>, %arg2: memref<6xf32, #tpu.memory_space<smem>>, %arg3: memref<2x6x256xf32, #tpu.memory_space<vmem>>) attributes {dimension_semantics = [], scalar_prefetch = 0 : i64, scratch_operands = 0 : i64, tpu.core_type = #tpu.core_type<tc>} {
    %c0 = arith.constant 0 : index
    %0 = memref.load %arg2[%c0] : memref<6xf32, #tpu.memory_space<smem>>
    %1 = vector.broadcast %0 : f32 to vector<2x256xf32>
    %c1 = arith.constant 1 : index
    %2 = memref.load %arg2[%c1] : memref<6xf32, #tpu.memory_space<smem>>
    %3 = vector.broadcast %2 : f32 to vector<2x256xf32>
    %c2 = arith.constant 2 : index
    %4 = memref.load %arg2[%c2] : memref<6xf32, #tpu.memory_space<smem>>
    %5 = vector.broadcast %4 : f32 to vector<2x256xf32>
    %c3 = arith.constant 3 : index
    %6 = memref.load %arg2[%c3] : memref<6xf32, #tpu.memory_space<smem>>
    %7 = vector.broadcast %6 : f32 to vector<2x256xf32>
    %c4 = arith.constant 4 : index
    %8 = memref.load %arg2[%c4] : memref<6xf32, #tpu.memory_space<smem>>
    %9 = vector.broadcast %8 : f32 to vector<2x256xf32>
    %c5 = arith.constant 5 : index
    %10 = memref.load %arg2[%c5] : memref<6xf32, #tpu.memory_space<smem>>
    %11 = vector.broadcast %10 : f32 to vector<2x256xf32>
    %c0_0 = arith.constant 0 : index
    %c0_1 = arith.constant 0 : index
    %c0_2 = arith.constant 0 : index
    %12 = vector.load %arg0[%c0_0, %c0_1, %c0_2] : memref<2x3x256xf32, #tpu.memory_space<vmem>>, vector<2x1x256xf32>
    %13 = vector.shape_cast %12 : vector<2x1x256xf32> to vector<2x256xf32>
    %c0_3 = arith.constant 0 : index
    %14 = memref.load %arg1[%c0_3] : memref<162xf32, #tpu.memory_space<smem>>
    %15 = vector.broadcast %14 : f32 to vector<2x256xf32>
    %16 = arith.mulf %13, %15 : vector<2x256xf32>
    %17 = arith.addf %1, %16 : vector<2x256xf32>
    %c27 = arith.constant 27 : index
    %18 = memref.load %arg1[%c27] : memref<162xf32, #tpu.memory_space<smem>>
    %19 = vector.broadcast %18 : f32 to vector<2x256xf32>
    %20 = arith.mulf %13, %19 : vector<2x256xf32>
    %21 = arith.addf %3, %20 : vector<2x256xf32>
    %c54 = arith.constant 54 : index
    %22 = memref.load %arg1[%c54] : memref<162xf32, #tpu.memory_space<smem>>
    %23 = vector.broadcast %22 : f32 to vector<2x256xf32>
    %24 = arith.mulf %13, %23 : vector<2x256xf32>
    %25 = arith.addf %5, %24 : vector<2x256xf32>
    %c81 = arith.constant 81 : index
    %26 = memref.load %arg1[%c81] : memref<162xf32, #tpu.memory_space<smem>>
    %27 = vector.broadcast %26 : f32 to vector<2x256xf32>
    %28 = arith.mulf %13, %27 : vector<2x256xf32>
    %29 = arith.addf %7, %28 : vector<2x256xf32>
    %c108 = arith.constant 108 : index
    %30 = memref.load %arg1[%c108] : memref<162xf32, #tpu.memory_space<smem>>
    %31 = vector.broadcast %30 : f32 to vector<2x256xf32>
    %32 = arith.mulf %13, %31 : vector<2x256xf32>
    %33 = arith.addf %9, %32 : vector<2x256xf32>
    %c135 = arith.constant 135 : index
    %34 = memref.load %arg1[%c135] : memref<162xf32, #tpu.memory_space<smem>>
    %35 = vector.broadcast %34 : f32 to vector<2x256xf32>
    %36 = arith.mulf %13, %35 : vector<2x256xf32>
    %37 = arith.addf %11, %36 : vector<2x256xf32>
    %c255_i32 = arith.constant 255 : i32
    %38 = tpu.dynamic_rotate %13 by %c255_i32 dim 1 : vector<2x256xf32>, i32 -> vector<2x256xf32>
    %c1_4 = arith.constant 1 : index
    %39 = memref.load %arg1[%c1_4] : memref<162xf32, #tpu.memory_space<smem>>
    %40 = vector.broadcast %39 : f32 to vector<2x256xf32>
    %41 = arith.mulf %38, %40 : vector<2x256xf32>
    %42 = arith.addf %17, %41 : vector<2x256xf32>
    %c28 = arith.constant 28 : index
    %43 = memref.load %arg1[%c28] : memref<162xf32, #tpu.memory_space<smem>>
    %44 = vector.broadcast %43 : f32 to vector<2x256xf32>
    %45 = arith.mulf %38, %44 : vector<2x256xf32>
    %46 = arith.addf %21, %45 : vector<2x256xf32>
    %c55 = arith.constant 55 : index
    %47 = memref.load %arg1[%c55] : memref<162xf32, #tpu.memory_space<smem>>
    %48 = vector.broadcast %47 : f32 to vector<2x256xf32>
    %49 = arith.mulf %38, %48 : vector<2x256xf32>
    %50 = arith.addf %25, %49 : vector<2x256xf32>
    %c82 = arith.constant 82 : index
    %51 = memref.load %arg1[%c82] : memref<162xf32, #tpu.memory_space<smem>>
    %52 = vector.broadcast %51 : f32 to vector<2x256xf32>
    %53 = arith.mulf %38, %52 : vector<2x256xf32>
    %54 = arith.addf %29, %53 : vector<2x256xf32>
    %c109 = arith.constant 109 : index
    %55 = memref.load %arg1[%c109] : memref<162xf32, #tpu.memory_space<smem>>
    %56 = vector.broadcast %55 : f32 to vector<2x256xf32>
    %57 = arith.mulf %38, %56 : vector<2x256xf32>
    %58 = arith.addf %33, %57 : vector<2x256xf32>
    %c136 = arith.constant 136 : index
    %59 = memref.load %arg1[%c136] : memref<162xf32, #tpu.memory_space<smem>>
    %60 = vector.broadcast %59 : f32 to vector<2x256xf32>
    %61 = arith.mulf %38, %60 : vector<2x256xf32>
    %62 = arith.addf %37, %61 : vector<2x256xf32>
    %c254_i32 = arith.constant 254 : i32
    %63 = tpu.dynamic_rotate %13 by %c254_i32 dim 1 : vector<2x256xf32>, i32 -> vector<2x256xf32>
    %c2_5 = arith.constant 2 : index
    %64 = memref.load %arg1[%c2_5] : memref<162xf32, #tpu.memory_space<smem>>
    %65 = vector.broadcast %64 : f32 to vector<2x256xf32>
    %66 = arith.mulf %63, %65 : vector<2x256xf32>
    %67 = arith.addf %42, %66 : vector<2x256xf32>
    %c29 = arith.constant 29 : index
    %68 = memref.load %arg1[%c29] : memref<162xf32, #tpu.memory_space<smem>>
    %69 = vector.broadcast %68 : f32 to vector<2x256xf32>
    %70 = arith.mulf %63, %69 : vector<2x256xf32>
    %71 = arith.addf %46, %70 : vector<2x256xf32>
    %c56 = arith.constant 56 : index
    %72 = memref.load %arg1[%c56] : memref<162xf32, #tpu.memory_space<smem>>
    %73 = vector.broadcast %72 : f32 to vector<2x256xf32>
    %74 = arith.mulf %63, %73 : vector<2x256xf32>
    %75 = arith.addf %50, %74 : vector<2x256xf32>
    %c83 = arith.constant 83 : index
    %76 = memref.load %arg1[%c83] : memref<162xf32, #tpu.memory_space<smem>>
    %77 = vector.broadcast %76 : f32 to vector<2x256xf32>
    %78 = arith.mulf %63, %77 : vector<2x256xf32>
    %79 = arith.addf %54, %78 : vector<2x256xf32>
    %c110 = arith.constant 110 : index
    %80 = memref.load %arg1[%c110] : memref<162xf32, #tpu.memory_space<smem>>
    %81 = vector.broadcast %80 : f32 to vector<2x256xf32>
    %82 = arith.mulf %63, %81 : vector<2x256xf32>
    %83 = arith.addf %58, %82 : vector<2x256xf32>
    %c137 = arith.constant 137 : index
    %84 = memref.load %arg1[%c137] : memref<162xf32, #tpu.memory_space<smem>>
    %85 = vector.broadcast %84 : f32 to vector<2x256xf32>
    %86 = arith.mulf %63, %85 : vector<2x256xf32>
    %87 = arith.addf %62, %86 : vector<2x256xf32>
    %c240_i32 = arith.constant 240 : i32
    %88 = tpu.dynamic_rotate %13 by %c240_i32 dim 1 : vector<2x256xf32>, i32 -> vector<2x256xf32>
    %c3_6 = arith.constant 3 : index
    %89 = memref.load %arg1[%c3_6] : memref<162xf32, #tpu.memory_space<smem>>
    %90 = vector.broadcast %89 : f32 to vector<2x256xf32>
    %91 = arith.mulf %88, %90 : vector<2x256xf32>
    %92 = arith.addf %67, %91 : vector<2x256xf32>
    %c30 = arith.constant 30 : index
    %93 = memref.load %arg1[%c30] : memref<162xf32, #tpu.memory_space<smem>>
    %94 = vector.broadcast %93 : f32 to vector<2x256xf32>
    %95 = arith.mulf %88, %94 : vector<2x256xf32>
    %96 = arith.addf %71, %95 : vector<2x256xf32>
    %c57 = arith.constant 57 : index
    %97 = memref.load %arg1[%c57] : memref<162xf32, #tpu.memory_space<smem>>
    %98 = vector.broadcast %97 : f32 to vector<2x256xf32>
    %99 = arith.mulf %88, %98 : vector<2x256xf32>
    %100 = arith.addf %75, %99 : vector<2x256xf32>
    %c84 = arith.constant 84 : index
    %101 = memref.load %arg1[%c84] : memref<162xf32, #tpu.memory_space<smem>>
    %102 = vector.broadcast %101 : f32 to vector<2x256xf32>
    %103 = arith.mulf %88, %102 : vector<2x256xf32>
    %104 = arith.addf %79, %103 : vector<2x256xf32>
    %c111 = arith.constant 111 : index
    %105 = memref.load %arg1[%c111] : memref<162xf32, #tpu.memory_space<smem>>
    %106 = vector.broadcast %105 : f32 to vector<2x256xf32>
    %107 = arith.mulf %88, %106 : vector<2x256xf32>
    %108 = arith.addf %83, %107 : vector<2x256xf32>
    %c138 = arith.constant 138 : index
    %109 = memref.load %arg1[%c138] : memref<162xf32, #tpu.memory_space<smem>>
    %110 = vector.broadcast %109 : f32 to vector<2x256xf32>
    %111 = arith.mulf %88, %110 : vector<2x256xf32>
    %112 = arith.addf %87, %111 : vector<2x256xf32>
    %c239_i32 = arith.constant 239 : i32
    %113 = tpu.dynamic_rotate %13 by %c239_i32 dim 1 : vector<2x256xf32>, i32 -> vector<2x256xf32>
    %c4_7 = arith.constant 4 : index
    %114 = memref.load %arg1[%c4_7] : memref<162xf32, #tpu.memory_space<smem>>
    %115 = vector.broadcast %114 : f32 to vector<2x256xf32>
    %116 = arith.mulf %113, %115 : vector<2x256xf32>
    %117 = arith.addf %92, %116 : vector<2x256xf32>
    %c31 = arith.constant 31 : index
    %118 = memref.load %arg1[%c31] : memref<162xf32, #tpu.memory_space<smem>>
    %119 = vector.broadcast %118 : f32 to vector<2x256xf32>
    %120 = arith.mulf %113, %119 : vector<2x256xf32>
    %121 = arith.addf %96, %120 : vector<2x256xf32>
    %c58 = arith.constant 58 : index
    %122 = memref.load %arg1[%c58] : memref<162xf32, #tpu.memory_space<smem>>
    %123 = vector.broadcast %122 : f32 to vector<2x256xf32>
    %124 = arith.mulf %113, %123 : vector<2x256xf32>
    %125 = arith.addf %100, %124 : vector<2x256xf32>
    %c85 = arith.constant 85 : index
    %126 = memref.load %arg1[%c85] : memref<162xf32, #tpu.memory_space<smem>>
    %127 = vector.broadcast %126 : f32 to vector<2x256xf32>
    %128 = arith.mulf %113, %127 : vector<2x256xf32>
    %129 = arith.addf %104, %128 : vector<2x256xf32>
    %c112 = arith.constant 112 : index
    %130 = memref.load %arg1[%c112] : memref<162xf32, #tpu.memory_space<smem>>
    %131 = vector.broadcast %130 : f32 to vector<2x256xf32>
    %132 = arith.mulf %113, %131 : vector<2x256xf32>
    %133 = arith.addf %108, %132 : vector<2x256xf32>
    %c139 = arith.constant 139 : index
    %134 = memref.load %arg1[%c139] : memref<162xf32, #tpu.memory_space<smem>>
    %135 = vector.broadcast %134 : f32 to vector<2x256xf32>
    %136 = arith.mulf %113, %135 : vector<2x256xf32>
    %137 = arith.addf %112, %136 : vector<2x256xf32>
    %c238_i32 = arith.constant 238 : i32
    %138 = tpu.dynamic_rotate %13 by %c238_i32 dim 1 : vector<2x256xf32>, i32 -> vector<2x256xf32>
    %c5_8 = arith.constant 5 : index
    %139 = memref.load %arg1[%c5_8] : memref<162xf32, #tpu.memory_space<smem>>
    %140 = vector.broadcast %139 : f32 to vector<2x256xf32>
    %141 = arith.mulf %138, %140 : vector<2x256xf32>
    %142 = arith.addf %117, %141 : vector<2x256xf32>
    %c32 = arith.constant 32 : index
    %143 = memref.load %arg1[%c32] : memref<162xf32, #tpu.memory_space<smem>>
    %144 = vector.broadcast %143 : f32 to vector<2x256xf32>
    %145 = arith.mulf %138, %144 : vector<2x256xf32>
    %146 = arith.addf %121, %145 : vector<2x256xf32>
    %c59 = arith.constant 59 : index
    %147 = memref.load %arg1[%c59] : memref<162xf32, #tpu.memory_space<smem>>
    %148 = vector.broadcast %147 : f32 to vector<2x256xf32>
    %149 = arith.mulf %138, %148 : vector<2x256xf32>
    %150 = arith.addf %125, %149 : vector<2x256xf32>
    %c86 = arith.constant 86 : index
    %151 = memref.load %arg1[%c86] : memref<162xf32, #tpu.memory_space<smem>>
    %152 = vector.broadcast %151 : f32 to vector<2x256xf32>
    %153 = arith.mulf %138, %152 : vector<2x256xf32>
    %154 = arith.addf %129, %153 : vector<2x256xf32>
    %c113 = arith.constant 113 : index
    %155 = memref.load %arg1[%c113] : memref<162xf32, #tpu.memory_space<smem>>
    %156 = vector.broadcast %155 : f32 to vector<2x256xf32>
    %157 = arith.mulf %138, %156 : vector<2x256xf32>
    %158 = arith.addf %133, %157 : vector<2x256xf32>
    %c140 = arith.constant 140 : index
    %159 = memref.load %arg1[%c140] : memref<162xf32, #tpu.memory_space<smem>>
    %160 = vector.broadcast %159 : f32 to vector<2x256xf32>
    %161 = arith.mulf %138, %160 : vector<2x256xf32>
    %162 = arith.addf %137, %161 : vector<2x256xf32>
    %c224_i32 = arith.constant 224 : i32
    %163 = tpu.dynamic_rotate %13 by %c224_i32 dim 1 : vector<2x256xf32>, i32 -> vector<2x256xf32>
    %c6 = arith.constant 6 : index
    %164 = memref.load %arg1[%c6] : memref<162xf32, #tpu.memory_space<smem>>
    %165 = vector.broadcast %164 : f32 to vector<2x256xf32>
    %166 = arith.mulf %163, %165 : vector<2x256xf32>
    %167 = arith.addf %142, %166 : vector<2x256xf32>
    %c33 = arith.constant 33 : index
    %168 = memref.load %arg1[%c33] : memref<162xf32, #tpu.memory_space<smem>>
    %169 = vector.broadcast %168 : f32 to vector<2x256xf32>
    %170 = arith.mulf %163, %169 : vector<2x256xf32>
    %171 = arith.addf %146, %170 : vector<2x256xf32>
    %c60 = arith.constant 60 : index
    %172 = memref.load %arg1[%c60] : memref<162xf32, #tpu.memory_space<smem>>
    %173 = vector.broadcast %172 : f32 to vector<2x256xf32>
    %174 = arith.mulf %163, %173 : vector<2x256xf32>
    %175 = arith.addf %150, %174 : vector<2x256xf32>
    %c87 = arith.constant 87 : index
    %176 = memref.load %arg1[%c87] : memref<162xf32, #tpu.memory_space<smem>>
    %177 = vector.broadcast %176 : f32 to vector<2x256xf32>
    %178 = arith.mulf %163, %177 : vector<2x256xf32>
    %179 = arith.addf %154, %178 : vector<2x256xf32>
    %c114 = arith.constant 114 : index
    %180 = memref.load %arg1[%c114] : memref<162xf32, #tpu.memory_space<smem>>
    %181 = vector.broadcast %180 : f32 to vector<2x256xf32>
    %182 = arith.mulf %163, %181 : vector<2x256xf32>
    %183 = arith.addf %158, %182 : vector<2x256xf32>
    %c141 = arith.constant 141 : index
    %184 = memref.load %arg1[%c141] : memref<162xf32, #tpu.memory_space<smem>>
    %185 = vector.broadcast %184 : f32 to vector<2x256xf32>
    %186 = arith.mulf %163, %185 : vector<2x256xf32>
    %187 = arith.addf %162, %186 : vector<2x256xf32>
    %c223_i32 = arith.constant 223 : i32
    %188 = tpu.dynamic_rotate %13 by %c223_i32 dim 1 : vector<2x256xf32>, i32 -> vector<2x256xf32>
    %c7 = arith.constant 7 : index
    %189 = memref.load %arg1[%c7] : memref<162xf32, #tpu.memory_space<smem>>
    %190 = vector.broadcast %189 : f32 to vector<2x256xf32>
    %191 = arith.mulf %188, %190 : vector<2x256xf32>
    %192 = arith.addf %167, %191 : vector<2x256xf32>
    %c34 = arith.constant 34 : index
    %193 = memref.load %arg1[%c34] : memref<162xf32, #tpu.memory_space<smem>>
    %194 = vector.broadcast %193 : f32 to vector<2x256xf32>
    %195 = arith.mulf %188, %194 : vector<2x256xf32>
    %196 = arith.addf %171, %195 : vector<2x256xf32>
    %c61 = arith.constant 61 : index
    %197 = memref.load %arg1[%c61] : memref<162xf32, #tpu.memory_space<smem>>
    %198 = vector.broadcast %197 : f32 to vector<2x256xf32>
    %199 = arith.mulf %188, %198 : vector<2x256xf32>
    %200 = arith.addf %175, %199 : vector<2x256xf32>
    %c88 = arith.constant 88 : index
    %201 = memref.load %arg1[%c88] : memref<162xf32, #tpu.memory_space<smem>>
    %202 = vector.broadcast %201 : f32 to vector<2x256xf32>
    %203 = arith.mulf %188, %202 : vector<2x256xf32>
    %204 = arith.addf %179, %203 : vector<2x256xf32>
    %c115 = arith.constant 115 : index
    %205 = memref.load %arg1[%c115] : memref<162xf32, #tpu.memory_space<smem>>
    %206 = vector.broadcast %205 : f32 to vector<2x256xf32>
    %207 = arith.mulf %188, %206 : vector<2x256xf32>
    %208 = arith.addf %183, %207 : vector<2x256xf32>
    %c142 = arith.constant 142 : index
    %209 = memref.load %arg1[%c142] : memref<162xf32, #tpu.memory_space<smem>>
    %210 = vector.broadcast %209 : f32 to vector<2x256xf32>
    %211 = arith.mulf %188, %210 : vector<2x256xf32>
    %212 = arith.addf %187, %211 : vector<2x256xf32>
    %c222_i32 = arith.constant 222 : i32
    %213 = tpu.dynamic_rotate %13 by %c222_i32 dim 1 : vector<2x256xf32>, i32 -> vector<2x256xf32>
    %c8 = arith.constant 8 : index
    %214 = memref.load %arg1[%c8] : memref<162xf32, #tpu.memory_space<smem>>
    %215 = vector.broadcast %214 : f32 to vector<2x256xf32>
    %216 = arith.mulf %213, %215 : vector<2x256xf32>
    %217 = arith.addf %192, %216 : vector<2x256xf32>
    %c35 = arith.constant 35 : index
    %218 = memref.load %arg1[%c35] : memref<162xf32, #tpu.memory_space<smem>>
    %219 = vector.broadcast %218 : f32 to vector<2x256xf32>
    %220 = arith.mulf %213, %219 : vector<2x256xf32>
    %221 = arith.addf %196, %220 : vector<2x256xf32>
    %c62 = arith.constant 62 : index
    %222 = memref.load %arg1[%c62] : memref<162xf32, #tpu.memory_space<smem>>
    %223 = vector.broadcast %222 : f32 to vector<2x256xf32>
    %224 = arith.mulf %213, %223 : vector<2x256xf32>
    %225 = arith.addf %200, %224 : vector<2x256xf32>
    %c89 = arith.constant 89 : index
    %226 = memref.load %arg1[%c89] : memref<162xf32, #tpu.memory_space<smem>>
    %227 = vector.broadcast %226 : f32 to vector<2x256xf32>
    %228 = arith.mulf %213, %227 : vector<2x256xf32>
    %229 = arith.addf %204, %228 : vector<2x256xf32>
    %c116 = arith.constant 116 : index
    %230 = memref.load %arg1[%c116] : memref<162xf32, #tpu.memory_space<smem>>
    %231 = vector.broadcast %230 : f32 to vector<2x256xf32>
    %232 = arith.mulf %213, %231 : vector<2x256xf32>
    %233 = arith.addf %208, %232 : vector<2x256xf32>
    %c143 = arith.constant 143 : index
    %234 = memref.load %arg1[%c143] : memref<162xf32, #tpu.memory_space<smem>>
    %235 = vector.broadcast %234 : f32 to vector<2x256xf32>
    %236 = arith.mulf %213, %235 : vector<2x256xf32>
    %237 = arith.addf %212, %236 : vector<2x256xf32>
    %c0_9 = arith.constant 0 : index
    %c1_10 = arith.constant 1 : index
    %c0_11 = arith.constant 0 : index
    %238 = vector.load %arg0[%c0_9, %c1_10, %c0_11] : memref<2x3x256xf32, #tpu.memory_space<vmem>>, vector<2x1x256xf32>
    %239 = vector.shape_cast %238 : vector<2x1x256xf32> to vector<2x256xf32>
    %c9 = arith.constant 9 : index
    %240 = memref.load %arg1[%c9] : memref<162xf32, #tpu.memory_space<smem>>
    %241 = vector.broadcast %240 : f32 to vector<2x256xf32>
    %242 = arith.mulf %239, %241 : vector<2x256xf32>
    %243 = arith.addf %217, %242 : vector<2x256xf32>
    %c36 = arith.constant 36 : index
    %244 = memref.load %arg1[%c36] : memref<162xf32, #tpu.memory_space<smem>>
    %245 = vector.broadcast %244 : f32 to vector<2x256xf32>
    %246 = arith.mulf %239, %245 : vector<2x256xf32>
    %247 = arith.addf %221, %246 : vector<2x256xf32>
    %c63 = arith.constant 63 : index
    %248 = memref.load %arg1[%c63] : memref<162xf32, #tpu.memory_space<smem>>
    %249 = vector.broadcast %248 : f32 to vector<2x256xf32>
    %250 = arith.mulf %239, %249 : vector<2x256xf32>
    %251 = arith.addf %225, %250 : vector<2x256xf32>
    %c90 = arith.constant 90 : index
    %252 = memref.load %arg1[%c90] : memref<162xf32, #tpu.memory_space<smem>>
    %253 = vector.broadcast %252 : f32 to vector<2x256xf32>
    %254 = arith.mulf %239, %253 : vector<2x256xf32>
    %255 = arith.addf %229, %254 : vector<2x256xf32>
    %c117 = arith.constant 117 : index
    %256 = memref.load %arg1[%c117] : memref<162xf32, #tpu.memory_space<smem>>
    %257 = vector.broadcast %256 : f32 to vector<2x256xf32>
    %258 = arith.mulf %239, %257 : vector<2x256xf32>
    %259 = arith.addf %233, %258 : vector<2x256xf32>
    %c144 = arith.constant 144 : index
    %260 = memref.load %arg1[%c144] : memref<162xf32, #tpu.memory_space<smem>>
    %261 = vector.broadcast %260 : f32 to vector<2x256xf32>
    %262 = arith.mulf %239, %261 : vector<2x256xf32>
    %263 = arith.addf %237, %262 : vector<2x256xf32>
    %c255_i32_12 = arith.constant 255 : i32
    %264 = tpu.dynamic_rotate %239 by %c255_i32_12 dim 1 : vector<2x256xf32>, i32 -> vector<2x256xf32>
    %c10 = arith.constant 10 : index
    %265 = memref.load %arg1[%c10] : memref<162xf32, #tpu.memory_space<smem>>
    %266 = vector.broadcast %265 : f32 to vector<2x256xf32>
    %267 = arith.mulf %264, %266 : vector<2x256xf32>
    %268 = arith.addf %243, %267 : vector<2x256xf32>
    %c37 = arith.constant 37 : index
    %269 = memref.load %arg1[%c37] : memref<162xf32, #tpu.memory_space<smem>>
    %270 = vector.broadcast %269 : f32 to vector<2x256xf32>
    %271 = arith.mulf %264, %270 : vector<2x256xf32>
    %272 = arith.addf %247, %271 : vector<2x256xf32>
    %c64 = arith.constant 64 : index
    %273 = memref.load %arg1[%c64] : memref<162xf32, #tpu.memory_space<smem>>
    %274 = vector.broadcast %273 : f32 to vector<2x256xf32>
    %275 = arith.mulf %264, %274 : vector<2x256xf32>
    %276 = arith.addf %251, %275 : vector<2x256xf32>
    %c91 = arith.constant 91 : index
    %277 = memref.load %arg1[%c91] : memref<162xf32, #tpu.memory_space<smem>>
    %278 = vector.broadcast %277 : f32 to vector<2x256xf32>
    %279 = arith.mulf %264, %278 : vector<2x256xf32>
    %280 = arith.addf %255, %279 : vector<2x256xf32>
    %c118 = arith.constant 118 : index
    %281 = memref.load %arg1[%c118] : memref<162xf32, #tpu.memory_space<smem>>
    %282 = vector.broadcast %281 : f32 to vector<2x256xf32>
    %283 = arith.mulf %264, %282 : vector<2x256xf32>
    %284 = arith.addf %259, %283 : vector<2x256xf32>
    %c145 = arith.constant 145 : index
    %285 = memref.load %arg1[%c145] : memref<162xf32, #tpu.memory_space<smem>>
    %286 = vector.broadcast %285 : f32 to vector<2x256xf32>
    %287 = arith.mulf %264, %286 : vector<2x256xf32>
    %288 = arith.addf %263, %287 : vector<2x256xf32>
    %c254_i32_13 = arith.constant 254 : i32
    %289 = tpu.dynamic_rotate %239 by %c254_i32_13 dim 1 : vector<2x256xf32>, i32 -> vector<2x256xf32>
    %c11 = arith.constant 11 : index
    %290 = memref.load %arg1[%c11] : memref<162xf32, #tpu.memory_space<smem>>
    %291 = vector.broadcast %290 : f32 to vector<2x256xf32>
    %292 = arith.mulf %289, %291 : vector<2x256xf32>
    %293 = arith.addf %268, %292 : vector<2x256xf32>
    %c38 = arith.constant 38 : index
    %294 = memref.load %arg1[%c38] : memref<162xf32, #tpu.memory_space<smem>>
    %295 = vector.broadcast %294 : f32 to vector<2x256xf32>
    %296 = arith.mulf %289, %295 : vector<2x256xf32>
    %297 = arith.addf %272, %296 : vector<2x256xf32>
    %c65 = arith.constant 65 : index
    %298 = memref.load %arg1[%c65] : memref<162xf32, #tpu.memory_space<smem>>
    %299 = vector.broadcast %298 : f32 to vector<2x256xf32>
    %300 = arith.mulf %289, %299 : vector<2x256xf32>
    %301 = arith.addf %276, %300 : vector<2x256xf32>
    %c92 = arith.constant 92 : index
    %302 = memref.load %arg1[%c92] : memref<162xf32, #tpu.memory_space<smem>>
    %303 = vector.broadcast %302 : f32 to vector<2x256xf32>
    %304 = arith.mulf %289, %303 : vector<2x256xf32>
    %305 = arith.addf %280, %304 : vector<2x256xf32>
    %c119 = arith.constant 119 : index
    %306 = memref.load %arg1[%c119] : memref<162xf32, #tpu.memory_space<smem>>
    %307 = vector.broadcast %306 : f32 to vector<2x256xf32>
    %308 = arith.mulf %289, %307 : vector<2x256xf32>
    %309 = arith.addf %284, %308 : vector<2x256xf32>
    %c146 = arith.constant 146 : index
    %310 = memref.load %arg1[%c146] : memref<162xf32, #tpu.memory_space<smem>>
    %311 = vector.broadcast %310 : f32 to vector<2x256xf32>
    %312 = arith.mulf %289, %311 : vector<2x256xf32>
    %313 = arith.addf %288, %312 : vector<2x256xf32>
    %c240_i32_14 = arith.constant 240 : i32
    %314 = tpu.dynamic_rotate %239 by %c240_i32_14 dim 1 : vector<2x256xf32>, i32 -> vector<2x256xf32>
    %c12 = arith.constant 12 : index
    %315 = memref.load %arg1[%c12] : memref<162xf32, #tpu.memory_space<smem>>
    %316 = vector.broadcast %315 : f32 to vector<2x256xf32>
    %317 = arith.mulf %314, %316 : vector<2x256xf32>
    %318 = arith.addf %293, %317 : vector<2x256xf32>
    %c39 = arith.constant 39 : index
    %319 = memref.load %arg1[%c39] : memref<162xf32, #tpu.memory_space<smem>>
    %320 = vector.broadcast %319 : f32 to vector<2x256xf32>
    %321 = arith.mulf %314, %320 : vector<2x256xf32>
    %322 = arith.addf %297, %321 : vector<2x256xf32>
    %c66 = arith.constant 66 : index
    %323 = memref.load %arg1[%c66] : memref<162xf32, #tpu.memory_space<smem>>
    %324 = vector.broadcast %323 : f32 to vector<2x256xf32>
    %325 = arith.mulf %314, %324 : vector<2x256xf32>
    %326 = arith.addf %301, %325 : vector<2x256xf32>
    %c93 = arith.constant 93 : index
    %327 = memref.load %arg1[%c93] : memref<162xf32, #tpu.memory_space<smem>>
    %328 = vector.broadcast %327 : f32 to vector<2x256xf32>
    %329 = arith.mulf %314, %328 : vector<2x256xf32>
    %330 = arith.addf %305, %329 : vector<2x256xf32>
    %c120 = arith.constant 120 : index
    %331 = memref.load %arg1[%c120] : memref<162xf32, #tpu.memory_space<smem>>
    %332 = vector.broadcast %331 : f32 to vector<2x256xf32>
    %333 = arith.mulf %314, %332 : vector<2x256xf32>
    %334 = arith.addf %309, %333 : vector<2x256xf32>
    %c147 = arith.constant 147 : index
    %335 = memref.load %arg1[%c147] : memref<162xf32, #tpu.memory_space<smem>>
    %336 = vector.broadcast %335 : f32 to vector<2x256xf32>
    %337 = arith.mulf %314, %336 : vector<2x256xf32>
    %338 = arith.addf %313, %337 : vector<2x256xf32>
    %c239_i32_15 = arith.constant 239 : i32
    %339 = tpu.dynamic_rotate %239 by %c239_i32_15 dim 1 : vector<2x256xf32>, i32 -> vector<2x256xf32>
    %c13 = arith.constant 13 : index
    %340 = memref.load %arg1[%c13] : memref<162xf32, #tpu.memory_space<smem>>
    %341 = vector.broadcast %340 : f32 to vector<2x256xf32>
    %342 = arith.mulf %339, %341 : vector<2x256xf32>
    %343 = arith.addf %318, %342 : vector<2x256xf32>
    %c40 = arith.constant 40 : index
    %344 = memref.load %arg1[%c40] : memref<162xf32, #tpu.memory_space<smem>>
    %345 = vector.broadcast %344 : f32 to vector<2x256xf32>
    %346 = arith.mulf %339, %345 : vector<2x256xf32>
    %347 = arith.addf %322, %346 : vector<2x256xf32>
    %c67 = arith.constant 67 : index
    %348 = memref.load %arg1[%c67] : memref<162xf32, #tpu.memory_space<smem>>
    %349 = vector.broadcast %348 : f32 to vector<2x256xf32>
    %350 = arith.mulf %339, %349 : vector<2x256xf32>
    %351 = arith.addf %326, %350 : vector<2x256xf32>
    %c94 = arith.constant 94 : index
    %352 = memref.load %arg1[%c94] : memref<162xf32, #tpu.memory_space<smem>>
    %353 = vector.broadcast %352 : f32 to vector<2x256xf32>
    %354 = arith.mulf %339, %353 : vector<2x256xf32>
    %355 = arith.addf %330, %354 : vector<2x256xf32>
    %c121 = arith.constant 121 : index
    %356 = memref.load %arg1[%c121] : memref<162xf32, #tpu.memory_space<smem>>
    %357 = vector.broadcast %356 : f32 to vector<2x256xf32>
    %358 = arith.mulf %339, %357 : vector<2x256xf32>
    %359 = arith.addf %334, %358 : vector<2x256xf32>
    %c148 = arith.constant 148 : index
    %360 = memref.load %arg1[%c148] : memref<162xf32, #tpu.memory_space<smem>>
    %361 = vector.broadcast %360 : f32 to vector<2x256xf32>
    %362 = arith.mulf %339, %361 : vector<2x256xf32>
    %363 = arith.addf %338, %362 : vector<2x256xf32>
    %c238_i32_16 = arith.constant 238 : i32
    %364 = tpu.dynamic_rotate %239 by %c238_i32_16 dim 1 : vector<2x256xf32>, i32 -> vector<2x256xf32>
    %c14 = arith.constant 14 : index
    %365 = memref.load %arg1[%c14] : memref<162xf32, #tpu.memory_space<smem>>
    %366 = vector.broadcast %365 : f32 to vector<2x256xf32>
    %367 = arith.mulf %364, %366 : vector<2x256xf32>
    %368 = arith.addf %343, %367 : vector<2x256xf32>
    %c41 = arith.constant 41 : index
    %369 = memref.load %arg1[%c41] : memref<162xf32, #tpu.memory_space<smem>>
    %370 = vector.broadcast %369 : f32 to vector<2x256xf32>
    %371 = arith.mulf %364, %370 : vector<2x256xf32>
    %372 = arith.addf %347, %371 : vector<2x256xf32>
    %c68 = arith.constant 68 : index
    %373 = memref.load %arg1[%c68] : memref<162xf32, #tpu.memory_space<smem>>
    %374 = vector.broadcast %373 : f32 to vector<2x256xf32>
    %375 = arith.mulf %364, %374 : vector<2x256xf32>
    %376 = arith.addf %351, %375 : vector<2x256xf32>
    %c95 = arith.constant 95 : index
    %377 = memref.load %arg1[%c95] : memref<162xf32, #tpu.memory_space<smem>>
    %378 = vector.broadcast %377 : f32 to vector<2x256xf32>
    %379 = arith.mulf %364, %378 : vector<2x256xf32>
    %380 = arith.addf %355, %379 : vector<2x256xf32>
    %c122 = arith.constant 122 : index
    %381 = memref.load %arg1[%c122] : memref<162xf32, #tpu.memory_space<smem>>
    %382 = vector.broadcast %381 : f32 to vector<2x256xf32>
    %383 = arith.mulf %364, %382 : vector<2x256xf32>
    %384 = arith.addf %359, %383 : vector<2x256xf32>
    %c149 = arith.constant 149 : index
    %385 = memref.load %arg1[%c149] : memref<162xf32, #tpu.memory_space<smem>>
    %386 = vector.broadcast %385 : f32 to vector<2x256xf32>
    %387 = arith.mulf %364, %386 : vector<2x256xf32>
    %388 = arith.addf %363, %387 : vector<2x256xf32>
    %c224_i32_17 = arith.constant 224 : i32
    %389 = tpu.dynamic_rotate %239 by %c224_i32_17 dim 1 : vector<2x256xf32>, i32 -> vector<2x256xf32>
    %c15 = arith.constant 15 : index
    %390 = memref.load %arg1[%c15] : memref<162xf32, #tpu.memory_space<smem>>
    %391 = vector.broadcast %390 : f32 to vector<2x256xf32>
    %392 = arith.mulf %389, %391 : vector<2x256xf32>
    %393 = arith.addf %368, %392 : vector<2x256xf32>
    %c42 = arith.constant 42 : index
    %394 = memref.load %arg1[%c42] : memref<162xf32, #tpu.memory_space<smem>>
    %395 = vector.broadcast %394 : f32 to vector<2x256xf32>
    %396 = arith.mulf %389, %395 : vector<2x256xf32>
    %397 = arith.addf %372, %396 : vector<2x256xf32>
    %c69 = arith.constant 69 : index
    %398 = memref.load %arg1[%c69] : memref<162xf32, #tpu.memory_space<smem>>
    %399 = vector.broadcast %398 : f32 to vector<2x256xf32>
    %400 = arith.mulf %389, %399 : vector<2x256xf32>
    %401 = arith.addf %376, %400 : vector<2x256xf32>
    %c96 = arith.constant 96 : index
    %402 = memref.load %arg1[%c96] : memref<162xf32, #tpu.memory_space<smem>>
    %403 = vector.broadcast %402 : f32 to vector<2x256xf32>
    %404 = arith.mulf %389, %403 : vector<2x256xf32>
    %405 = arith.addf %380, %404 : vector<2x256xf32>
    %c123 = arith.constant 123 : index
    %406 = memref.load %arg1[%c123] : memref<162xf32, #tpu.memory_space<smem>>
    %407 = vector.broadcast %406 : f32 to vector<2x256xf32>
    %408 = arith.mulf %389, %407 : vector<2x256xf32>
    %409 = arith.addf %384, %408 : vector<2x256xf32>
    %c150 = arith.constant 150 : index
    %410 = memref.load %arg1[%c150] : memref<162xf32, #tpu.memory_space<smem>>
    %411 = vector.broadcast %410 : f32 to vector<2x256xf32>
    %412 = arith.mulf %389, %411 : vector<2x256xf32>
    %413 = arith.addf %388, %412 : vector<2x256xf32>
    %c223_i32_18 = arith.constant 223 : i32
    %414 = tpu.dynamic_rotate %239 by %c223_i32_18 dim 1 : vector<2x256xf32>, i32 -> vector<2x256xf32>
    %c16 = arith.constant 16 : index
    %415 = memref.load %arg1[%c16] : memref<162xf32, #tpu.memory_space<smem>>
    %416 = vector.broadcast %415 : f32 to vector<2x256xf32>
    %417 = arith.mulf %414, %416 : vector<2x256xf32>
    %418 = arith.addf %393, %417 : vector<2x256xf32>
    %c43 = arith.constant 43 : index
    %419 = memref.load %arg1[%c43] : memref<162xf32, #tpu.memory_space<smem>>
    %420 = vector.broadcast %419 : f32 to vector<2x256xf32>
    %421 = arith.mulf %414, %420 : vector<2x256xf32>
    %422 = arith.addf %397, %421 : vector<2x256xf32>
    %c70 = arith.constant 70 : index
    %423 = memref.load %arg1[%c70] : memref<162xf32, #tpu.memory_space<smem>>
    %424 = vector.broadcast %423 : f32 to vector<2x256xf32>
    %425 = arith.mulf %414, %424 : vector<2x256xf32>
    %426 = arith.addf %401, %425 : vector<2x256xf32>
    %c97 = arith.constant 97 : index
    %427 = memref.load %arg1[%c97] : memref<162xf32, #tpu.memory_space<smem>>
    %428 = vector.broadcast %427 : f32 to vector<2x256xf32>
    %429 = arith.mulf %414, %428 : vector<2x256xf32>
    %430 = arith.addf %405, %429 : vector<2x256xf32>
    %c124 = arith.constant 124 : index
    %431 = memref.load %arg1[%c124] : memref<162xf32, #tpu.memory_space<smem>>
    %432 = vector.broadcast %431 : f32 to vector<2x256xf32>
    %433 = arith.mulf %414, %432 : vector<2x256xf32>
    %434 = arith.addf %409, %433 : vector<2x256xf32>
    %c151 = arith.constant 151 : index
    %435 = memref.load %arg1[%c151] : memref<162xf32, #tpu.memory_space<smem>>
    %436 = vector.broadcast %435 : f32 to vector<2x256xf32>
    %437 = arith.mulf %414, %436 : vector<2x256xf32>
    %438 = arith.addf %413, %437 : vector<2x256xf32>
    %c222_i32_19 = arith.constant 222 : i32
    %439 = tpu.dynamic_rotate %239 by %c222_i32_19 dim 1 : vector<2x256xf32>, i32 -> vector<2x256xf32>
    %c17 = arith.constant 17 : index
    %440 = memref.load %arg1[%c17] : memref<162xf32, #tpu.memory_space<smem>>
    %441 = vector.broadcast %440 : f32 to vector<2x256xf32>
    %442 = arith.mulf %439, %441 : vector<2x256xf32>
    %443 = arith.addf %418, %442 : vector<2x256xf32>
    %c44 = arith.constant 44 : index
    %444 = memref.load %arg1[%c44] : memref<162xf32, #tpu.memory_space<smem>>
    %445 = vector.broadcast %444 : f32 to vector<2x256xf32>
    %446 = arith.mulf %439, %445 : vector<2x256xf32>
    %447 = arith.addf %422, %446 : vector<2x256xf32>
    %c71 = arith.constant 71 : index
    %448 = memref.load %arg1[%c71] : memref<162xf32, #tpu.memory_space<smem>>
    %449 = vector.broadcast %448 : f32 to vector<2x256xf32>
    %450 = arith.mulf %439, %449 : vector<2x256xf32>
    %451 = arith.addf %426, %450 : vector<2x256xf32>
    %c98 = arith.constant 98 : index
    %452 = memref.load %arg1[%c98] : memref<162xf32, #tpu.memory_space<smem>>
    %453 = vector.broadcast %452 : f32 to vector<2x256xf32>
    %454 = arith.mulf %439, %453 : vector<2x256xf32>
    %455 = arith.addf %430, %454 : vector<2x256xf32>
    %c125 = arith.constant 125 : index
    %456 = memref.load %arg1[%c125] : memref<162xf32, #tpu.memory_space<smem>>
    %457 = vector.broadcast %456 : f32 to vector<2x256xf32>
    %458 = arith.mulf %439, %457 : vector<2x256xf32>
    %459 = arith.addf %434, %458 : vector<2x256xf32>
    %c152 = arith.constant 152 : index
    %460 = memref.load %arg1[%c152] : memref<162xf32, #tpu.memory_space<smem>>
    %461 = vector.broadcast %460 : f32 to vector<2x256xf32>
    %462 = arith.mulf %439, %461 : vector<2x256xf32>
    %463 = arith.addf %438, %462 : vector<2x256xf32>
    %c0_20 = arith.constant 0 : index
    %c2_21 = arith.constant 2 : index
    %c0_22 = arith.constant 0 : index
    %464 = vector.load %arg0[%c0_20, %c2_21, %c0_22] : memref<2x3x256xf32, #tpu.memory_space<vmem>>, vector<2x1x256xf32>
    %465 = vector.shape_cast %464 : vector<2x1x256xf32> to vector<2x256xf32>
    %c18 = arith.constant 18 : index
    %466 = memref.load %arg1[%c18] : memref<162xf32, #tpu.memory_space<smem>>
    %467 = vector.broadcast %466 : f32 to vector<2x256xf32>
    %468 = arith.mulf %465, %467 : vector<2x256xf32>
    %469 = arith.addf %443, %468 : vector<2x256xf32>
    %c45 = arith.constant 45 : index
    %470 = memref.load %arg1[%c45] : memref<162xf32, #tpu.memory_space<smem>>
    %471 = vector.broadcast %470 : f32 to vector<2x256xf32>
    %472 = arith.mulf %465, %471 : vector<2x256xf32>
    %473 = arith.addf %447, %472 : vector<2x256xf32>
    %c72 = arith.constant 72 : index
    %474 = memref.load %arg1[%c72] : memref<162xf32, #tpu.memory_space<smem>>
    %475 = vector.broadcast %474 : f32 to vector<2x256xf32>
    %476 = arith.mulf %465, %475 : vector<2x256xf32>
    %477 = arith.addf %451, %476 : vector<2x256xf32>
    %c99 = arith.constant 99 : index
    %478 = memref.load %arg1[%c99] : memref<162xf32, #tpu.memory_space<smem>>
    %479 = vector.broadcast %478 : f32 to vector<2x256xf32>
    %480 = arith.mulf %465, %479 : vector<2x256xf32>
    %481 = arith.addf %455, %480 : vector<2x256xf32>
    %c126 = arith.constant 126 : index
    %482 = memref.load %arg1[%c126] : memref<162xf32, #tpu.memory_space<smem>>
    %483 = vector.broadcast %482 : f32 to vector<2x256xf32>
    %484 = arith.mulf %465, %483 : vector<2x256xf32>
    %485 = arith.addf %459, %484 : vector<2x256xf32>
    %c153 = arith.constant 153 : index
    %486 = memref.load %arg1[%c153] : memref<162xf32, #tpu.memory_space<smem>>
    %487 = vector.broadcast %486 : f32 to vector<2x256xf32>
    %488 = arith.mulf %465, %487 : vector<2x256xf32>
    %489 = arith.addf %463, %488 : vector<2x256xf32>
    %c255_i32_23 = arith.constant 255 : i32
    %490 = tpu.dynamic_rotate %465 by %c255_i32_23 dim 1 : vector<2x256xf32>, i32 -> vector<2x256xf32>
    %c19 = arith.constant 19 : index
    %491 = memref.load %arg1[%c19] : memref<162xf32, #tpu.memory_space<smem>>
    %492 = vector.broadcast %491 : f32 to vector<2x256xf32>
    %493 = arith.mulf %490, %492 : vector<2x256xf32>
    %494 = arith.addf %469, %493 : vector<2x256xf32>
    %c46 = arith.constant 46 : index
    %495 = memref.load %arg1[%c46] : memref<162xf32, #tpu.memory_space<smem>>
    %496 = vector.broadcast %495 : f32 to vector<2x256xf32>
    %497 = arith.mulf %490, %496 : vector<2x256xf32>
    %498 = arith.addf %473, %497 : vector<2x256xf32>
    %c73 = arith.constant 73 : index
    %499 = memref.load %arg1[%c73] : memref<162xf32, #tpu.memory_space<smem>>
    %500 = vector.broadcast %499 : f32 to vector<2x256xf32>
    %501 = arith.mulf %490, %500 : vector<2x256xf32>
    %502 = arith.addf %477, %501 : vector<2x256xf32>
    %c100 = arith.constant 100 : index
    %503 = memref.load %arg1[%c100] : memref<162xf32, #tpu.memory_space<smem>>
    %504 = vector.broadcast %503 : f32 to vector<2x256xf32>
    %505 = arith.mulf %490, %504 : vector<2x256xf32>
    %506 = arith.addf %481, %505 : vector<2x256xf32>
    %c127 = arith.constant 127 : index
    %507 = memref.load %arg1[%c127] : memref<162xf32, #tpu.memory_space<smem>>
    %508 = vector.broadcast %507 : f32 to vector<2x256xf32>
    %509 = arith.mulf %490, %508 : vector<2x256xf32>
    %510 = arith.addf %485, %509 : vector<2x256xf32>
    %c154 = arith.constant 154 : index
    %511 = memref.load %arg1[%c154] : memref<162xf32, #tpu.memory_space<smem>>
    %512 = vector.broadcast %511 : f32 to vector<2x256xf32>
    %513 = arith.mulf %490, %512 : vector<2x256xf32>
    %514 = arith.addf %489, %513 : vector<2x256xf32>
    %c254_i32_24 = arith.constant 254 : i32
    %515 = tpu.dynamic_rotate %465 by %c254_i32_24 dim 1 : vector<2x256xf32>, i32 -> vector<2x256xf32>
    %c20 = arith.constant 20 : index
    %516 = memref.load %arg1[%c20] : memref<162xf32, #tpu.memory_space<smem>>
    %517 = vector.broadcast %516 : f32 to vector<2x256xf32>
    %518 = arith.mulf %515, %517 : vector<2x256xf32>
    %519 = arith.addf %494, %518 : vector<2x256xf32>
    %c47 = arith.constant 47 : index
    %520 = memref.load %arg1[%c47] : memref<162xf32, #tpu.memory_space<smem>>
    %521 = vector.broadcast %520 : f32 to vector<2x256xf32>
    %522 = arith.mulf %515, %521 : vector<2x256xf32>
    %523 = arith.addf %498, %522 : vector<2x256xf32>
    %c74 = arith.constant 74 : index
    %524 = memref.load %arg1[%c74] : memref<162xf32, #tpu.memory_space<smem>>
    %525 = vector.broadcast %524 : f32 to vector<2x256xf32>
    %526 = arith.mulf %515, %525 : vector<2x256xf32>
    %527 = arith.addf %502, %526 : vector<2x256xf32>
    %c101 = arith.constant 101 : index
    %528 = memref.load %arg1[%c101] : memref<162xf32, #tpu.memory_space<smem>>
    %529 = vector.broadcast %528 : f32 to vector<2x256xf32>
    %530 = arith.mulf %515, %529 : vector<2x256xf32>
    %531 = arith.addf %506, %530 : vector<2x256xf32>
    %c128 = arith.constant 128 : index
    %532 = memref.load %arg1[%c128] : memref<162xf32, #tpu.memory_space<smem>>
    %533 = vector.broadcast %532 : f32 to vector<2x256xf32>
    %534 = arith.mulf %515, %533 : vector<2x256xf32>
    %535 = arith.addf %510, %534 : vector<2x256xf32>
    %c155 = arith.constant 155 : index
    %536 = memref.load %arg1[%c155] : memref<162xf32, #tpu.memory_space<smem>>
    %537 = vector.broadcast %536 : f32 to vector<2x256xf32>
    %538 = arith.mulf %515, %537 : vector<2x256xf32>
    %539 = arith.addf %514, %538 : vector<2x256xf32>
    %c240_i32_25 = arith.constant 240 : i32
    %540 = tpu.dynamic_rotate %465 by %c240_i32_25 dim 1 : vector<2x256xf32>, i32 -> vector<2x256xf32>
    %c21 = arith.constant 21 : index
    %541 = memref.load %arg1[%c21] : memref<162xf32, #tpu.memory_space<smem>>
    %542 = vector.broadcast %541 : f32 to vector<2x256xf32>
    %543 = arith.mulf %540, %542 : vector<2x256xf32>
    %544 = arith.addf %519, %543 : vector<2x256xf32>
    %c48 = arith.constant 48 : index
    %545 = memref.load %arg1[%c48] : memref<162xf32, #tpu.memory_space<smem>>
    %546 = vector.broadcast %545 : f32 to vector<2x256xf32>
    %547 = arith.mulf %540, %546 : vector<2x256xf32>
    %548 = arith.addf %523, %547 : vector<2x256xf32>
    %c75 = arith.constant 75 : index
    %549 = memref.load %arg1[%c75] : memref<162xf32, #tpu.memory_space<smem>>
    %550 = vector.broadcast %549 : f32 to vector<2x256xf32>
    %551 = arith.mulf %540, %550 : vector<2x256xf32>
    %552 = arith.addf %527, %551 : vector<2x256xf32>
    %c102 = arith.constant 102 : index
    %553 = memref.load %arg1[%c102] : memref<162xf32, #tpu.memory_space<smem>>
    %554 = vector.broadcast %553 : f32 to vector<2x256xf32>
    %555 = arith.mulf %540, %554 : vector<2x256xf32>
    %556 = arith.addf %531, %555 : vector<2x256xf32>
    %c129 = arith.constant 129 : index
    %557 = memref.load %arg1[%c129] : memref<162xf32, #tpu.memory_space<smem>>
    %558 = vector.broadcast %557 : f32 to vector<2x256xf32>
    %559 = arith.mulf %540, %558 : vector<2x256xf32>
    %560 = arith.addf %535, %559 : vector<2x256xf32>
    %c156 = arith.constant 156 : index
    %561 = memref.load %arg1[%c156] : memref<162xf32, #tpu.memory_space<smem>>
    %562 = vector.broadcast %561 : f32 to vector<2x256xf32>
    %563 = arith.mulf %540, %562 : vector<2x256xf32>
    %564 = arith.addf %539, %563 : vector<2x256xf32>
    %c239_i32_26 = arith.constant 239 : i32
    %565 = tpu.dynamic_rotate %465 by %c239_i32_26 dim 1 : vector<2x256xf32>, i32 -> vector<2x256xf32>
    %c22 = arith.constant 22 : index
    %566 = memref.load %arg1[%c22] : memref<162xf32, #tpu.memory_space<smem>>
    %567 = vector.broadcast %566 : f32 to vector<2x256xf32>
    %568 = arith.mulf %565, %567 : vector<2x256xf32>
    %569 = arith.addf %544, %568 : vector<2x256xf32>
    %c49 = arith.constant 49 : index
    %570 = memref.load %arg1[%c49] : memref<162xf32, #tpu.memory_space<smem>>
    %571 = vector.broadcast %570 : f32 to vector<2x256xf32>
    %572 = arith.mulf %565, %571 : vector<2x256xf32>
    %573 = arith.addf %548, %572 : vector<2x256xf32>
    %c76 = arith.constant 76 : index
    %574 = memref.load %arg1[%c76] : memref<162xf32, #tpu.memory_space<smem>>
    %575 = vector.broadcast %574 : f32 to vector<2x256xf32>
    %576 = arith.mulf %565, %575 : vector<2x256xf32>
    %577 = arith.addf %552, %576 : vector<2x256xf32>
    %c103 = arith.constant 103 : index
    %578 = memref.load %arg1[%c103] : memref<162xf32, #tpu.memory_space<smem>>
    %579 = vector.broadcast %578 : f32 to vector<2x256xf32>
    %580 = arith.mulf %565, %579 : vector<2x256xf32>
    %581 = arith.addf %556, %580 : vector<2x256xf32>
    %c130 = arith.constant 130 : index
    %582 = memref.load %arg1[%c130] : memref<162xf32, #tpu.memory_space<smem>>
    %583 = vector.broadcast %582 : f32 to vector<2x256xf32>
    %584 = arith.mulf %565, %583 : vector<2x256xf32>
    %585 = arith.addf %560, %584 : vector<2x256xf32>
    %c157 = arith.constant 157 : index
    %586 = memref.load %arg1[%c157] : memref<162xf32, #tpu.memory_space<smem>>
    %587 = vector.broadcast %586 : f32 to vector<2x256xf32>
    %588 = arith.mulf %565, %587 : vector<2x256xf32>
    %589 = arith.addf %564, %588 : vector<2x256xf32>
    %c238_i32_27 = arith.constant 238 : i32
    %590 = tpu.dynamic_rotate %465 by %c238_i32_27 dim 1 : vector<2x256xf32>, i32 -> vector<2x256xf32>
    %c23 = arith.constant 23 : index
    %591 = memref.load %arg1[%c23] : memref<162xf32, #tpu.memory_space<smem>>
    %592 = vector.broadcast %591 : f32 to vector<2x256xf32>
    %593 = arith.mulf %590, %592 : vector<2x256xf32>
    %594 = arith.addf %569, %593 : vector<2x256xf32>
    %c50 = arith.constant 50 : index
    %595 = memref.load %arg1[%c50] : memref<162xf32, #tpu.memory_space<smem>>
    %596 = vector.broadcast %595 : f32 to vector<2x256xf32>
    %597 = arith.mulf %590, %596 : vector<2x256xf32>
    %598 = arith.addf %573, %597 : vector<2x256xf32>
    %c77 = arith.constant 77 : index
    %599 = memref.load %arg1[%c77] : memref<162xf32, #tpu.memory_space<smem>>
    %600 = vector.broadcast %599 : f32 to vector<2x256xf32>
    %601 = arith.mulf %590, %600 : vector<2x256xf32>
    %602 = arith.addf %577, %601 : vector<2x256xf32>
    %c104 = arith.constant 104 : index
    %603 = memref.load %arg1[%c104] : memref<162xf32, #tpu.memory_space<smem>>
    %604 = vector.broadcast %603 : f32 to vector<2x256xf32>
    %605 = arith.mulf %590, %604 : vector<2x256xf32>
    %606 = arith.addf %581, %605 : vector<2x256xf32>
    %c131 = arith.constant 131 : index
    %607 = memref.load %arg1[%c131] : memref<162xf32, #tpu.memory_space<smem>>
    %608 = vector.broadcast %607 : f32 to vector<2x256xf32>
    %609 = arith.mulf %590, %608 : vector<2x256xf32>
    %610 = arith.addf %585, %609 : vector<2x256xf32>
    %c158 = arith.constant 158 : index
    %611 = memref.load %arg1[%c158] : memref<162xf32, #tpu.memory_space<smem>>
    %612 = vector.broadcast %611 : f32 to vector<2x256xf32>
    %613 = arith.mulf %590, %612 : vector<2x256xf32>
    %614 = arith.addf %589, %613 : vector<2x256xf32>
    %c224_i32_28 = arith.constant 224 : i32
    %615 = tpu.dynamic_rotate %465 by %c224_i32_28 dim 1 : vector<2x256xf32>, i32 -> vector<2x256xf32>
    %c24 = arith.constant 24 : index
    %616 = memref.load %arg1[%c24] : memref<162xf32, #tpu.memory_space<smem>>
    %617 = vector.broadcast %616 : f32 to vector<2x256xf32>
    %618 = arith.mulf %615, %617 : vector<2x256xf32>
    %619 = arith.addf %594, %618 : vector<2x256xf32>
    %c51 = arith.constant 51 : index
    %620 = memref.load %arg1[%c51] : memref<162xf32, #tpu.memory_space<smem>>
    %621 = vector.broadcast %620 : f32 to vector<2x256xf32>
    %622 = arith.mulf %615, %621 : vector<2x256xf32>
    %623 = arith.addf %598, %622 : vector<2x256xf32>
    %c78 = arith.constant 78 : index
    %624 = memref.load %arg1[%c78] : memref<162xf32, #tpu.memory_space<smem>>
    %625 = vector.broadcast %624 : f32 to vector<2x256xf32>
    %626 = arith.mulf %615, %625 : vector<2x256xf32>
    %627 = arith.addf %602, %626 : vector<2x256xf32>
    %c105 = arith.constant 105 : index
    %628 = memref.load %arg1[%c105] : memref<162xf32, #tpu.memory_space<smem>>
    %629 = vector.broadcast %628 : f32 to vector<2x256xf32>
    %630 = arith.mulf %615, %629 : vector<2x256xf32>
    %631 = arith.addf %606, %630 : vector<2x256xf32>
    %c132 = arith.constant 132 : index
    %632 = memref.load %arg1[%c132] : memref<162xf32, #tpu.memory_space<smem>>
    %633 = vector.broadcast %632 : f32 to vector<2x256xf32>
    %634 = arith.mulf %615, %633 : vector<2x256xf32>
    %635 = arith.addf %610, %634 : vector<2x256xf32>
    %c159 = arith.constant 159 : index
    %636 = memref.load %arg1[%c159] : memref<162xf32, #tpu.memory_space<smem>>
    %637 = vector.broadcast %636 : f32 to vector<2x256xf32>
    %638 = arith.mulf %615, %637 : vector<2x256xf32>
    %639 = arith.addf %614, %638 : vector<2x256xf32>
    %c223_i32_29 = arith.constant 223 : i32
    %640 = tpu.dynamic_rotate %465 by %c223_i32_29 dim 1 : vector<2x256xf32>, i32 -> vector<2x256xf32>
    %c25 = arith.constant 25 : index
    %641 = memref.load %arg1[%c25] : memref<162xf32, #tpu.memory_space<smem>>
    %642 = vector.broadcast %641 : f32 to vector<2x256xf32>
    %643 = arith.mulf %640, %642 : vector<2x256xf32>
    %644 = arith.addf %619, %643 : vector<2x256xf32>
    %c52 = arith.constant 52 : index
    %645 = memref.load %arg1[%c52] : memref<162xf32, #tpu.memory_space<smem>>
    %646 = vector.broadcast %645 : f32 to vector<2x256xf32>
    %647 = arith.mulf %640, %646 : vector<2x256xf32>
    %648 = arith.addf %623, %647 : vector<2x256xf32>
    %c79 = arith.constant 79 : index
    %649 = memref.load %arg1[%c79] : memref<162xf32, #tpu.memory_space<smem>>
    %650 = vector.broadcast %649 : f32 to vector<2x256xf32>
    %651 = arith.mulf %640, %650 : vector<2x256xf32>
    %652 = arith.addf %627, %651 : vector<2x256xf32>
    %c106 = arith.constant 106 : index
    %653 = memref.load %arg1[%c106] : memref<162xf32, #tpu.memory_space<smem>>
    %654 = vector.broadcast %653 : f32 to vector<2x256xf32>
    %655 = arith.mulf %640, %654 : vector<2x256xf32>
    %656 = arith.addf %631, %655 : vector<2x256xf32>
    %c133 = arith.constant 133 : index
    %657 = memref.load %arg1[%c133] : memref<162xf32, #tpu.memory_space<smem>>
    %658 = vector.broadcast %657 : f32 to vector<2x256xf32>
    %659 = arith.mulf %640, %658 : vector<2x256xf32>
    %660 = arith.addf %635, %659 : vector<2x256xf32>
    %c160 = arith.constant 160 : index
    %661 = memref.load %arg1[%c160] : memref<162xf32, #tpu.memory_space<smem>>
    %662 = vector.broadcast %661 : f32 to vector<2x256xf32>
    %663 = arith.mulf %640, %662 : vector<2x256xf32>
    %664 = arith.addf %639, %663 : vector<2x256xf32>
    %c222_i32_30 = arith.constant 222 : i32
    %665 = tpu.dynamic_rotate %465 by %c222_i32_30 dim 1 : vector<2x256xf32>, i32 -> vector<2x256xf32>
    %c26 = arith.constant 26 : index
    %666 = memref.load %arg1[%c26] : memref<162xf32, #tpu.memory_space<smem>>
    %667 = vector.broadcast %666 : f32 to vector<2x256xf32>
    %668 = arith.mulf %665, %667 : vector<2x256xf32>
    %669 = arith.addf %644, %668 : vector<2x256xf32>
    %c53 = arith.constant 53 : index
    %670 = memref.load %arg1[%c53] : memref<162xf32, #tpu.memory_space<smem>>
    %671 = vector.broadcast %670 : f32 to vector<2x256xf32>
    %672 = arith.mulf %665, %671 : vector<2x256xf32>
    %673 = arith.addf %648, %672 : vector<2x256xf32>
    %c80 = arith.constant 80 : index
    %674 = memref.load %arg1[%c80] : memref<162xf32, #tpu.memory_space<smem>>
    %675 = vector.broadcast %674 : f32 to vector<2x256xf32>
    %676 = arith.mulf %665, %675 : vector<2x256xf32>
    %677 = arith.addf %652, %676 : vector<2x256xf32>
    %c107 = arith.constant 107 : index
    %678 = memref.load %arg1[%c107] : memref<162xf32, #tpu.memory_space<smem>>
    %679 = vector.broadcast %678 : f32 to vector<2x256xf32>
    %680 = arith.mulf %665, %679 : vector<2x256xf32>
    %681 = arith.addf %656, %680 : vector<2x256xf32>
    %c134 = arith.constant 134 : index
    %682 = memref.load %arg1[%c134] : memref<162xf32, #tpu.memory_space<smem>>
    %683 = vector.broadcast %682 : f32 to vector<2x256xf32>
    %684 = arith.mulf %665, %683 : vector<2x256xf32>
    %685 = arith.addf %660, %684 : vector<2x256xf32>
    %c161 = arith.constant 161 : index
    %686 = memref.load %arg1[%c161] : memref<162xf32, #tpu.memory_space<smem>>
    %687 = vector.broadcast %686 : f32 to vector<2x256xf32>
    %688 = arith.mulf %665, %687 : vector<2x256xf32>
    %689 = arith.addf %664, %688 : vector<2x256xf32>
    %690 = vector.shape_cast %669 : vector<2x256xf32> to vector<2x1x256xf32>
    %691 = vector.shape_cast %673 : vector<2x256xf32> to vector<2x1x256xf32>
    %692 = vector.shape_cast %677 : vector<2x256xf32> to vector<2x1x256xf32>
    %693 = vector.shape_cast %681 : vector<2x256xf32> to vector<2x1x256xf32>
    %694 = vector.shape_cast %685 : vector<2x256xf32> to vector<2x1x256xf32>
    %695 = vector.shape_cast %689 : vector<2x256xf32> to vector<2x1x256xf32>
    %696 = tpu.concatenate %690, %691, %692, %693, %694, %695 in 1 : vector<2x1x256xf32>, vector<2x1x256xf32>, vector<2x1x256xf32>, vector<2x1x256xf32>, vector<2x1x256xf32>, vector<2x1x256xf32> -> vector<2x6x256xf32>
    %c0_31 = arith.constant 0 : index
    %c0_32 = arith.constant 0 : index
    %c0_33 = arith.constant 0 : index
    %697 = vector.load %arg3[%c0_31, %c0_32, %c0_33] : memref<2x6x256xf32, #tpu.memory_space<vmem>>, vector<2x6x256xf32>
    tpu.vector_store %arg3[%c0_31, %c0_32, %c0_33], %696 {strides = array<i32>} : memref<2x6x256xf32, #tpu.memory_space<vmem>>, vector<2x6x256xf32>,
    return
  }
}

</mosaic_0001>

<llo_original>
// kernel: tpu_custom_call.1
$region0: #{tpu_custom_call.1}
  #allocation0 [shape = 'u32[]', space=smem, size = 0x4, offset = 0x4, fixed_abs, tag = 'smem constant byte address 0x4 - core index']
  #allocation1 [shape = 'u32[144,128]{1,0:T(1,128)}', space=vmem, size = 0x12000, scoped, tag = 'internal scratch']
  %s0 = inlined_call_operand.vmem [shape: f32[2,3,256], index: 0, kind: input, shape index: {}]
  %s1 = inlined_call_operand.vmem [shape: f32[162], index: 1, kind: input, shape index: {}]
  %s2 = inlined_call_operand.vmem [shape: f32[6], index: 2, kind: input, shape index: {}]
  %s3 = inlined_call_operand.vmem [shape: f32[2,6,256], index: 3, kind: output, shape index: {}]
  %s4 = sld [smem:[#allocation0]]
  $region30: #{tpu_custom_call.1} parent=0
    _
  %s6 = ssub.s32 1, %s4
  %s7 = scalar_select 0, %s6, %s4
  $region1: #{tpu_custom_call.1} parent=0
    #allocation2 [shape = 'u8[1024]{0}', space=smem, size = 0x400, scoped, tag = 'input window, operand 1, single buffered']
    #allocation3 [shape = 's32[1]{0}', space=sflag, size = 0x4, scoped, tag = 'scoped memory for tpu_custom_call.1']
    #allocation4 [shape = 'u8[512]{0}', space=smem, size = 0x200, scoped, tag = 'input window, operand 2, single buffered']
    #allocation5 [shape = 's32[1]{0}', space=sflag, size = 0x4, scoped, tag = 'scoped memory for tpu_custom_call.1']
    %8 = vsyncpa [#allocation3], 0
    %9 = vsyncpa [#allocation5], 0
    // Predicated region
    $region2: #{tpu_custom_call.1} parent=1 // pred_check
      _
    $region3: #{tpu_custom_call.1} parent=1 // pred_check_branch
      %11 = sbr.rel (0) target = $region5
    $region4: #{tpu_custom_call.1} parent=1 // pred_region
      _
    $region5: #{tpu_custom_call.1} parent=1 // pred_fallthru
      _
    // Predicated region
    $region6: #{tpu_custom_call.1} parent=1 // pred_check
      _
    $region7: #{tpu_custom_call.1} parent=1 // pred_check_branch
      %13 = sbr.rel (0) target = $region9
    $region8: #{tpu_custom_call.1} parent=1 // pred_region
      %s15 = ssub.s32 32, 32
      %16 = vsyncadd [#allocation3], %s15
      %s18 = sshll.u32 %s1, 4
      %s19 = int_to_ptr.vmem [resolvable:$true] %s18
      %21 = dma.vmem_to_smem %s19, 32, [#allocation2], [#allocation3]
    $region9: #{tpu_custom_call.1} parent=1 // pred_fallthru
      _
    // Predicated region
    $region10: #{tpu_custom_call.1} parent=1 // pred_check
      _
    $region11: #{tpu_custom_call.1} parent=1 // pred_check_branch
      %23 = sbr.rel (0) target = $region13
    $region12: #{tpu_custom_call.1} parent=1 // pred_region
      %s25 = ssub.s32 16, 16
      %26 = vsyncadd [#allocation5], %s25
      %s28 = sshll.u32 %s2, 4
      %s29 = int_to_ptr.vmem [resolvable:$true] %s28
      %31 = dma.vmem_to_smem %s29, 16, [#allocation4], [#allocation5]
    $region13: #{tpu_custom_call.1} parent=1 // pred_fallthru
      _
    // Predicated region
    $region14: #{tpu_custom_call.1} parent=1 // pred_check
      _
    $region15: #{tpu_custom_call.1} parent=1 // pred_check_branch
      %33 = sbr.rel (0) target = $region17
    $region16: #{tpu_custom_call.1} parent=1 // pred_region
      %34 = dma.done [#allocation3], 32
    $region17: #{tpu_custom_call.1} parent=1 // pred_fallthru
      _
    // Predicated region
    $region18: #{tpu_custom_call.1} parent=1 // pred_check
      _
    $region19: #{tpu_custom_call.1} parent=1 // pred_check_branch
      %36 = sbr.rel (0) target = $region21
    $region20: #{tpu_custom_call.1} parent=1 // pred_region
      %37 = dma.done [#allocation5], 16
    $region21: #{tpu_custom_call.1} parent=1 // pred_fallthru
      _
    %38 = sfence
    %s39 = sld [smem:[#allocation4]]
    %v40 = vstv %s39
    %s41 = sld [smem:[#allocation4 + $0x1]]
    %v42 = vstv %s41
    %s43 = sld [smem:[#allocation4 + $0x2]]
    %v44 = vstv %s43
    %s45 = sld [smem:[#allocation4 + $0x3]]
    %v46 = vstv %s45
    %s47 = sld [smem:[#allocation4 + $0x4]]
    %v48 = vstv %s47
    %s49 = sld [smem:[#allocation4 + $0x5]]
    %v50 = vstv %s49
    %v51 = vld [vmem:[%s0] ss:$4 sm:$0x3]
    %s52 = scalar_lea.vmem %s0, 8
    %v53 = vld [vmem:[%s52] ss:$4 sm:$0x3]
    %s54 = sld [smem:[#allocation2]]
    %v55 = vstv %s54
    %v56 = vmul.f32 %v51, %v55
    %v57 = vmul.f32 %v53, %v55
    %v58 = vadd.f32 %v40, %v56
    %v59 = vadd.f32 %v40, %v57
    %s60 = sld [smem:[#allocation2 + $0x1b]]
    %v61 = vstv %s60
    %v62 = vmul.f32 %v51, %v61
    %v63 = vmul.f32 %v53, %v61
    %v64 = vadd.f32 %v42, %v62
    %v65 = vadd.f32 %v42, %v63
    %s66 = sld [smem:[#allocation2 + $0x36]]
    %v67 = vstv %s66
    %v68 = vmul.f32 %v51, %v67
    %v69 = vmul.f32 %v53, %v67
    %v70 = vadd.f32 %v44, %v68
    %v71 = vadd.f32 %v44, %v69
    %s72 = sld [smem:[#allocation2 + $0x51]]
    %v73 = vstv %s72
    %v74 = vmul.f32 %v51, %v73
    %v75 = vmul.f32 %v53, %v73
    %v76 = vadd.f32 %v46, %v74
    %v77 = vadd.f32 %v46, %v75
    %s78 = sld [smem:[#allocation2 + $0x6c]]
    %v79 = vstv %s78
    %v80 = vmul.f32 %v51, %v79
    %v81 = vmul.f32 %v53, %v79
    %v82 = vadd.f32 %v48, %v80
    %v83 = vadd.f32 %v48, %v81
    %s84 = sld [smem:[#allocation2 + $0x87]]
    %v85 = vstv %s84
    %v86 = vmul.f32 %v51, %v85
    %v87 = vmul.f32 %v53, %v85
    %v88 = vadd.f32 %v50, %v86
    %v89 = vadd.f32 %v50, %v87
    %v92 = vcombine.low %v51, %v53
    %v94 = vunpack.c.l.s4 1966171168
    %v95 = vunpack.c.0.s8 %v94
    %v96 = vlaneseq
    %v97 = vshrl.u32 %v96, 7
    %v98 = vsub.s32 %v95, %v97
    %v99 = vrot.slane %v92, %v98
    %v100 = vcombine.high %v99, %v99
    %v102 = vunpack.c.l.s4 1966171168
    %v103 = vunpack.c.0.s8 %v102
    %v104 = vlaneseq
    %v105 = vshrl.u32 %v104, 7
    %v106 = vsub.s32 %v103, %v105
    %v107 = vrot.slane %v99, %v106
    %v109 = vunpack.c.l.s4 1966171168
    %v110 = vunpack.c.0.s8 %v109
    %v111 = vlaneseq
    %v112 = vshrl.u32 %v111, 7
    %v113 = vsub.s32 %v110, %v112
    %v114 = vrot.slane %v100, %v113
    %117 = vrot.lane.b32.xlu0 %v107, 127
    %v118 = vpop.permute.xlu0 %117
    %119 = vrot.lane.b32.xlu0 %v114, 127
    %v120 = vpop.permute.xlu0 %119
    %v121 = vlaneseq
    %v122 = vand.u32 %v121, 127
    %vm123 = vcmp.lt.s32.totalorder %v122, 127
    %v124 = vsel %vm123, %v118, %v120
    %v125 = vsel %vm123, %v120, %v118
    %s126 = sld [smem:[#allocation2 + $0x1]]
    %v127 = vstv %s126
    %v128 = vmul.f32 %v124, %v127
    %v129 = vmul.f32 %v125, %v127
    %v132 = vcombine.low %v128, %v129
    %v134 = vunpack.c.l.s4 1966171168
    %v135 = vunpack.c.0.s8 %v134
    %v136 = vlaneseq
    %v137 = vshrl.u32 %v136, 7
    %v138 = vsub.s32 %v135, %v137
    %v139 = vrot.slane %v132, %v138
    %v140 = vcombine.high %v139, %v139
    %v142 = vunpack.c.l.s4 1966171168
    %v143 = vunpack.c.0.s8 %v142
    %v144 = vlaneseq
    %v145 = vshrl.u32 %v144, 7
    %v146 = vsub.s32 %v143, %v145
    %v147 = vrot.slane %v139, %v146
    %v149 = vunpack.c.l.s4 1966171168
    %v150 = vunpack.c.0.s8 %v149
    %v151 = vlaneseq
    %v152 = vshrl.u32 %v151, 7
    %v153 = vsub.s32 %v150, %v152
    %v154 = vrot.slane %v140, %v153
    %v157 = vadd.f32 %v58, %v147
    %v158 = vadd.f32 %v59, %v154
    %s159 = sld [smem:[#allocation2 + $0x1c]]
    %v160 = vstv %s159
    %v161 = vmul.f32 %v124, %v160
    %v162 = vmul.f32 %v125, %v160
    %v165 = vcombine.low %v161, %v162
    %v167 = vunpack.c.l.s4 1966171168
    %v168 = vunpack.c.0.s8 %v167
    %v169 = vlaneseq
    %v170 = vshrl.u32 %v169, 7
    %v171 = vsub.s32 %v168, %v170
    %v172 = vrot.slane %v165, %v171
    %v173 = vcombine.high %v172, %v172
    %v175 = vunpack.c.l.s4 1966171168
    %v176 = vunpack.c.0.s8 %v175
    %v177 = vlaneseq
    %v178 = vshrl.u32 %v177, 7
    %v179 = vsub.s32 %v176, %v178
    %v180 = vrot.slane %v172, %v179
    %v182 = vunpack.c.l.s4 1966171168
    %v183 = vunpack.c.0.s8 %v182
    %v184 = vlaneseq
    %v185 = vshrl.u32 %v184, 7
    %v186 = vsub.s32 %v183, %v185
    %v187 = vrot.slane %v173, %v186
    %v190 = vadd.f32 %v64, %v180
    %v191 = vadd.f32 %v65, %v187
    %s192 = sld [smem:[#allocation2 + $0x37]]
    %v193 = vstv %s192
    %v194 = vmul.f32 %v124, %v193
    %v195 = vmul.f32 %v125, %v193
    %v198 = vcombine.low %v194, %v195
    %v200 = vunpack.c.l.s4 1966171168
    %v201 = vunpack.c.0.s8 %v200
    %v202 = vlaneseq
    %v203 = vshrl.u32 %v202, 7
    %v204 = vsub.s32 %v201, %v203
    %v205 = vrot.slane %v198, %v204
    %v206 = vcombine.high %v205, %v205
    %v208 = vunpack.c.l.s4 1966171168
    %v209 = vunpack.c.0.s8 %v208
    %v210 = vlaneseq
    %v211 = vshrl.u32 %v210, 7
    %v212 = vsub.s32 %v209, %v211
    %v213 = vrot.slane %v205, %v212
    %v215 = vunpack.c.l.s4 1966171168
    %v216 = vunpack.c.0.s8 %v215
    %v217 = vlaneseq
    %v218 = vshrl.u32 %v217, 7
    %v219 = vsub.s32 %v216, %v218
    %v220 = vrot.slane %v206, %v219
    %v223 = vadd.f32 %v70, %v213
    %v224 = vadd.f32 %v71, %v220
    %s225 = sld [smem:[#allocation2 + $0x52]]
    %v226 = vstv %s225
    %v227 = vmul.f32 %v124, %v226
    %v228 = vmul.f32 %v125, %v226
    %v231 = vcombine.low %v227, %v228
    %v233 = vunpack.c.l.s4 1966171168
    %v234 = vunpack.c.0.s8 %v233
    %v235 = vlaneseq
    %v236 = vshrl.u32 %v235, 7
    %v237 = vsub.s32 %v234, %v236
    %v238 = vrot.slane %v231, %v237
    %v239 = vcombine.high %v238, %v238
    %v241 = vunpack.c.l.s4 1966171168
    %v242 = vunpack.c.0.s8 %v241
    %v243 = vlaneseq
    %v244 = vshrl.u32 %v243, 7
    %v245 = vsub.s32 %v242, %v244
    %v246 = vrot.slane %v238, %v245
    %v248 = vunpack.c.l.s4 1966171168
    %v249 = vunpack.c.0.s8 %v248
    %v250 = vlaneseq
    %v251 = vshrl.u32 %v250, 7
    %v252 = vsub.s32 %v249, %v251
    %v253 = vrot.slane %v239, %v252
    %v256 = vadd.f32 %v76, %v246
    %v257 = vadd.f32 %v77, %v253
    %s258 = sld [smem:[#allocation2 + $0x6d]]
    %v259 = vstv %s258
    %v260 = vmul.f32 %v124, %v259
    %v261 = vmul.f32 %v125, %v259
    %v264 = vcombine.low %v260, %v261
    %v266 = vunpack.c.l.s4 1966171168
    %v267 = vunpack.c.0.s8 %v266
    %v268 = vlaneseq
    %v269 = vshrl.u32 %v268, 7
    %v270 = vsub.s32 %v267, %v269
    %v271 = vrot.slane %v264, %v270
    %v272 = vcombine.high %v271, %v271
    %v274 = vunpack.c.l.s4 1966171168
    %v275 = vunpack.c.0.s8 %v274
    %v276 = vlaneseq
    %v277 = vshrl.u32 %v276, 7
    %v278 = vsub.s32 %v275, %v277
    %v279 = vrot.slane %v271, %v278
    %v281 = vunpack.c.l.s4 1966171168
    %v282 = vunpack.c.0.s8 %v281
    %v283 = vlaneseq
    %v284 = vshrl.u32 %v283, 7
    %v285 = vsub.s32 %v282, %v284
    %v286 = vrot.slane %v272, %v285
    %v289 = vadd.f32 %v82, %v279
    %v290 = vadd.f32 %v83, %v286
    %s291 = sld [smem:[#allocation2 + $0x88]]
    %v292 = vstv %s291
    %v293 = vmul.f32 %v124, %v292
    %v294 = vmul.f32 %v125, %v292
    %v297 = vcombine.low %v293, %v294
    %v299 = vunpack.c.l.s4 1966171168
    %v300 = vunpack.c.0.s8 %v299
    %v301 = vlaneseq
    %v302 = vshrl.u32 %v301, 7
    %v303 = vsub.s32 %v300, %v302
    %v304 = vrot.slane %v297, %v303
    %v305 = vcombine.high %v304, %v304
    %v307 = vunpack.c.l.s4 1966171168
    %v308 = vunpack.c.0.s8 %v307
    %v309 = vlaneseq
    %v310 = vshrl.u32 %v309, 7
    %v311 = vsub.s32 %v308, %v310
    %v312 = vrot.slane %v304, %v311
    %v314 = vunpack.c.l.s4 1966171168
    %v315 = vunpack.c.0.s8 %v314
    %v316 = vlaneseq
    %v317 = vshrl.u32 %v316, 7
    %v318 = vsub.s32 %v315, %v317
    %v319 = vrot.slane %v305, %v318
    %v322 = vadd.f32 %v88, %v312
    %v323 = vadd.f32 %v89, %v319
    %324 = vrot.lane.b32.xlu0 %v107, 126
    %v325 = vpop.permute.xlu0 %324
    %326 = vrot.lane.b32.xlu0 %v114, 126
    %v327 = vpop.permute.xlu0 %326
    %vm328 = vcmp.lt.s32.totalorder %v122, 126
    %v329 = vsel %vm328, %v325, %v327
    %v330 = vsel %vm328, %v327, %v325
    %s331 = sld [smem:[#allocation2 + $0x2]]
    %v332 = vstv %s331
    %v333 = vmul.f32 %v329, %v332
    %v334 = vmul.f32 %v330, %v332
    %v337 = vcombine.low %v333, %v334
    %v339 = vunpack.c.l.s4 1966171168
    %v340 = vunpack.c.0.s8 %v339
    %v341 = vlaneseq
    %v342 = vshrl.u32 %v341, 7
    %v343 = vsub.s32 %v340, %v342
    %v344 = vrot.slane %v337, %v343
    %v345 = vcombine.high %v344, %v344
    %v347 = vunpack.c.l.s4 1966171168
    %v348 = vunpack.c.0.s8 %v347
    %v349 = vlaneseq
    %v350 = vshrl.u32 %v349, 7
    %v351 = vsub.s32 %v348, %v350
    %v352 = vrot.slane %v344, %v351
    %v354 = vunpack.c.l.s4 1966171168
    %v355 = vunpack.c.0.s8 %v354
    %v356 = vlaneseq
    %v357 = vshrl.u32 %v356, 7
    %v358 = vsub.s32 %v355, %v357
    %v359 = vrot.slane %v345, %v358
    %v362 = vadd.f32 %v157, %v352
    %v363 = vadd.f32 %v158, %v359
    %s364 = sld [smem:[#allocation2 + $0x1d]]
    %v365 = vstv %s364
    %v366 = vmul.f32 %v329, %v365
    %v367 = vmul.f32 %v330, %v365
    %v370 = vcombine.low %v366, %v367
    %v372 = vunpack.c.l.s4 1966171168
    %v373 = vunpack.c.0.s8 %v372
    %v374 = vlaneseq
    %v375 = vshrl.u32 %v374, 7
    %v376 = vsub.s32 %v373, %v375
    %v377 = vrot.slane %v370, %v376
    %v378 = vcombine.high %v377, %v377
    %v380 = vunpack.c.l.s4 1966171168
    %v381 = vunpack.c.0.s8 %v380
    %v382 = vlaneseq
    %v383 = vshrl.u32 %v382, 7
    %v384 = vsub.s32 %v381, %v383
    %v385 = vrot.slane %v377, %v384
    %v387 = vunpack.c.l.s4 1966171168
    %v388 = vunpack.c.0.s8 %v387
    %v389 = vlaneseq
    %v390 = vshrl.u32 %v389, 7
    %v391 = vsub.s32 %v388, %v390
    %v392 = vrot.slane %v378, %v391
    %v395 = vadd.f32 %v190, %v385
    %v396 = vadd.f32 %v191, %v392
    %s397 = sld [smem:[#allocation2 + $0x38]]
    %v398 = vstv %s397
    %v399 = vmul.f32 %v329, %v398
    %v400 = vmul.f32 %v330, %v398
    %v403 = vcombine.low %v399, %v400
    %v405 = vunpack.c.l.s4 1966171168
    %v406 = vunpack.c.0.s8 %v405
    %v407 = vlaneseq
    %v408 = vshrl.u32 %v407, 7
    %v409 = vsub.s32 %v406, %v408
    %v410 = vrot.slane %v403, %v409
    %v411 = vcombine.high %v410, %v410
    %v413 = vunpack.c.l.s4 1966171168
    %v414 = vunpack.c.0.s8 %v413
    %v415 = vlaneseq
    %v416 = vshrl.u32 %v415, 7
    %v417 = vsub.s32 %v414, %v416
    %v418 = vrot.slane %v410, %v417
    %v420 = vunpack.c.l.s4 1966171168
    %v421 = vunpack.c.0.s8 %v420
    %v422 = vlaneseq
    %v423 = vshrl.u32 %v422, 7
    %v424 = vsub.s32 %v421, %v423
    %v425 = vrot.slane %v411, %v424
    %v428 = vadd.f32 %v223, %v418
    %v429 = vadd.f32 %v224, %v425
    %s430 = sld [smem:[#allocation2 + $0x53]]
    %v431 = vstv %s430
    %v432 = vmul.f32 %v329, %v431
    %v433 = vmul.f32 %v330, %v431
    %v436 = vcombine.low %v432, %v433
    %v438 = vunpack.c.l.s4 1966171168
    %v439 = vunpack.c.0.s8 %v438
    %v440 = vlaneseq
    %v441 = vshrl.u32 %v440, 7
    %v442 = vsub.s32 %v439, %v441
    %v443 = vrot.slane %v436, %v442
    %v444 = vcombine.high %v443, %v443
    %v446 = vunpack.c.l.s4 1966171168
    %v447 = vunpack.c.0.s8 %v446
    %v448 = vlaneseq
    %v449 = vshrl.u32 %v448, 7
    %v450 = vsub.s32 %v447, %v449
    %v451 = vrot.slane %v443, %v450
    %v453 = vunpack.c.l.s4 1966171168
    %v454 = vunpack.c.0.s8 %v453
    %v455 = vlaneseq
    %v456 = vshrl.u32 %v455, 7
    %v457 = vsub.s32 %v454, %v456
    %v458 = vrot.slane %v444, %v457
    %v461 = vadd.f32 %v256, %v451
    %v462 = vadd.f32 %v257, %v458
    %s463 = sld [smem:[#allocation2 + $0x6e]]
    %v464 = vstv %s463
    %v465 = vmul.f32 %v329, %v464
    %v466 = vmul.f32 %v330, %v464
    %v469 = vcombine.low %v465, %v466
    %v471 = vunpack.c.l.s4 1966171168
    %v472 = vunpack.c.0.s8 %v471
    %v473 = vlaneseq
    %v474 = vshrl.u32 %v473, 7
    %v475 = vsub.s32 %v472, %v474
    %v476 = vrot.slane %v469, %v475
    %v477 = vcombine.high %v476, %v476
    %v479 = vunpack.c.l.s4 1966171168
    %v480 = vunpack.c.0.s8 %v479
    %v481 = vlaneseq
    %v482 = vshrl.u32 %v481, 7
    %v483 = vsub.s32 %v480, %v482
    %v484 = vrot.slane %v476, %v483
    %v486 = vunpack.c.l.s4 1966171168
    %v487 = vunpack.c.0.s8 %v486
    %v488 = vlaneseq
    %v489 = vshrl.u32 %v488, 7
    %v490 = vsub.s32 %v487, %v489
    %v491 = vrot.slane %v477, %v490
    %v494 = vadd.f32 %v289, %v484
    %v495 = vadd.f32 %v290, %v491
    %s496 = sld [smem:[#allocation2 + $0x89]]
    %v497 = vstv %s496
    %v498 = vmul.f32 %v329, %v497
    %v499 = vmul.f32 %v330, %v497
    %v502 = vcombine.low %v498, %v499
    %v504 = vunpack.c.l.s4 1966171168
    %v505 = vunpack.c.0.s8 %v504
    %v506 = vlaneseq
    %v507 = vshrl.u32 %v506, 7
    %v508 = vsub.s32 %v505, %v507
    %v509 = vrot.slane %v502, %v508
    %v510 = vcombine.high %v509, %v509
    %v512 = vunpack.c.l.s4 1966171168
    %v513 = vunpack.c.0.s8 %v512
    %v514 = vlaneseq
    %v515 = vshrl.u32 %v514, 7
    %v516 = vsub.s32 %v513, %v515
    %v517 = vrot.slane %v509, %v516
    %v519 = vunpack.c.l.s4 1966171168
    %v520 = vunpack.c.0.s8 %v519
    %v521 = vlaneseq
    %v522 = vshrl.u32 %v521, 7
    %v523 = vsub.s32 %v520, %v522
    %v524 = vrot.slane %v510, %v523
    %v527 = vadd.f32 %v322, %v517
    %v528 = vadd.f32 %v323, %v524
    %529 = vrot.lane.b32.xlu0 %v107, 112
    %v530 = vpop.permute.xlu0 %529
    %531 = vrot.lane.b32.xlu0 %v114, 112
    %v532 = vpop.permute.xlu0 %531
    %vm533 = vcmp.lt.s32.totalorder %v122, 112
    %v534 = vsel %vm533, %v530, %v532
    %v535 = vsel %vm533, %v532, %v530
    %s536 = sld [smem:[#allocation2 + $0x3]]
    %v537 = vstv %s536
    %v538 = vmul.f32 %v534, %v537
    %v539 = vmul.f32 %v535, %v537
    %v542 = vcombine.low %v538, %v539
    %v544 = vunpack.c.l.s4 1966171168
    %v545 = vunpack.c.0.s8 %v544
    %v546 = vlaneseq
    %v547 = vshrl.u32 %v546, 7
    %v548 = vsub.s32 %v545, %v547
    %v549 = vrot.slane %v542, %v548
    %v550 = vcombine.high %v549, %v549
    %v552 = vunpack.c.l.s4 1966171168
    %v553 = vunpack.c.0.s8 %v552
    %v554 = vlaneseq
    %v555 = vshrl.u32 %v554, 7
    %v556 = vsub.s32 %v553, %v555
    %v557 = vrot.slane %v549, %v556
    %v559 = vunpack.c.l.s4 1966171168
    %v560 = vunpack.c.0.s8 %v559
    %v561 = vlaneseq
    %v562 = vshrl.u32 %v561, 7
    %v563 = vsub.s32 %v560, %v562
    %v564 = vrot.slane %v550, %v563
    %v567 = vadd.f32 %v362, %v557
    %v568 = vadd.f32 %v363, %v564
    %s569 = sld [smem:[#allocation2 + $0x1e]]
    %v570 = vstv %s569
    %v571 = vmul.f32 %v534, %v570
    %v572 = vmul.f32 %v535, %v570
    %v575 = vcombine.low %v571, %v572
    %v577 = vunpack.c.l.s4 1966171168
    %v578 = vunpack.c.0.s8 %v577
    %v579 = vlaneseq
    %v580 = vshrl.u32 %v579, 7
    %v581 = vsub.s32 %v578, %v580
    %v582 = vrot.slane %v575, %v581
    %v583 = vcombine.high %v582, %v582
    %v585 = vunpack.c.l.s4 1966171168
    %v586 = vunpack.c.0.s8 %v585
    %v587 = vlaneseq
    %v588 = vshrl.u32 %v587, 7
    %v589 = vsub.s32 %v586, %v588
    %v590 = vrot.slane %v582, %v589
    %v592 = vunpack.c.l.s4 1966171168
    %v593 = vunpack.c.0.s8 %v592
    %v594 = vlaneseq
    %v595 = vshrl.u32 %v594, 7
    %v596 = vsub.s32 %v593, %v595
    %v597 = vrot.slane %v583, %v596
    %v600 = vadd.f32 %v395, %v590
    %v601 = vadd.f32 %v396, %v597
    %s602 = sld [smem:[#allocation2 + $0x39]]
    %v603 = vstv %s602
    %v604 = vmul.f32 %v534, %v603
    %v605 = vmul.f32 %v535, %v603
    %v608 = vcombine.low %v604, %v605
    %v610 = vunpack.c.l.s4 1966171168
    %v611 = vunpack.c.0.s8 %v610
    %v612 = vlaneseq
    %v613 = vshrl.u32 %v612, 7
    %v614 = vsub.s32 %v611, %v613
    %v615 = vrot.slane %v608, %v614
    %v616 = vcombine.high %v615, %v615
    %v618 = vunpack.c.l.s4 1966171168
    %v619 = vunpack.c.0.s8 %v618
    %v620 = vlaneseq
    %v621 = vshrl.u32 %v620, 7
    %v622 = vsub.s32 %v619, %v621
    %v623 = vrot.slane %v615, %v622
    %v625 = vunpack.c.l.s4 1966171168
    %v626 = vunpack.c.0.s8 %v625
    %v627 = vlaneseq
    %v628 = vshrl.u32 %v627, 7
    %v629 = vsub.s32 %v626, %v628
    %v630 = vrot.slane %v616, %v629
    %v633 = vadd.f32 %v428, %v623
    %v634 = vadd.f32 %v429, %v630
    %s635 = sld [smem:[#allocation2 + $0x54]]
    %v636 = vstv %s635
    %v637 = vmul.f32 %v534, %v636
    %v638 = vmul.f32 %v535, %v636
    %v641 = vcombine.low %v637, %v638
    %v643 = vunpack.c.l.s4 1966171168
    %v644 = vunpack.c.0.s8 %v643
    %v645 = vlaneseq
    %v646 = vshrl.u32 %v645, 7
    %v647 = vsub.s32 %v644, %v646
    %v648 = vrot.slane %v641, %v647
    %v649 = vcombine.high %v648, %v648
    %v651 = vunpack.c.l.s4 1966171168
    %v652 = vunpack.c.0.s8 %v651
    %v653 = vlaneseq
    %v654 = vshrl.u32 %v653, 7
    %v655 = vsub.s32 %v652, %v654
    %v656 = vrot.slane %v648, %v655
    %v658 = vunpack.c.l.s4 1966171168
    %v659 = vunpack.c.0.s8 %v658
    %v660 = vlaneseq
    %v661 = vshrl.u32 %v660, 7
    %v662 = vsub.s32 %v659, %v661
    %v663 = vrot.slane %v649, %v662
    %v666 = vadd.f32 %v461, %v656
    %v667 = vadd.f32 %v462, %v663
    %s668 = sld [smem:[#allocation2 + $0x6f]]
    %v669 = vstv %s668
    %v670 = vmul.f32 %v534, %v669
    %v671 = vmul.f32 %v535, %v669
    %v674 = vcombine.low %v670, %v671
    %v676 = vunpack.c.l.s4 1966171168
    %v677 = vunpack.c.0.s8 %v676
    %v678 = vlaneseq
    %v679 = vshrl.u32 %v678, 7
    %v680 = vsub.s32 %v677, %v679
    %v681 = vrot.slane %v674, %v680
    %v682 = vcombine.high %v681, %v681
    %v684 = vunpack.c.l.s4 1966171168
    %v685 = vunpack.c.0.s8 %v684
    %v686 = vlaneseq
    %v687 = vshrl.u32 %v686, 7
    %v688 = vsub.s32 %v685, %v687
    %v689 = vrot.slane %v681, %v688
    %v691 = vunpack.c.l.s4 1966171168
    %v692 = vunpack.c.0.s8 %v691
    %v693 = vlaneseq
    %v694 = vshrl.u32 %v693, 7
    %v695 = vsub.s32 %v692, %v694
    %v696 = vrot.slane %v682, %v695
    %v699 = vadd.f32 %v494, %v689
    %v700 = vadd.f32 %v495, %v696
    %s701 = sld [smem:[#allocation2 + $0x8a]]
    %v702 = vstv %s701
    %v703 = vmul.f32 %v534, %v702
    %v704 = vmul.f32 %v535, %v702
    %v707 = vcombine.low %v703, %v704
    %v709 = vunpack.c.l.s4 1966171168
    %v710 = vunpack.c.0.s8 %v709
    %v711 = vlaneseq
    %v712 = vshrl.u32 %v711, 7
    %v713 = vsub.s32 %v710, %v712
    %v714 = vrot.slane %v707, %v713
    %v715 = vcombine.high %v714, %v714
    %v717 = vunpack.c.l.s4 1966171168
    %v718 = vunpack.c.0.s8 %v717
    %v719 = vlaneseq
    %v720 = vshrl.u32 %v719, 7
    %v721 = vsub.s32 %v718, %v720
    %v722 = vrot.slane %v714, %v721
    %v724 = vunpack.c.l.s4 1966171168
    %v725 = vunpack.c.0.s8 %v724
    %v726 = vlaneseq
    %v727 = vshrl.u32 %v726, 7
    %v728 = vsub.s32 %v725, %v727
    %v729 = vrot.slane %v715, %v728
    %v732 = vadd.f32 %v527, %v722
    %v733 = vadd.f32 %v528, %v729
    %734 = vrot.lane.b32.xlu0 %v107, 111
    %v735 = vpop.permute.xlu0 %734
    %736 = vrot.lane.b32.xlu0 %v114, 111
    %v737 = vpop.permute.xlu0 %736
    %vm738 = vcmp.lt.s32.totalorder %v122, 111
    %v739 = vsel %vm738, %v735, %v737
    %v740 = vsel %vm738, %v737, %v735
    %s741 = sld [smem:[#allocation2 + $0x4]]
    %v742 = vstv %s741
    %v743 = vmul.f32 %v739, %v742
    %v744 = vmul.f32 %v740, %v742
    %v747 = vcombine.low %v743, %v744
    %v749 = vunpack.c.l.s4 1966171168
    %v750 = vunpack.c.0.s8 %v749
    %v751 = vlaneseq
    %v752 = vshrl.u32 %v751, 7
    %v753 = vsub.s32 %v750, %v752
    %v754 = vrot.slane %v747, %v753
    %v755 = vcombine.high %v754, %v754
    %v757 = vunpack.c.l.s4 1966171168
    %v758 = vunpack.c.0.s8 %v757
    %v759 = vlaneseq
    %v760 = vshrl.u32 %v759, 7
    %v761 = vsub.s32 %v758, %v760
    %v762 = vrot.slane %v754, %v761
    %v764 = vunpack.c.l.s4 1966171168
    %v765 = vunpack.c.0.s8 %v764
    %v766 = vlaneseq
    %v767 = vshrl.u32 %v766, 7
    %v768 = vsub.s32 %v765, %v767
    %v769 = vrot.slane %v755, %v768
    %v772 = vadd.f32 %v567, %v762
    %v773 = vadd.f32 %v568, %v769
    %s774 = sld [smem:[#allocation2 + $0x1f]]
    %v775 = vstv %s774
    %v776 = vmul.f32 %v739, %v775
    %v777 = vmul.f32 %v740, %v775
    %v780 = vcombine.low %v776, %v777
    %v782 = vunpack.c.l.s4 1966171168
    %v783 = vunpack.c.0.s8 %v782
    %v784 = vlaneseq
    %v785 = vshrl.u32 %v784, 7
    %v786 = vsub.s32 %v783, %v785
    %v787 = vrot.slane %v780, %v786
    %v788 = vcombine.high %v787, %v787
    %v790 = vunpack.c.l.s4 1966171168
    %v791 = vunpack.c.0.s8 %v790
    %v792 = vlaneseq
    %v793 = vshrl.u32 %v792, 7
    %v794 = vsub.s32 %v791, %v793
    %v795 = vrot.slane %v787, %v794
    %v797 = vunpack.c.l.s4 1966171168
    %v798 = vunpack.c.0.s8 %v797
    %v799 = vlaneseq
    %v800 = vshrl.u32 %v799, 7
    %v801 = vsub.s32 %v798, %v800
    %v802 = vrot.slane %v788, %v801
    %v805 = vadd.f32 %v600, %v795
    %v806 = vadd.f32 %v601, %v802
    %s807 = sld [smem:[#allocation2 + $0x3a]]
    %v808 = vstv %s807
    %v809 = vmul.f32 %v739, %v808
    %v810 = vmul.f32 %v740, %v808
    %v813 = vcombine.low %v809, %v810
    %v815 = vunpack.c.l.s4 1966171168
    %v816 = vunpack.c.0.s8 %v815
    %v817 = vlaneseq
    %v818 = vshrl.u32 %v817, 7
    %v819 = vsub.s32 %v816, %v818
    %v820 = vrot.slane %v813, %v819
    %v821 = vcombine.high %v820, %v820
    %v823 = vunpack.c.l.s4 1966171168
    %v824 = vunpack.c.0.s8 %v823
    %v825 = vlaneseq
    %v826 = vshrl.u32 %v825, 7
    %v827 = vsub.s32 %v824, %v826
    %v828 = vrot.slane %v820, %v827
    %v830 = vunpack.c.l.s4 1966171168
    %v831 = vunpack.c.0.s8 %v830
    %v832 = vlaneseq
    %v833 = vshrl.u32 %v832, 7
    %v834 = vsub.s32 %v831, %v833
    %v835 = vrot.slane %v821, %v834
    %v838 = vadd.f32 %v633, %v828
    %v839 = vadd.f32 %v634, %v835
    %s840 = sld [smem:[#allocation2 + $0x55]]
    %v841 = vstv %s840
    %v842 = vmul.f32 %v739, %v841
    %v843 = vmul.f32 %v740, %v841
    %v846 = vcombine.low %v842, %v843
    %v848 = vunpack.c.l.s4 1966171168
    %v849 = vunpack.c.0.s8 %v848
    %v850 = vlaneseq
    %v851 = vshrl.u32 %v850, 7
    %v852 = vsub.s32 %v849, %v851
    %v853 = vrot.slane %v846, %v852
    %v854 = vcombine.high %v853, %v853
    %v856 = vunpack.c.l.s4 1966171168
    %v857 = vunpack.c.0.s8 %v856
    %v858 = vlaneseq
    %v859 = vshrl.u32 %v858, 7
    %v860 = vsub.s32 %v857, %v859
    %v861 = vrot.slane %v853, %v860
    %v863 = vunpack.c.l.s4 1966171168
    %v864 = vunpack.c.0.s8 %v863
    %v865 = vlaneseq
    %v866 = vshrl.u32 %v865, 7
    %v867 = vsub.s32 %v864, %v866
    %v868 = vrot.slane %v854, %v867
    %v871 = vadd.f32 %v666, %v861
    %v872 = vadd.f32 %v667, %v868
    %s873 = sld [smem:[#allocation2 + $0x70]]
    %v874 = vstv %s873
    %v875 = vmul.f32 %v739, %v874
    %v876 = vmul.f32 %v740, %v874
    %v879 = vcombine.low %v875, %v876
    %v881 = vunpack.c.l.s4 1966171168
    %v882 = vunpack.c.0.s8 %v881
    %v883 = vlaneseq
    %v884 = vshrl.u32 %v883, 7
    %v885 = vsub.s32 %v882, %v884
    %v886 = vrot.slane %v879, %v885
    %v887 = vcombine.high %v886, %v886
    %v889 = vunpack.c.l.s4 1966171168
    %v890 = vunpack.c.0.s8 %v889
    %v891 = vlaneseq
    %v892 = vshrl.u32 %v891, 7
    %v893 = vsub.s32 %v890, %v892
    %v894 = vrot.slane %v886, %v893
    %v896 = vunpack.c.l.s4 1966171168
    %v897 = vunpack.c.0.s8 %v896
    %v898 = vlaneseq
    %v899 = vshrl.u32 %v898, 7
    %v900 = vsub.s32 %v897, %v899
    %v901 = vrot.slane %v887, %v900
    %v904 = vadd.f32 %v699, %v894
    %v905 = vadd.f32 %v700, %v901
    %s906 = sld [smem:[#allocation2 + $0x8b]]
    %v907 = vstv %s906
    %v908 = vmul.f32 %v739, %v907
    %v909 = vmul.f32 %v740, %v907
    %v912 = vcombine.low %v908, %v909
    %v914 = vunpack.c.l.s4 1966171168
    %v915 = vunpack.c.0.s8 %v914
    %v916 = vlaneseq
    %v917 = vshrl.u32 %v916, 7
    %v918 = vsub.s32 %v915, %v917
    %v919 = vrot.slane %v912, %v918
    %v920 = vcombine.high %v919, %v919
    %v922 = vunpack.c.l.s4 1966171168
    %v923 = vunpack.c.0.s8 %v922
    %v924 = vlaneseq
    %v925 = vshrl.u32 %v924, 7
    %v926 = vsub.s32 %v923, %v925
    %v927 = vrot.slane %v919, %v926
    %v929 = vunpack.c.l.s4 1966171168
    %v930 = vunpack.c.0.s8 %v929
    %v931 = vlaneseq
    %v932 = vshrl.u32 %v931, 7
    %v933 = vsub.s32 %v930, %v932
    %v934 = vrot.slane %v920, %v933
    %v937 = vadd.f32 %v732, %v927
    %v938 = vadd.f32 %v733, %v934
    %939 = vrot.lane.b32.xlu0 %v107, 110
    %v940 = vpop.permute.xlu0 %939
    %941 = vrot.lane.b32.xlu0 %v114, 110
    %v942 = vpop.permute.xlu0 %941
    %vm943 = vcmp.lt.s32.totalorder %v122, 110
    %v944 = vsel %vm943, %v940, %v942
    %v945 = vsel %vm943, %v942, %v940
    %s946 = sld [smem:[#allocation2 + $0x5]]
    %v947 = vstv %s946
    %v948 = vmul.f32 %v944, %v947
    %v949 = vmul.f32 %v945, %v947
    %v952 = vcombine.low %v948, %v949
    %v954 = vunpack.c.l.s4 1966171168
    %v955 = vunpack.c.0.s8 %v954
    %v956 = vlaneseq
    %v957 = vshrl.u32 %v956, 7
    %v958 = vsub.s32 %v955, %v957
    %v959 = vrot.slane %v952, %v958
    %v960 = vcombine.high %v959, %v959
    %v962 = vunpack.c.l.s4 1966171168
    %v963 = vunpack.c.0.s8 %v962
    %v964 = vlaneseq
    %v965 = vshrl.u32 %v964, 7
    %v966 = vsub.s32 %v963, %v965
    %v967 = vrot.slane %v959, %v966
    %v969 = vunpack.c.l.s4 1966171168
    %v970 = vunpack.c.0.s8 %v969
    %v971 = vlaneseq
    %v972 = vshrl.u32 %v971, 7
    %v973 = vsub.s32 %v970, %v972
    %v974 = vrot.slane %v960, %v973
    %v977 = vadd.f32 %v772, %v967
    %v978 = vadd.f32 %v773, %v974
    %s979 = sld [smem:[#allocation2 + $0x20]]
    %v980 = vstv %s979
    %v981 = vmul.f32 %v944, %v980
    %v982 = vmul.f32 %v945, %v980
    %v985 = vcombine.low %v981, %v982
    %v987 = vunpack.c.l.s4 1966171168
    %v988 = vunpack.c.0.s8 %v987
    %v989 = vlaneseq
    %v990 = vshrl.u32 %v989, 7
    %v991 = vsub.s32 %v988, %v990
    %v992 = vrot.slane %v985, %v991
    %v993 = vcombine.high %v992, %v992
    %v995 = vunpack.c.l.s4 1966171168
    %v996 = vunpack.c.0.s8 %v995
    %v997 = vlaneseq
    %v998 = vshrl.u32 %v997, 7
    %v999 = vsub.s32 %v996, %v998
    %v1000 = vrot.slane %v992, %v999
    %v1002 = vunpack.c.l.s4 1966171168
    %v1003 = vunpack.c.0.s8 %v1002
    %v1004 = vlaneseq
    %v1005 = vshrl.u32 %v1004, 7
    %v1006 = vsub.s32 %v1003, %v1005
    %v1007 = vrot.slane %v993, %v1006
    %v1010 = vadd.f32 %v805, %v1000
    %v1011 = vadd.f32 %v806, %v1007
    %s1012 = sld [smem:[#allocation2 + $0x3b]]
    %v1013 = vstv %s1012
    %v1014 = vmul.f32 %v944, %v1013
    %v1015 = vmul.f32 %v945, %v1013
    %v1018 = vcombine.low %v1014, %v1015
    %v1020 = vunpack.c.l.s4 1966171168
    %v1021 = vunpack.c.0.s8 %v1020
    %v1022 = vlaneseq
    %v1023 = vshrl.u32 %v1022, 7
    %v1024 = vsub.s32 %v1021, %v1023
    %v1025 = vrot.slane %v1018, %v1024
    %v1026 = vcombine.high %v1025, %v1025
    %v1028 = vunpack.c.l.s4 1966171168
    %v1029 = vunpack.c.0.s8 %v1028
    %v1030 = vlaneseq
    %v1031 = vshrl.u32 %v1030, 7
    %v1032 = vsub.s32 %v1029, %v1031
    %v1033 = vrot.slane %v1025, %v1032
    %v1035 = vunpack.c.l.s4 1966171168
    %v1036 = vunpack.c.0.s8 %v1035
    %v1037 = vlaneseq
    %v1038 = vshrl.u32 %v1037, 7
    %v1039 = vsub.s32 %v1036, %v1038
    %v1040 = vrot.slane %v1026, %v1039
    %v1043 = vadd.f32 %v838, %v1033
    %v1044 = vadd.f32 %v839, %v1040
    %s1045 = sld [smem:[#allocation2 + $0x56]]
    %v1046 = vstv %s1045
    %v1047 = vmul.f32 %v944, %v1046
    %v1048 = vmul.f32 %v945, %v1046
    %v1051 = vcombine.low %v1047, %v1048
    %v1053 = vunpack.c.l.s4 1966171168
    %v1054 = vunpack.c.0.s8 %v1053
    %v1055 = vlaneseq
    %v1056 = vshrl.u32 %v1055, 7
    %v1057 = vsub.s32 %v1054, %v1056
    %v1058 = vrot.slane %v1051, %v1057
    %v1059 = vcombine.high %v1058, %v1058
    %v1061 = vunpack.c.l.s4 1966171168
    %v1062 = vunpack.c.0.s8 %v1061
    %v1063 = vlaneseq
    %v1064 = vshrl.u32 %v1063, 7
    %v1065 = vsub.s32 %v1062, %v1064
    %v1066 = vrot.slane %v1058, %v1065
    %v1068 = vunpack.c.l.s4 1966171168
    %v1069 = vunpack.c.0.s8 %v1068
    %v1070 = vlaneseq
    %v1071 = vshrl.u32 %v1070, 7
    %v1072 = vsub.s32 %v1069, %v1071
    %v1073 = vrot.slane %v1059, %v1072
    %v1076 = vadd.f32 %v871, %v1066
    %v1077 = vadd.f32 %v872, %v1073
    %s1078 = sld [smem:[#allocation2 + $0x71]]
    %v1079 = vstv %s1078
    %v1080 = vmul.f32 %v944, %v1079
    %v1081 = vmul.f32 %v945, %v1079
    %v1084 = vcombine.low %v1080, %v1081
    %v1086 = vunpack.c.l.s4 1966171168
    %v1087 = vunpack.c.0.s8 %v1086
    %v1088 = vlaneseq
    %v1089 = vshrl.u32 %v1088, 7
    %v1090 = vsub.s32 %v1087, %v1089
    %v1091 = vrot.slane %v1084, %v1090
    %v1092 = vcombine.high %v1091, %v1091
    %v1094 = vunpack.c.l.s4 1966171168
    %v1095 = vunpack.c.0.s8 %v1094
    %v1096 = vlaneseq
    %v1097 = vshrl.u32 %v1096, 7
    %v1098 = vsub.s32 %v1095, %v1097
    %v1099 = vrot.slane %v1091, %v1098
    %v1101 = vunpack.c.l.s4 1966171168
    %v1102 = vunpack.c.0.s8 %v1101
    %v1103 = vlaneseq
    %v1104 = vshrl.u32 %v1103, 7
    %v1105 = vsub.s32 %v1102, %v1104
    %v1106 = vrot.slane %v1092, %v1105
    %v1109 = vadd.f32 %v904, %v1099
    %v1110 = vadd.f32 %v905, %v1106
    %s1111 = sld [smem:[#allocation2 + $0x8c]]
    %v1112 = vstv %s1111
    %v1113 = vmul.f32 %v944, %v1112
    %v1114 = vmul.f32 %v945, %v1112
    %v1117 = vcombine.low %v1113, %v1114
    %v1119 = vunpack.c.l.s4 1966171168
    %v1120 = vunpack.c.0.s8 %v1119
    %v1121 = vlaneseq
    %v1122 = vshrl.u32 %v1121, 7
    %v1123 = vsub.s32 %v1120, %v1122
    %v1124 = vrot.slane %v1117, %v1123
    %v1125 = vcombine.high %v1124, %v1124
    %v1127 = vunpack.c.l.s4 1966171168
    %v1128 = vunpack.c.0.s8 %v1127
    %v1129 = vlaneseq
    %v1130 = vshrl.u32 %v1129, 7
    %v1131 = vsub.s32 %v1128, %v1130
    %v1132 = vrot.slane %v1124, %v1131
    %v1134 = vunpack.c.l.s4 1966171168
    %v1135 = vunpack.c.0.s8 %v1134
    %v1136 = vlaneseq
    %v1137 = vshrl.u32 %v1136, 7
    %v1138 = vsub.s32 %v1135, %v1137
    %v1139 = vrot.slane %v1125, %v1138
    %v1142 = vadd.f32 %v937, %v1132
    %v1143 = vadd.f32 %v938, %v1139
    %1144 = vrot.lane.b32.xlu0 %v107, 96
    %v1145 = vpop.permute.xlu0 %1144
    %1146 = vrot.lane.b32.xlu0 %v114, 96
    %v1147 = vpop.permute.xlu0 %1146
    %vm1148 = vcmp.lt.s32.totalorder %v122, 96
    %v1149 = vsel %vm1148, %v1145, %v1147
    %v1150 = vsel %vm1148, %v1147, %v1145
    %s1151 = sld [smem:[#allocation2 + $0x6]]
    %v1152 = vstv %s1151
    %v1153 = vmul.f32 %v1149, %v1152
    %v1154 = vmul.f32 %v1150, %v1152
    %v1157 = vcombine.low %v1153, %v1154
    %v1159 = vunpack.c.l.s4 1966171168
    %v1160 = vunpack.c.0.s8 %v1159
    %v1161 = vlaneseq
    %v1162 = vshrl.u32 %v1161, 7
    %v1163 = vsub.s32 %v1160, %v1162
    %v1164 = vrot.slane %v1157, %v1163
    %v1165 = vcombine.high %v1164, %v1164
    %v1167 = vunpack.c.l.s4 1966171168
    %v1168 = vunpack.c.0.s8 %v1167
    %v1169 = vlaneseq
    %v1170 = vshrl.u32 %v1169, 7
    %v1171 = vsub.s32 %v1168, %v1170
    %v1172 = vrot.slane %v1164, %v1171
    %v1174 = vunpack.c.l.s4 1966171168
    %v1175 = vunpack.c.0.s8 %v1174
    %v1176 = vlaneseq
    %v1177 = vshrl.u32 %v1176, 7
    %v1178 = vsub.s32 %v1175, %v1177
    %v1179 = vrot.slane %v1165, %v1178
    %v1182 = vadd.f32 %v977, %v1172
    %v1183 = vadd.f32 %v978, %v1179
    %s1184 = sld [smem:[#allocation2 + $0x21]]
    %v1185 = vstv %s1184
    %v1186 = vmul.f32 %v1149, %v1185
    %v1187 = vmul.f32 %v1150, %v1185
    %v1190 = vcombine.low %v1186, %v1187
    %v1192 = vunpack.c.l.s4 1966171168
    %v1193 = vunpack.c.0.s8 %v1192
    %v1194 = vlaneseq
    %v1195 = vshrl.u32 %v1194, 7
    %v1196 = vsub.s32 %v1193, %v1195
    %v1197 = vrot.slane %v1190, %v1196
    %v1198 = vcombine.high %v1197, %v1197
    %v1200 = vunpack.c.l.s4 1966171168
    %v1201 = vunpack.c.0.s8 %v1200
    %v1202 = vlaneseq
    %v1203 = vshrl.u32 %v1202, 7
    %v1204 = vsub.s32 %v1201, %v1203
    %v1205 = vrot.slane %v1197, %v1204
    %v1207 = vunpack.c.l.s4 1966171168
    %v1208 = vunpack.c.0.s8 %v1207
    %v1209 = vlaneseq
    %v1210 = vshrl.u32 %v1209, 7
    %v1211 = vsub.s32 %v1208, %v1210
    %v1212 = vrot.slane %v1198, %v1211
    %v1215 = vadd.f32 %v1010, %v1205
    %v1216 = vadd.f32 %v1011, %v1212
    %s1217 = sld [smem:[#allocation2 + $0x3c]]
    %v1218 = vstv %s1217
    %v1219 = vmul.f32 %v1149, %v1218
    %v1220 = vmul.f32 %v1150, %v1218
    %v1223 = vcombine.low %v1219, %v1220
    %v1225 = vunpack.c.l.s4 1966171168
    %v1226 = vunpack.c.0.s8 %v1225
    %v1227 = vlaneseq
    %v1228 = vshrl.u32 %v1227, 7
    %v1229 = vsub.s32 %v1226, %v1228
    %v1230 = vrot.slane %v1223, %v1229
    %v1231 = vcombine.high %v1230, %v1230
    %v1233 = vunpack.c.l.s4 1966171168
    %v1234 = vunpack.c.0.s8 %v1233
    %v1235 = vlaneseq
    %v1236 = vshrl.u32 %v1235, 7
    %v1237 = vsub.s32 %v1234, %v1236
    %v1238 = vrot.slane %v1230, %v1237
    %v1240 = vunpack.c.l.s4 1966171168
    %v1241 = vunpack.c.0.s8 %v1240
    %v1242 = vlaneseq
    %v1243 = vshrl.u32 %v1242, 7
    %v1244 = vsub.s32 %v1241, %v1243
    %v1245 = vrot.slane %v1231, %v1244
    %v1248 = vadd.f32 %v1043, %v1238
    %v1249 = vadd.f32 %v1044, %v1245
    %s1250 = sld [smem:[#allocation2 + $0x57]]
    %v1251 = vstv %s1250
    %v1252 = vmul.f32 %v1149, %v1251
    %v1253 = vmul.f32 %v1150, %v1251
    %v1256 = vcombine.low %v1252, %v1253
    %v1258 = vunpack.c.l.s4 1966171168
    %v1259 = vunpack.c.0.s8 %v1258
    %v1260 = vlaneseq
    %v1261 = vshrl.u32 %v1260, 7
    %v1262 = vsub.s32 %v1259, %v1261
    %v1263 = vrot.slane %v1256, %v1262
    %v1264 = vcombine.high %v1263, %v1263
    %v1266 = vunpack.c.l.s4 1966171168
    %v1267 = vunpack.c.0.s8 %v1266
    %v1268 = vlaneseq
    %v1269 = vshrl.u32 %v1268, 7
    %v1270 = vsub.s32 %v1267, %v1269
    %v1271 = vrot.slane %v1263, %v1270
    %v1273 = vunpack.c.l.s4 1966171168
    %v1274 = vunpack.c.0.s8 %v1273
    %v1275 = vlaneseq
    %v1276 = vshrl.u32 %v1275, 7
    %v1277 = vsub.s32 %v1274, %v1276
    %v1278 = vrot.slane %v1264, %v1277
    %v1281 = vadd.f32 %v1076, %v1271
    %v1282 = vadd.f32 %v1077, %v1278
    %s1283 = sld [smem:[#allocation2 + $0x72]]
    %v1284 = vstv %s1283
    %v1285 = vmul.f32 %v1149, %v1284
    %v1286 = vmul.f32 %v1150, %v1284
    %v1289 = vcombine.low %v1285, %v1286
    %v1291 = vunpack.c.l.s4 1966171168
    %v1292 = vunpack.c.0.s8 %v1291
    %v1293 = vlaneseq
    %v1294 = vshrl.u32 %v1293, 7
    %v1295 = vsub.s32 %v1292, %v1294
    %v1296 = vrot.slane %v1289, %v1295
    %v1297 = vcombine.high %v1296, %v1296
    %v1299 = vunpack.c.l.s4 1966171168
    %v1300 = vunpack.c.0.s8 %v1299
    %v1301 = vlaneseq
    %v1302 = vshrl.u32 %v1301, 7
    %v1303 = vsub.s32 %v1300, %v1302
    %v1304 = vrot.slane %v1296, %v1303
    %v1306 = vunpack.c.l.s4 1966171168
    %v1307 = vunpack.c.0.s8 %v1306
    %v1308 = vlaneseq
    %v1309 = vshrl.u32 %v1308, 7
    %v1310 = vsub.s32 %v1307, %v1309
    %v1311 = vrot.slane %v1297, %v1310
    %v1314 = vadd.f32 %v1109, %v1304
    %v1315 = vadd.f32 %v1110, %v1311
    %s1316 = sld [smem:[#allocation2 + $0x8d]]
    %v1317 = vstv %s1316
    %v1318 = vmul.f32 %v1149, %v1317
    %v1319 = vmul.f32 %v1150, %v1317
    %v1322 = vcombine.low %v1318, %v1319
    %v1324 = vunpack.c.l.s4 1966171168
    %v1325 = vunpack.c.0.s8 %v1324
    %v1326 = vlaneseq
    %v1327 = vshrl.u32 %v1326, 7
    %v1328 = vsub.s32 %v1325, %v1327
    %v1329 = vrot.slane %v1322, %v1328
    %v1330 = vcombine.high %v1329, %v1329
    %v1332 = vunpack.c.l.s4 1966171168
    %v1333 = vunpack.c.0.s8 %v1332
    %v1334 = vlaneseq
    %v1335 = vshrl.u32 %v1334, 7
    %v1336 = vsub.s32 %v1333, %v1335
    %v1337 = vrot.slane %v1329, %v1336
    %v1339 = vunpack.c.l.s4 1966171168
    %v1340 = vunpack.c.0.s8 %v1339
    %v1341 = vlaneseq
    %v1342 = vshrl.u32 %v1341, 7
    %v1343 = vsub.s32 %v1340, %v1342
    %v1344 = vrot.slane %v1330, %v1343
    %v1347 = vadd.f32 %v1142, %v1337
    %v1348 = vadd.f32 %v1143, %v1344
    %1349 = vrot.lane.b32.xlu0 %v107, 95
    %v1350 = vpop.permute.xlu0 %1349
    %1351 = vrot.lane.b32.xlu0 %v114, 95
    %v1352 = vpop.permute.xlu0 %1351
    %vm1353 = vcmp.lt.s32.totalorder %v122, 95
    %v1354 = vsel %vm1353, %v1350, %v1352
    %v1355 = vsel %vm1353, %v1352, %v1350
    %s1356 = sld [smem:[#allocation2 + $0x7]]
    %v1357 = vstv %s1356
    %v1358 = vmul.f32 %v1354, %v1357
    %v1359 = vmul.f32 %v1355, %v1357
    %v1362 = vcombine.low %v1358, %v1359
    %v1364 = vunpack.c.l.s4 1966171168
    %v1365 = vunpack.c.0.s8 %v1364
    %v1366 = vlaneseq
    %v1367 = vshrl.u32 %v1366, 7
    %v1368 = vsub.s32 %v1365, %v1367
    %v1369 = vrot.slane %v1362, %v1368
    %v1370 = vcombine.high %v1369, %v1369
    %v1372 = vunpack.c.l.s4 1966171168
    %v1373 = vunpack.c.0.s8 %v1372
    %v1374 = vlaneseq
    %v1375 = vshrl.u32 %v1374, 7
    %v1376 = vsub.s32 %v1373, %v1375
    %v1377 = vrot.slane %v1369, %v1376
    %v1379 = vunpack.c.l.s4 1966171168
    %v1380 = vunpack.c.0.s8 %v1379
    %v1381 = vlaneseq
    %v1382 = vshrl.u32 %v1381, 7
    %v1383 = vsub.s32 %v1380, %v1382
    %v1384 = vrot.slane %v1370, %v1383
    %v1387 = vadd.f32 %v1182, %v1377
    %v1388 = vadd.f32 %v1183, %v1384
    %s1389 = sld [smem:[#allocation2 + $0x22]]
    %v1390 = vstv %s1389
    %v1391 = vmul.f32 %v1354, %v1390
    %v1392 = vmul.f32 %v1355, %v1390
    %v1395 = vcombine.low %v1391, %v1392
    %v1397 = vunpack.c.l.s4 1966171168
    %v1398 = vunpack.c.0.s8 %v1397
    %v1399 = vlaneseq
    %v1400 = vshrl.u32 %v1399, 7
    %v1401 = vsub.s32 %v1398, %v1400
    %v1402 = vrot.slane %v1395, %v1401
    %v1403 = vcombine.high %v1402, %v1402
    %v1405 = vunpack.c.l.s4 1966171168
    %v1406 = vunpack.c.0.s8 %v1405
    %v1407 = vlaneseq
    %v1408 = vshrl.u32 %v1407, 7
    %v1409 = vsub.s32 %v1406, %v1408
    %v1410 = vrot.slane %v1402, %v1409
    %v1412 = vunpack.c.l.s4 1966171168
    %v1413 = vunpack.c.0.s8 %v1412
    %v1414 = vlaneseq
    %v1415 = vshrl.u32 %v1414, 7
    %v1416 = vsub.s32 %v1413, %v1415
    %v1417 = vrot.slane %v1403, %v1416
    %v1420 = vadd.f32 %v1215, %v1410
    %v1421 = vadd.f32 %v1216, %v1417
    %s1422 = sld [smem:[#allocation2 + $0x3d]]
    %v1423 = vstv %s1422
    %v1424 = vmul.f32 %v1354, %v1423
    %v1425 = vmul.f32 %v1355, %v1423
    %v1428 = vcombine.low %v1424, %v1425
    %v1430 = vunpack.c.l.s4 1966171168
    %v1431 = vunpack.c.0.s8 %v1430
    %v1432 = vlaneseq
    %v1433 = vshrl.u32 %v1432, 7
    %v1434 = vsub.s32 %v1431, %v1433
    %v1435 = vrot.slane %v1428, %v1434
    %v1436 = vcombine.high %v1435, %v1435
    %v1438 = vunpack.c.l.s4 1966171168
    %v1439 = vunpack.c.0.s8 %v1438
    %v1440 = vlaneseq
    %v1441 = vshrl.u32 %v1440, 7
    %v1442 = vsub.s32 %v1439, %v1441
    %v1443 = vrot.slane %v1435, %v1442
    %v1445 = vunpack.c.l.s4 1966171168
    %v1446 = vunpack.c.0.s8 %v1445
    %v1447 = vlaneseq
    %v1448 = vshrl.u32 %v1447, 7
    %v1449 = vsub.s32 %v1446, %v1448
    %v1450 = vrot.slane %v1436, %v1449
    %v1453 = vadd.f32 %v1248, %v1443
    %v1454 = vadd.f32 %v1249, %v1450
    %s1455 = sld [smem:[#allocation2 + $0x58]]
    %v1456 = vstv %s1455
    %v1457 = vmul.f32 %v1354, %v1456
    %v1458 = vmul.f32 %v1355, %v1456
    %v1461 = vcombine.low %v1457, %v1458
    %v1463 = vunpack.c.l.s4 1966171168
    %v1464 = vunpack.c.0.s8 %v1463
    %v1465 = vlaneseq
    %v1466 = vshrl.u32 %v1465, 7
    %v1467 = vsub.s32 %v1464, %v1466
    %v1468 = vrot.slane %v1461, %v1467
    %v1469 = vcombine.high %v1468, %v1468
    %v1471 = vunpack.c.l.s4 1966171168
    %v1472 = vunpack.c.0.s8 %v1471
    %v1473 = vlaneseq
    %v1474 = vshrl.u32 %v1473, 7
    %v1475 = vsub.s32 %v1472, %v1474
    %v1476 = vrot.slane %v1468, %v1475
    %v1478 = vunpack.c.l.s4 1966171168
    %v1479 = vunpack.c.0.s8 %v1478
    %v1480 = vlaneseq
    %v1481 = vshrl.u32 %v1480, 7
    %v1482 = vsub.s32 %v1479, %v1481
    %v1483 = vrot.slane %v1469, %v1482
    %v1486 = vadd.f32 %v1281, %v1476
    %v1487 = vadd.f32 %v1282, %v1483
    %s1488 = sld [smem:[#allocation2 + $0x73]]
    %v1489 = vstv %s1488
    %v1490 = vmul.f32 %v1354, %v1489
    %v1491 = vmul.f32 %v1355, %v1489
    %v1494 = vcombine.low %v1490, %v1491
    %v1496 = vunpack.c.l.s4 1966171168
    %v1497 = vunpack.c.0.s8 %v1496
    %v1498 = vlaneseq
    %v1499 = vshrl.u32 %v1498, 7
    %v1500 = vsub.s32 %v1497, %v1499
    %v1501 = vrot.slane %v1494, %v1500
    %v1502 = vcombine.high %v1501, %v1501
    %v1504 = vunpack.c.l.s4 1966171168
    %v1505 = vunpack.c.0.s8 %v1504
    %v1506 = vlaneseq
    %v1507 = vshrl.u32 %v1506, 7
    %v1508 = vsub.s32 %v1505, %v1507
    %v1509 = vrot.slane %v1501, %v1508
    %v1511 = vunpack.c.l.s4 1966171168
    %v1512 = vunpack.c.0.s8 %v1511
    %v1513 = vlaneseq
    %v1514 = vshrl.u32 %v1513, 7
    %v1515 = vsub.s32 %v1512, %v1514
    %v1516 = vrot.slane %v1502, %v1515
    %v1519 = vadd.f32 %v1314, %v1509
    %v1520 = vadd.f32 %v1315, %v1516
    %s1521 = sld [smem:[#allocation2 + $0x8e]]
    %v1522 = vstv %s1521
    %v1523 = vmul.f32 %v1354, %v1522
    %v1524 = vmul.f32 %v1355, %v1522
    %v1527 = vcombine.low %v1523, %v1524
    %v1529 = vunpack.c.l.s4 1966171168
    %v1530 = vunpack.c.0.s8 %v1529
    %v1531 = vlaneseq
    %v1532 = vshrl.u32 %v1531, 7
    %v1533 = vsub.s32 %v1530, %v1532
    %v1534 = vrot.slane %v1527, %v1533
    %v1535 = vcombine.high %v1534, %v1534
    %v1537 = vunpack.c.l.s4 1966171168
    %v1538 = vunpack.c.0.s8 %v1537
    %v1539 = vlaneseq
    %v1540 = vshrl.u32 %v1539, 7
    %v1541 = vsub.s32 %v1538, %v1540
    %v1542 = vrot.slane %v1534, %v1541
    %v1544 = vunpack.c.l.s4 1966171168
    %v1545 = vunpack.c.0.s8 %v1544
    %v1546 = vlaneseq
    %v1547 = vshrl.u32 %v1546, 7
    %v1548 = vsub.s32 %v1545, %v1547
    %v1549 = vrot.slane %v1535, %v1548
    %v1552 = vadd.f32 %v1347, %v1542
    %v1553 = vadd.f32 %v1348, %v1549
    %1554 = vrot.lane.b32.xlu0 %v107, 94
    %v1555 = vpop.permute.xlu0 %1554
    %1556 = vrot.lane.b32.xlu0 %v114, 94
    %v1557 = vpop.permute.xlu0 %1556
    %vm1558 = vcmp.lt.s32.totalorder %v122, 94
    %v1559 = vsel %vm1558, %v1555, %v1557
    %v1560 = vsel %vm1558, %v1557, %v1555
    %s1561 = sld [smem:[#allocation2 + $0x8]]
    %v1562 = vstv %s1561
    %v1563 = vmul.f32 %v1559, %v1562
    %v1564 = vmul.f32 %v1560, %v1562
    %v1567 = vcombine.low %v1563, %v1564
    %v1569 = vunpack.c.l.s4 1966171168
    %v1570 = vunpack.c.0.s8 %v1569
    %v1571 = vlaneseq
    %v1572 = vshrl.u32 %v1571, 7
    %v1573 = vsub.s32 %v1570, %v1572
    %v1574 = vrot.slane %v1567, %v1573
    %v1575 = vcombine.high %v1574, %v1574
    %v1577 = vunpack.c.l.s4 1966171168
    %v1578 = vunpack.c.0.s8 %v1577
    %v1579 = vlaneseq
    %v1580 = vshrl.u32 %v1579, 7
    %v1581 = vsub.s32 %v1578, %v1580
    %v1582 = vrot.slane %v1574, %v1581
    %v1584 = vunpack.c.l.s4 1966171168
    %v1585 = vunpack.c.0.s8 %v1584
    %v1586 = vlaneseq
    %v1587 = vshrl.u32 %v1586, 7
    %v1588 = vsub.s32 %v1585, %v1587
    %v1589 = vrot.slane %v1575, %v1588
    %v1592 = vadd.f32 %v1387, %v1582
    %v1593 = vadd.f32 %v1388, %v1589
    %s1594 = sld [smem:[#allocation2 + $0x23]]
    %v1595 = vstv %s1594
    %v1596 = vmul.f32 %v1559, %v1595
    %v1597 = vmul.f32 %v1560, %v1595
    %v1600 = vcombine.low %v1596, %v1597
    %v1602 = vunpack.c.l.s4 1966171168
    %v1603 = vunpack.c.0.s8 %v1602
    %v1604 = vlaneseq
    %v1605 = vshrl.u32 %v1604, 7
    %v1606 = vsub.s32 %v1603, %v1605
    %v1607 = vrot.slane %v1600, %v1606
    %v1608 = vcombine.high %v1607, %v1607
    %v1610 = vunpack.c.l.s4 1966171168
    %v1611 = vunpack.c.0.s8 %v1610
    %v1612 = vlaneseq
    %v1613 = vshrl.u32 %v1612, 7
    %v1614 = vsub.s32 %v1611, %v1613
    %v1615 = vrot.slane %v1607, %v1614
    %v1617 = vunpack.c.l.s4 1966171168
    %v1618 = vunpack.c.0.s8 %v1617
    %v1619 = vlaneseq
    %v1620 = vshrl.u32 %v1619, 7
    %v1621 = vsub.s32 %v1618, %v1620
    %v1622 = vrot.slane %v1608, %v1621
    %v1625 = vadd.f32 %v1420, %v1615
    %v1626 = vadd.f32 %v1421, %v1622
    %s1627 = sld [smem:[#allocation2 + $0x3e]]
    %v1628 = vstv %s1627
    %v1629 = vmul.f32 %v1559, %v1628
    %v1630 = vmul.f32 %v1560, %v1628
    %v1633 = vcombine.low %v1629, %v1630
    %v1635 = vunpack.c.l.s4 1966171168
    %v1636 = vunpack.c.0.s8 %v1635
    %v1637 = vlaneseq
    %v1638 = vshrl.u32 %v1637, 7
    %v1639 = vsub.s32 %v1636, %v1638
    %v1640 = vrot.slane %v1633, %v1639
    %v1641 = vcombine.high %v1640, %v1640
    %v1643 = vunpack.c.l.s4 1966171168
    %v1644 = vunpack.c.0.s8 %v1643
    %v1645 = vlaneseq
    %v1646 = vshrl.u32 %v1645, 7
    %v1647 = vsub.s32 %v1644, %v1646
    %v1648 = vrot.slane %v1640, %v1647
    %v1650 = vunpack.c.l.s4 1966171168
    %v1651 = vunpack.c.0.s8 %v1650
    %v1652 = vlaneseq
    %v1653 = vshrl.u32 %v1652, 7
    %v1654 = vsub.s32 %v1651, %v1653
    %v1655 = vrot.slane %v1641, %v1654
    %v1658 = vadd.f32 %v1453, %v1648
    %v1659 = vadd.f32 %v1454, %v1655
    %s1660 = sld [smem:[#allocation2 + $0x59]]
    %v1661 = vstv %s1660
    %v1662 = vmul.f32 %v1559, %v1661
    %v1663 = vmul.f32 %v1560, %v1661
    %v1666 = vcombine.low %v1662, %v1663
    %v1668 = vunpack.c.l.s4 1966171168
    %v1669 = vunpack.c.0.s8 %v1668
    %v1670 = vlaneseq
    %v1671 = vshrl.u32 %v1670, 7
    %v1672 = vsub.s32 %v1669, %v1671
    %v1673 = vrot.slane %v1666, %v1672
    %v1674 = vcombine.high %v1673, %v1673
    %v1676 = vunpack.c.l.s4 1966171168
    %v1677 = vunpack.c.0.s8 %v1676
    %v1678 = vlaneseq
    %v1679 = vshrl.u32 %v1678, 7
    %v1680 = vsub.s32 %v1677, %v1679
    %v1681 = vrot.slane %v1673, %v1680
    %v1683 = vunpack.c.l.s4 1966171168
    %v1684 = vunpack.c.0.s8 %v1683
    %v1685 = vlaneseq
    %v1686 = vshrl.u32 %v1685, 7
    %v1687 = vsub.s32 %v1684, %v1686
    %v1688 = vrot.slane %v1674, %v1687
    %v1691 = vadd.f32 %v1486, %v1681
    %v1692 = vadd.f32 %v1487, %v1688
    %s1693 = sld [smem:[#allocation2 + $0x74]]
    %v1694 = vstv %s1693
    %v1695 = vmul.f32 %v1559, %v1694
    %v1696 = vmul.f32 %v1560, %v1694
    %v1699 = vcombine.low %v1695, %v1696
    %v1701 = vunpack.c.l.s4 1966171168
    %v1702 = vunpack.c.0.s8 %v1701
    %v1703 = vlaneseq
    %v1704 = vshrl.u32 %v1703, 7
    %v1705 = vsub.s32 %v1702, %v1704
    %v1706 = vrot.slane %v1699, %v1705
    %v1707 = vcombine.high %v1706, %v1706
    %v1709 = vunpack.c.l.s4 1966171168
    %v1710 = vunpack.c.0.s8 %v1709
    %v1711 = vlaneseq
    %v1712 = vshrl.u32 %v1711, 7
    %v1713 = vsub.s32 %v1710, %v1712
    %v1714 = vrot.slane %v1706, %v1713
    %v1716 = vunpack.c.l.s4 1966171168
    %v1717 = vunpack.c.0.s8 %v1716
    %v1718 = vlaneseq
    %v1719 = vshrl.u32 %v1718, 7
    %v1720 = vsub.s32 %v1717, %v1719
    %v1721 = vrot.slane %v1707, %v1720
    %v1724 = vadd.f32 %v1519, %v1714
    %v1725 = vadd.f32 %v1520, %v1721
    %s1726 = sld [smem:[#allocation2 + $0x8f]]
    %v1727 = vstv %s1726
    %v1728 = vmul.f32 %v1559, %v1727
    %v1729 = vmul.f32 %v1560, %v1727
    %v1732 = vcombine.low %v1728, %v1729
    %v1734 = vunpack.c.l.s4 1966171168
    %v1735 = vunpack.c.0.s8 %v1734
    %v1736 = vlaneseq
    %v1737 = vshrl.u32 %v1736, 7
    %v1738 = vsub.s32 %v1735, %v1737
    %v1739 = vrot.slane %v1732, %v1738
    %v1740 = vcombine.high %v1739, %v1739
    %v1742 = vunpack.c.l.s4 1966171168
    %v1743 = vunpack.c.0.s8 %v1742
    %v1744 = vlaneseq
    %v1745 = vshrl.u32 %v1744, 7
    %v1746 = vsub.s32 %v1743, %v1745
    %v1747 = vrot.slane %v1739, %v1746
    %v1749 = vunpack.c.l.s4 1966171168
    %v1750 = vunpack.c.0.s8 %v1749
    %v1751 = vlaneseq
    %v1752 = vshrl.u32 %v1751, 7
    %v1753 = vsub.s32 %v1750, %v1752
    %v1754 = vrot.slane %v1740, %v1753
    %v1757 = vadd.f32 %v1552, %v1747
    %v1758 = vadd.f32 %v1553, %v1754
    %s1759 = scalar_lea.vmem %s0, 1
    %v1760 = vld [vmem:[%s1759] ss:$4 sm:$0x3]
    %s1761 = scalar_lea.vmem %s0, 9
    %v1762 = vld [vmem:[%s1761] ss:$4 sm:$0x3]
    %s1763 = sld [smem:[#allocation2 + $0x9]]
    %v1764 = vstv %s1763
    %v1765 = vmul.f32 %v1760, %v1764
    %v1766 = vmul.f32 %v1762, %v1764
    %v1767 = vadd.f32 %v1592, %v1765
    %v1768 = vadd.f32 %v1593, %v1766
    %s1769 = sld [smem:[#allocation2 + $0x24]]
    %v1770 = vstv %s1769
    %v1771 = vmul.f32 %v1760, %v1770
    %v1772 = vmul.f32 %v1762, %v1770
    %v1773 = vadd.f32 %v1625, %v1771
    %v1774 = vadd.f32 %v1626, %v1772
    %s1775 = sld [smem:[#allocation2 + $0x3f]]
    %v1776 = vstv %s1775
    %v1777 = vmul.f32 %v1760, %v1776
    %v1778 = vmul.f32 %v1762, %v1776
    %v1779 = vadd.f32 %v1658, %v1777
    %v1780 = vadd.f32 %v1659, %v1778
    %s1781 = sld [smem:[#allocation2 + $0x5a]]
    %v1782 = vstv %s1781
    %v1783 = vmul.f32 %v1760, %v1782
    %v1784 = vmul.f32 %v1762, %v1782
    %v1785 = vadd.f32 %v1691, %v1783
    %v1786 = vadd.f32 %v1692, %v1784
    %s1787 = sld [smem:[#allocation2 + $0x75]]
    %v1788 = vstv %s1787
    %v1789 = vmul.f32 %v1760, %v1788
    %v1790 = vmul.f32 %v1762, %v1788
    %v1791 = vadd.f32 %v1724, %v1789
    %v1792 = vadd.f32 %v1725, %v1790
    %s1793 = sld [smem:[#allocation2 + $0x90]]
    %v1794 = vstv %s1793
    %v1795 = vmul.f32 %v1760, %v1794
    %v1796 = vmul.f32 %v1762, %v1794
    %v1797 = vadd.f32 %v1757, %v1795
    %v1798 = vadd.f32 %v1758, %v1796
    %v1801 = vcombine.low %v1760, %v1762
    %v1803 = vunpack.c.l.s4 1966171168
    %v1804 = vunpack.c.0.s8 %v1803
    %v1805 = vlaneseq
    %v1806 = vshrl.u32 %v1805, 7
    %v1807 = vsub.s32 %v1804, %v1806
    %v1808 = vrot.slane %v1801, %v1807
    %v1809 = vcombine.high %v1808, %v1808
    %v1811 = vunpack.c.l.s4 1966171168
    %v1812 = vunpack.c.0.s8 %v1811
    %v1813 = vlaneseq
    %v1814 = vshrl.u32 %v1813, 7
    %v1815 = vsub.s32 %v1812, %v1814
    %v1816 = vrot.slane %v1808, %v1815
    %v1818 = vunpack.c.l.s4 1966171168
    %v1819 = vunpack.c.0.s8 %v1818
    %v1820 = vlaneseq
    %v1821 = vshrl.u32 %v1820, 7
    %v1822 = vsub.s32 %v1819, %v1821
    %v1823 = vrot.slane %v1809, %v1822
    %1826 = vrot.lane.b32.xlu0 %v1816, 127
    %v1827 = vpop.permute.xlu0 %1826
    %1828 = vrot.lane.b32.xlu0 %v1823, 127
    %v1829 = vpop.permute.xlu0 %1828
    %v1830 = vsel %vm123, %v1827, %v1829
    %v1831 = vsel %vm123, %v1829, %v1827
    %s1832 = sld [smem:[#allocation2 + $0xa]]
    %v1833 = vstv %s1832
    %v1834 = vmul.f32 %v1830, %v1833
    %v1835 = vmul.f32 %v1831, %v1833
    %v1838 = vcombine.low %v1834, %v1835
    %v1840 = vunpack.c.l.s4 1966171168
    %v1841 = vunpack.c.0.s8 %v1840
    %v1842 = vlaneseq
    %v1843 = vshrl.u32 %v1842, 7
    %v1844 = vsub.s32 %v1841, %v1843
    %v1845 = vrot.slane %v1838, %v1844
    %v1846 = vcombine.high %v1845, %v1845
    %v1848 = vunpack.c.l.s4 1966171168
    %v1849 = vunpack.c.0.s8 %v1848
    %v1850 = vlaneseq
    %v1851 = vshrl.u32 %v1850, 7
    %v1852 = vsub.s32 %v1849, %v1851
    %v1853 = vrot.slane %v1845, %v1852
    %v1855 = vunpack.c.l.s4 1966171168
    %v1856 = vunpack.c.0.s8 %v1855
    %v1857 = vlaneseq
    %v1858 = vshrl.u32 %v1857, 7
    %v1859 = vsub.s32 %v1856, %v1858
    %v1860 = vrot.slane %v1846, %v1859
    %v1863 = vadd.f32 %v1767, %v1853
    %v1864 = vadd.f32 %v1768, %v1860
    %s1865 = sld [smem:[#allocation2 + $0x25]]
    %v1866 = vstv %s1865
    %v1867 = vmul.f32 %v1830, %v1866
    %v1868 = vmul.f32 %v1831, %v1866
    %v1871 = vcombine.low %v1867, %v1868
    %v1873 = vunpack.c.l.s4 1966171168
    %v1874 = vunpack.c.0.s8 %v1873
    %v1875 = vlaneseq
    %v1876 = vshrl.u32 %v1875, 7
    %v1877 = vsub.s32 %v1874, %v1876
    %v1878 = vrot.slane %v1871, %v1877
    %v1879 = vcombine.high %v1878, %v1878
    %v1881 = vunpack.c.l.s4 1966171168
    %v1882 = vunpack.c.0.s8 %v1881
    %v1883 = vlaneseq
    %v1884 = vshrl.u32 %v1883, 7
    %v1885 = vsub.s32 %v1882, %v1884
    %v1886 = vrot.slane %v1878, %v1885
    %v1888 = vunpack.c.l.s4 1966171168
    %v1889 = vunpack.c.0.s8 %v1888
    %v1890 = vlaneseq
    %v1891 = vshrl.u32 %v1890, 7
    %v1892 = vsub.s32 %v1889, %v1891
    %v1893 = vrot.slane %v1879, %v1892
    %v1896 = vadd.f32 %v1773, %v1886
    %v1897 = vadd.f32 %v1774, %v1893
    %s1898 = sld [smem:[#allocation2 + $0x40]]
    %v1899 = vstv %s1898
    %v1900 = vmul.f32 %v1830, %v1899
    %v1901 = vmul.f32 %v1831, %v1899
    %v1904 = vcombine.low %v1900, %v1901
    %v1906 = vunpack.c.l.s4 1966171168
    %v1907 = vunpack.c.0.s8 %v1906
    %v1908 = vlaneseq
    %v1909 = vshrl.u32 %v1908, 7
    %v1910 = vsub.s32 %v1907, %v1909
    %v1911 = vrot.slane %v1904, %v1910
    %v1912 = vcombine.high %v1911, %v1911
    %v1914 = vunpack.c.l.s4 1966171168
    %v1915 = vunpack.c.0.s8 %v1914
    %v1916 = vlaneseq
    %v1917 = vshrl.u32 %v1916, 7
    %v1918 = vsub.s32 %v1915, %v1917
    %v1919 = vrot.slane %v1911, %v1918
    %v1921 = vunpack.c.l.s4 1966171168
    %v1922 = vunpack.c.0.s8 %v1921
    %v1923 = vlaneseq
    %v1924 = vshrl.u32 %v1923, 7
    %v1925 = vsub.s32 %v1922, %v1924
    %v1926 = vrot.slane %v1912, %v1925
    %v1929 = vadd.f32 %v1779, %v1919
    %v1930 = vadd.f32 %v1780, %v1926
    %s1931 = sld [smem:[#allocation2 + $0x5b]]
    %v1932 = vstv %s1931
    %v1933 = vmul.f32 %v1830, %v1932
    %v1934 = vmul.f32 %v1831, %v1932
    %v1937 = vcombine.low %v1933, %v1934
    %v1939 = vunpack.c.l.s4 1966171168
    %v1940 = vunpack.c.0.s8 %v1939
    %v1941 = vlaneseq
    %v1942 = vshrl.u32 %v1941, 7
    %v1943 = vsub.s32 %v1940, %v1942
    %v1944 = vrot.slane %v1937, %v1943
    %v1945 = vcombine.high %v1944, %v1944
    %v1947 = vunpack.c.l.s4 1966171168
    %v1948 = vunpack.c.0.s8 %v1947
    %v1949 = vlaneseq
    %v1950 = vshrl.u32 %v1949, 7
    %v1951 = vsub.s32 %v1948, %v1950
    %v1952 = vrot.slane %v1944, %v1951
    %v1954 = vunpack.c.l.s4 1966171168
    %v1955 = vunpack.c.0.s8 %v1954
    %v1956 = vlaneseq
    %v1957 = vshrl.u32 %v1956, 7
    %v1958 = vsub.s32 %v1955, %v1957
    %v1959 = vrot.slane %v1945, %v1958
    %v1962 = vadd.f32 %v1785, %v1952
    %v1963 = vadd.f32 %v1786, %v1959
    %s1964 = sld [smem:[#allocation2 + $0x76]]
    %v1965 = vstv %s1964
    %v1966 = vmul.f32 %v1830, %v1965
    %v1967 = vmul.f32 %v1831, %v1965
    %v1970 = vcombine.low %v1966, %v1967
    %v1972 = vunpack.c.l.s4 1966171168
    %v1973 = vunpack.c.0.s8 %v1972
    %v1974 = vlaneseq
    %v1975 = vshrl.u32 %v1974, 7
    %v1976 = vsub.s32 %v1973, %v1975
    %v1977 = vrot.slane %v1970, %v1976
    %v1978 = vcombine.high %v1977, %v1977
    %v1980 = vunpack.c.l.s4 1966171168
    %v1981 = vunpack.c.0.s8 %v1980
    %v1982 = vlaneseq
    %v1983 = vshrl.u32 %v1982, 7
    %v1984 = vsub.s32 %v1981, %v1983
    %v1985 = vrot.slane %v1977, %v1984
    %v1987 = vunpack.c.l.s4 1966171168
    %v1988 = vunpack.c.0.s8 %v1987
    %v1989 = vlaneseq
    %v1990 = vshrl.u32 %v1989, 7
    %v1991 = vsub.s32 %v1988, %v1990
    %v1992 = vrot.slane %v1978, %v1991
    %v1995 = vadd.f32 %v1791, %v1985
    %v1996 = vadd.f32 %v1792, %v1992
    %s1997 = sld [smem:[#allocation2 + $0x91]]
    %v1998 = vstv %s1997
    %v1999 = vmul.f32 %v1830, %v1998
    %v2000 = vmul.f32 %v1831, %v1998
    %v2003 = vcombine.low %v1999, %v2000
    %v2005 = vunpack.c.l.s4 1966171168
    %v2006 = vunpack.c.0.s8 %v2005
    %v2007 = vlaneseq
    %v2008 = vshrl.u32 %v2007, 7
    %v2009 = vsub.s32 %v2006, %v2008
    %v2010 = vrot.slane %v2003, %v2009
    %v2011 = vcombine.high %v2010, %v2010
    %v2013 = vunpack.c.l.s4 1966171168
    %v2014 = vunpack.c.0.s8 %v2013
    %v2015 = vlaneseq
    %v2016 = vshrl.u32 %v2015, 7
    %v2017 = vsub.s32 %v2014, %v2016
    %v2018 = vrot.slane %v2010, %v2017
    %v2020 = vunpack.c.l.s4 1966171168
    %v2021 = vunpack.c.0.s8 %v2020
    %v2022 = vlaneseq
    %v2023 = vshrl.u32 %v2022, 7
    %v2024 = vsub.s32 %v2021, %v2023
    %v2025 = vrot.slane %v2011, %v2024
    %v2028 = vadd.f32 %v1797, %v2018
    %v2029 = vadd.f32 %v1798, %v2025
    %2030 = vrot.lane.b32.xlu0 %v1816, 126
    %v2031 = vpop.permute.xlu0 %2030
    %2032 = vrot.lane.b32.xlu0 %v1823, 126
    %v2033 = vpop.permute.xlu0 %2032
    %v2034 = vsel %vm328, %v2031, %v2033
    %v2035 = vsel %vm328, %v2033, %v2031
    %s2036 = sld [smem:[#allocation2 + $0xb]]
    %v2037 = vstv %s2036
    %v2038 = vmul.f32 %v2034, %v2037
    %v2039 = vmul.f32 %v2035, %v2037
    %v2042 = vcombine.low %v2038, %v2039
    %v2044 = vunpack.c.l.s4 1966171168
    %v2045 = vunpack.c.0.s8 %v2044
    %v2046 = vlaneseq
    %v2047 = vshrl.u32 %v2046, 7
    %v2048 = vsub.s32 %v2045, %v2047
    %v2049 = vrot.slane %v2042, %v2048
    %v2050 = vcombine.high %v2049, %v2049
    %v2052 = vunpack.c.l.s4 1966171168
    %v2053 = vunpack.c.0.s8 %v2052
    %v2054 = vlaneseq
    %v2055 = vshrl.u32 %v2054, 7
    %v2056 = vsub.s32 %v2053, %v2055
    %v2057 = vrot.slane %v2049, %v2056
    %v2059 = vunpack.c.l.s4 1966171168
    %v2060 = vunpack.c.0.s8 %v2059
    %v2061 = vlaneseq
    %v2062 = vshrl.u32 %v2061, 7
    %v2063 = vsub.s32 %v2060, %v2062
    %v2064 = vrot.slane %v2050, %v2063
    %v2067 = vadd.f32 %v1863, %v2057
    %v2068 = vadd.f32 %v1864, %v2064
    %s2069 = sld [smem:[#allocation2 + $0x26]]
    %v2070 = vstv %s2069
    %v2071 = vmul.f32 %v2034, %v2070
    %v2072 = vmul.f32 %v2035, %v2070
    %v2075 = vcombine.low %v2071, %v2072
    %v2077 = vunpack.c.l.s4 1966171168
    %v2078 = vunpack.c.0.s8 %v2077
    %v2079 = vlaneseq
    %v2080 = vshrl.u32 %v2079, 7
    %v2081 = vsub.s32 %v2078, %v2080
    %v2082 = vrot.slane %v2075, %v2081
    %v2083 = vcombine.high %v2082, %v2082
    %v2085 = vunpack.c.l.s4 1966171168
    %v2086 = vunpack.c.0.s8 %v2085
    %v2087 = vlaneseq
    %v2088 = vshrl.u32 %v2087, 7
    %v2089 = vsub.s32 %v2086, %v2088
    %v2090 = vrot.slane %v2082, %v2089
    %v2092 = vunpack.c.l.s4 1966171168
    %v2093 = vunpack.c.0.s8 %v2092
    %v2094 = vlaneseq
    %v2095 = vshrl.u32 %v2094, 7
    %v2096 = vsub.s32 %v2093, %v2095
    %v2097 = vrot.slane %v2083, %v2096
    %v2100 = vadd.f32 %v1896, %v2090
    %v2101 = vadd.f32 %v1897, %v2097
    %s2102 = sld [smem:[#allocation2 + $0x41]]
    %v2103 = vstv %s2102
    %v2104 = vmul.f32 %v2034, %v2103
    %v2105 = vmul.f32 %v2035, %v2103
    %v2108 = vcombine.low %v2104, %v2105
    %v2110 = vunpack.c.l.s4 1966171168
    %v2111 = vunpack.c.0.s8 %v2110
    %v2112 = vlaneseq
    %v2113 = vshrl.u32 %v2112, 7
    %v2114 = vsub.s32 %v2111, %v2113
    %v2115 = vrot.slane %v2108, %v2114
    %v2116 = vcombine.high %v2115, %v2115
    %v2118 = vunpack.c.l.s4 1966171168
    %v2119 = vunpack.c.0.s8 %v2118
    %v2120 = vlaneseq
    %v2121 = vshrl.u32 %v2120, 7
    %v2122 = vsub.s32 %v2119, %v2121
    %v2123 = vrot.slane %v2115, %v2122
    %v2125 = vunpack.c.l.s4 1966171168
    %v2126 = vunpack.c.0.s8 %v2125
    %v2127 = vlaneseq
    %v2128 = vshrl.u32 %v2127, 7
    %v2129 = vsub.s32 %v2126, %v2128
    %v2130 = vrot.slane %v2116, %v2129
    %v2133 = vadd.f32 %v1929, %v2123
    %v2134 = vadd.f32 %v1930, %v2130
    %s2135 = sld [smem:[#allocation2 + $0x5c]]
    %v2136 = vstv %s2135
    %v2137 = vmul.f32 %v2034, %v2136
    %v2138 = vmul.f32 %v2035, %v2136
    %v2141 = vcombine.low %v2137, %v2138
    %v2143 = vunpack.c.l.s4 1966171168
    %v2144 = vunpack.c.0.s8 %v2143
    %v2145 = vlaneseq
    %v2146 = vshrl.u32 %v2145, 7
    %v2147 = vsub.s32 %v2144, %v2146
    %v2148 = vrot.slane %v2141, %v2147
    %v2149 = vcombine.high %v2148, %v2148
    %v2151 = vunpack.c.l.s4 1966171168
    %v2152 = vunpack.c.0.s8 %v2151
    %v2153 = vlaneseq
    %v2154 = vshrl.u32 %v2153, 7
    %v2155 = vsub.s32 %v2152, %v2154
    %v2156 = vrot.slane %v2148, %v2155
    %v2158 = vunpack.c.l.s4 1966171168
    %v2159 = vunpack.c.0.s8 %v2158
    %v2160 = vlaneseq
    %v2161 = vshrl.u32 %v2160, 7
    %v2162 = vsub.s32 %v2159, %v2161
    %v2163 = vrot.slane %v2149, %v2162
    %v2166 = vadd.f32 %v1962, %v2156
    %v2167 = vadd.f32 %v1963, %v2163
    %s2168 = sld [smem:[#allocation2 + $0x77]]
    %v2169 = vstv %s2168
    %v2170 = vmul.f32 %v2034, %v2169
    %v2171 = vmul.f32 %v2035, %v2169
    %v2174 = vcombine.low %v2170, %v2171
    %v2176 = vunpack.c.l.s4 1966171168
    %v2177 = vunpack.c.0.s8 %v2176
    %v2178 = vlaneseq
    %v2179 = vshrl.u32 %v2178, 7
    %v2180 = vsub.s32 %v2177, %v2179
    %v2181 = vrot.slane %v2174, %v2180
    %v2182 = vcombine.high %v2181, %v2181
    %v2184 = vunpack.c.l.s4 1966171168
    %v2185 = vunpack.c.0.s8 %v2184
    %v2186 = vlaneseq
    %v2187 = vshrl.u32 %v2186, 7
    %v2188 = vsub.s32 %v2185, %v2187
    %v2189 = vrot.slane %v2181, %v2188
    %v2191 = vunpack.c.l.s4 1966171168
    %v2192 = vunpack.c.0.s8 %v2191
    %v2193 = vlaneseq
    %v2194 = vshrl.u32 %v2193, 7
    %v2195 = vsub.s32 %v2192, %v2194
    %v2196 = vrot.slane %v2182, %v2195
    %v2199 = vadd.f32 %v1995, %v2189
    %v2200 = vadd.f32 %v1996, %v2196
    %s2201 = sld [smem:[#allocation2 + $0x92]]
    %v2202 = vstv %s2201
    %v2203 = vmul.f32 %v2034, %v2202
    %v2204 = vmul.f32 %v2035, %v2202
    %v2207 = vcombine.low %v2203, %v2204
    %v2209 = vunpack.c.l.s4 1966171168
    %v2210 = vunpack.c.0.s8 %v2209
    %v2211 = vlaneseq
    %v2212 = vshrl.u32 %v2211, 7
    %v2213 = vsub.s32 %v2210, %v2212
    %v2214 = vrot.slane %v2207, %v2213
    %v2215 = vcombine.high %v2214, %v2214
    %v2217 = vunpack.c.l.s4 1966171168
    %v2218 = vunpack.c.0.s8 %v2217
    %v2219 = vlaneseq
    %v2220 = vshrl.u32 %v2219, 7
    %v2221 = vsub.s32 %v2218, %v2220
    %v2222 = vrot.slane %v2214, %v2221
    %v2224 = vunpack.c.l.s4 1966171168
    %v2225 = vunpack.c.0.s8 %v2224
    %v2226 = vlaneseq
    %v2227 = vshrl.u32 %v2226, 7
    %v2228 = vsub.s32 %v2225, %v2227
    %v2229 = vrot.slane %v2215, %v2228
    %v2232 = vadd.f32 %v2028, %v2222
    %v2233 = vadd.f32 %v2029, %v2229
    %2234 = vrot.lane.b32.xlu0 %v1816, 112
    %v2235 = vpop.permute.xlu0 %2234
    %2236 = vrot.lane.b32.xlu0 %v1823, 112
    %v2237 = vpop.permute.xlu0 %2236
    %v2238 = vsel %vm533, %v2235, %v2237
    %v2239 = vsel %vm533, %v2237, %v2235
    %s2240 = sld [smem:[#allocation2 + $0xc]]
    %v2241 = vstv %s2240
    %v2242 = vmul.f32 %v2238, %v2241
    %v2243 = vmul.f32 %v2239, %v2241
    %v2246 = vcombine.low %v2242, %v2243
    %v2248 = vunpack.c.l.s4 1966171168
    %v2249 = vunpack.c.0.s8 %v2248
    %v2250 = vlaneseq
    %v2251 = vshrl.u32 %v2250, 7
    %v2252 = vsub.s32 %v2249, %v2251
    %v2253 = vrot.slane %v2246, %v2252
    %v2254 = vcombine.high %v2253, %v2253
    %v2256 = vunpack.c.l.s4 1966171168
    %v2257 = vunpack.c.0.s8 %v2256
    %v2258 = vlaneseq
    %v2259 = vshrl.u32 %v2258, 7
    %v2260 = vsub.s32 %v2257, %v2259
    %v2261 = vrot.slane %v2253, %v2260
    %v2263 = vunpack.c.l.s4 1966171168
    %v2264 = vunpack.c.0.s8 %v2263
    %v2265 = vlaneseq
    %v2266 = vshrl.u32 %v2265, 7
    %v2267 = vsub.s32 %v2264, %v2266
    %v2268 = vrot.slane %v2254, %v2267
    %v2271 = vadd.f32 %v2067, %v2261
    %v2272 = vadd.f32 %v2068, %v2268
    %s2273 = sld [smem:[#allocation2 + $0x27]]
    %v2274 = vstv %s2273
    %v2275 = vmul.f32 %v2238, %v2274
    %v2276 = vmul.f32 %v2239, %v2274
    %v2279 = vcombine.low %v2275, %v2276
    %v2281 = vunpack.c.l.s4 1966171168
    %v2282 = vunpack.c.0.s8 %v2281
    %v2283 = vlaneseq
    %v2284 = vshrl.u32 %v2283, 7
    %v2285 = vsub.s32 %v2282, %v2284
    %v2286 = vrot.slane %v2279, %v2285
    %v2287 = vcombine.high %v2286, %v2286
    %v2289 = vunpack.c.l.s4 1966171168
    %v2290 = vunpack.c.0.s8 %v2289
    %v2291 = vlaneseq
    %v2292 = vshrl.u32 %v2291, 7
    %v2293 = vsub.s32 %v2290, %v2292
    %v2294 = vrot.slane %v2286, %v2293
    %v2296 = vunpack.c.l.s4 1966171168
    %v2297 = vunpack.c.0.s8 %v2296
    %v2298 = vlaneseq
    %v2299 = vshrl.u32 %v2298, 7
    %v2300 = vsub.s32 %v2297, %v2299
    %v2301 = vrot.slane %v2287, %v2300
    %v2304 = vadd.f32 %v2100, %v2294
    %v2305 = vadd.f32 %v2101, %v2301
    %s2306 = sld [smem:[#allocation2 + $0x42]]
    %v2307 = vstv %s2306
    %v2308 = vmul.f32 %v2238, %v2307
    %v2309 = vmul.f32 %v2239, %v2307
    %v2312 = vcombine.low %v2308, %v2309
    %v2314 = vunpack.c.l.s4 1966171168
    %v2315 = vunpack.c.0.s8 %v2314
    %v2316 = vlaneseq
    %v2317 = vshrl.u32 %v2316, 7
    %v2318 = vsub.s32 %v2315, %v2317
    %v2319 = vrot.slane %v2312, %v2318
    %v2320 = vcombine.high %v2319, %v2319
    %v2322 = vunpack.c.l.s4 1966171168
    %v2323 = vunpack.c.0.s8 %v2322
    %v2324 = vlaneseq
    %v2325 = vshrl.u32 %v2324, 7
    %v2326 = vsub.s32 %v2323, %v2325
    %v2327 = vrot.slane %v2319, %v2326
    %v2329 = vunpack.c.l.s4 1966171168
    %v2330 = vunpack.c.0.s8 %v2329
    %v2331 = vlaneseq
    %v2332 = vshrl.u32 %v2331, 7
    %v2333 = vsub.s32 %v2330, %v2332
    %v2334 = vrot.slane %v2320, %v2333
    %v2337 = vadd.f32 %v2133, %v2327
    %v2338 = vadd.f32 %v2134, %v2334
    %s2339 = sld [smem:[#allocation2 + $0x5d]]
    %v2340 = vstv %s2339
    %v2341 = vmul.f32 %v2238, %v2340
    %v2342 = vmul.f32 %v2239, %v2340
    %v2345 = vcombine.low %v2341, %v2342
    %v2347 = vunpack.c.l.s4 1966171168
    %v2348 = vunpack.c.0.s8 %v2347
    %v2349 = vlaneseq
    %v2350 = vshrl.u32 %v2349, 7
    %v2351 = vsub.s32 %v2348, %v2350
    %v2352 = vrot.slane %v2345, %v2351
    %v2353 = vcombine.high %v2352, %v2352
    %v2355 = vunpack.c.l.s4 1966171168
    %v2356 = vunpack.c.0.s8 %v2355
    %v2357 = vlaneseq
    %v2358 = vshrl.u32 %v2357, 7
    %v2359 = vsub.s32 %v2356, %v2358
    %v2360 = vrot.slane %v2352, %v2359
    %v2362 = vunpack.c.l.s4 1966171168
    %v2363 = vunpack.c.0.s8 %v2362
    %v2364 = vlaneseq
    %v2365 = vshrl.u32 %v2364, 7
    %v2366 = vsub.s32 %v2363, %v2365
    %v2367 = vrot.slane %v2353, %v2366
    %v2370 = vadd.f32 %v2166, %v2360
    %v2371 = vadd.f32 %v2167, %v2367
    %s2372 = sld [smem:[#allocation2 + $0x78]]
    %v2373 = vstv %s2372
    %v2374 = vmul.f32 %v2238, %v2373
    %v2375 = vmul.f32 %v2239, %v2373
    %v2378 = vcombine.low %v2374, %v2375
    %v2380 = vunpack.c.l.s4 1966171168
    %v2381 = vunpack.c.0.s8 %v2380
    %v2382 = vlaneseq
    %v2383 = vshrl.u32 %v2382, 7
    %v2384 = vsub.s32 %v2381, %v2383
    %v2385 = vrot.slane %v2378, %v2384
    %v2386 = vcombine.high %v2385, %v2385
    %v2388 = vunpack.c.l.s4 1966171168
    %v2389 = vunpack.c.0.s8 %v2388
    %v2390 = vlaneseq
    %v2391 = vshrl.u32 %v2390, 7
    %v2392 = vsub.s32 %v2389, %v2391
    %v2393 = vrot.slane %v2385, %v2392
    %v2395 = vunpack.c.l.s4 1966171168
    %v2396 = vunpack.c.0.s8 %v2395
    %v2397 = vlaneseq
    %v2398 = vshrl.u32 %v2397, 7
    %v2399 = vsub.s32 %v2396, %v2398
    %v2400 = vrot.slane %v2386, %v2399
    %v2403 = vadd.f32 %v2199, %v2393
    %v2404 = vadd.f32 %v2200, %v2400
    %s2405 = sld [smem:[#allocation2 + $0x93]]
    %v2406 = vstv %s2405
    %v2407 = vmul.f32 %v2238, %v2406
    %v2408 = vmul.f32 %v2239, %v2406
    %v2411 = vcombine.low %v2407, %v2408
    %v2413 = vunpack.c.l.s4 1966171168
    %v2414 = vunpack.c.0.s8 %v2413
    %v2415 = vlaneseq
    %v2416 = vshrl.u32 %v2415, 7
    %v2417 = vsub.s32 %v2414, %v2416
    %v2418 = vrot.slane %v2411, %v2417
    %v2419 = vcombine.high %v2418, %v2418
    %v2421 = vunpack.c.l.s4 1966171168
    %v2422 = vunpack.c.0.s8 %v2421
    %v2423 = vlaneseq
    %v2424 = vshrl.u32 %v2423, 7
    %v2425 = vsub.s32 %v2422, %v2424
    %v2426 = vrot.slane %v2418, %v2425
    %v2428 = vunpack.c.l.s4 1966171168
    %v2429 = vunpack.c.0.s8 %v2428
    %v2430 = vlaneseq
    %v2431 = vshrl.u32 %v2430, 7
    %v2432 = vsub.s32 %v2429, %v2431
    %v2433 = vrot.slane %v2419, %v2432
    %v2436 = vadd.f32 %v2232, %v2426
    %v2437 = vadd.f32 %v2233, %v2433
    %2438 = vrot.lane.b32.xlu0 %v1816, 111
    %v2439 = vpop.permute.xlu0 %2438
    %2440 = vrot.lane.b32.xlu0 %v1823, 111
    %v2441 = vpop.permute.xlu0 %2440
    %v2442 = vsel %vm738, %v2439, %v2441
    %v2443 = vsel %vm738, %v2441, %v2439
    %s2444 = sld [smem:[#allocation2 + $0xd]]
    %v2445 = vstv %s2444
    %v2446 = vmul.f32 %v2442, %v2445
    %v2447 = vmul.f32 %v2443, %v2445
    %v2450 = vcombine.low %v2446, %v2447
    %v2452 = vunpack.c.l.s4 1966171168
    %v2453 = vunpack.c.0.s8 %v2452
    %v2454 = vlaneseq
    %v2455 = vshrl.u32 %v2454, 7
    %v2456 = vsub.s32 %v2453, %v2455
    %v2457 = vrot.slane %v2450, %v2456
    %v2458 = vcombine.high %v2457, %v2457
    %v2460 = vunpack.c.l.s4 1966171168
    %v2461 = vunpack.c.0.s8 %v2460
    %v2462 = vlaneseq
    %v2463 = vshrl.u32 %v2462, 7
    %v2464 = vsub.s32 %v2461, %v2463
    %v2465 = vrot.slane %v2457, %v2464
    %v2467 = vunpack.c.l.s4 1966171168
    %v2468 = vunpack.c.0.s8 %v2467
    %v2469 = vlaneseq
    %v2470 = vshrl.u32 %v2469, 7
    %v2471 = vsub.s32 %v2468, %v2470
    %v2472 = vrot.slane %v2458, %v2471
    %v2475 = vadd.f32 %v2271, %v2465
    %v2476 = vadd.f32 %v2272, %v2472
    %s2477 = sld [smem:[#allocation2 + $0x28]]
    %v2478 = vstv %s2477
    %v2479 = vmul.f32 %v2442, %v2478
    %v2480 = vmul.f32 %v2443, %v2478
    %v2483 = vcombine.low %v2479, %v2480
    %v2485 = vunpack.c.l.s4 1966171168
    %v2486 = vunpack.c.0.s8 %v2485
    %v2487 = vlaneseq
    %v2488 = vshrl.u32 %v2487, 7
    %v2489 = vsub.s32 %v2486, %v2488
    %v2490 = vrot.slane %v2483, %v2489
    %v2491 = vcombine.high %v2490, %v2490
    %v2493 = vunpack.c.l.s4 1966171168
    %v2494 = vunpack.c.0.s8 %v2493
    %v2495 = vlaneseq
    %v2496 = vshrl.u32 %v2495, 7
    %v2497 = vsub.s32 %v2494, %v2496
    %v2498 = vrot.slane %v2490, %v2497
    %v2500 = vunpack.c.l.s4 1966171168
    %v2501 = vunpack.c.0.s8 %v2500
    %v2502 = vlaneseq
    %v2503 = vshrl.u32 %v2502, 7
    %v2504 = vsub.s32 %v2501, %v2503
    %v2505 = vrot.slane %v2491, %v2504
    %v2508 = vadd.f32 %v2304, %v2498
    %v2509 = vadd.f32 %v2305, %v2505
    %s2510 = sld [smem:[#allocation2 + $0x43]]
    %v2511 = vstv %s2510
    %v2512 = vmul.f32 %v2442, %v2511
    %v2513 = vmul.f32 %v2443, %v2511
    %v2516 = vcombine.low %v2512, %v2513
    %v2518 = vunpack.c.l.s4 1966171168
    %v2519 = vunpack.c.0.s8 %v2518
    %v2520 = vlaneseq
    %v2521 = vshrl.u32 %v2520, 7
    %v2522 = vsub.s32 %v2519, %v2521
    %v2523 = vrot.slane %v2516, %v2522
    %v2524 = vcombine.high %v2523, %v2523
    %v2526 = vunpack.c.l.s4 1966171168
    %v2527 = vunpack.c.0.s8 %v2526
    %v2528 = vlaneseq
    %v2529 = vshrl.u32 %v2528, 7
    %v2530 = vsub.s32 %v2527, %v2529
    %v2531 = vrot.slane %v2523, %v2530
    %v2533 = vunpack.c.l.s4 1966171168
    %v2534 = vunpack.c.0.s8 %v2533
    %v2535 = vlaneseq
    %v2536 = vshrl.u32 %v2535, 7
    %v2537 = vsub.s32 %v2534, %v2536
    %v2538 = vrot.slane %v2524, %v2537
    %v2541 = vadd.f32 %v2337, %v2531
    %v2542 = vadd.f32 %v2338, %v2538
    %s2543 = sld [smem:[#allocation2 + $0x5e]]
    %v2544 = vstv %s2543
    %v2545 = vmul.f32 %v2442, %v2544
    %v2546 = vmul.f32 %v2443, %v2544
    %v2549 = vcombine.low %v2545, %v2546
    %v2551 = vunpack.c.l.s4 1966171168
    %v2552 = vunpack.c.0.s8 %v2551
    %v2553 = vlaneseq
    %v2554 = vshrl.u32 %v2553, 7
    %v2555 = vsub.s32 %v2552, %v2554
    %v2556 = vrot.slane %v2549, %v2555
    %v2557 = vcombine.high %v2556, %v2556
    %v2559 = vunpack.c.l.s4 1966171168
    %v2560 = vunpack.c.0.s8 %v2559
    %v2561 = vlaneseq
    %v2562 = vshrl.u32 %v2561, 7
    %v2563 = vsub.s32 %v2560, %v2562
    %v2564 = vrot.slane %v2556, %v2563
    %v2566 = vunpack.c.l.s4 1966171168
    %v2567 = vunpack.c.0.s8 %v2566
    %v2568 = vlaneseq
    %v2569 = vshrl.u32 %v2568, 7
    %v2570 = vsub.s32 %v2567, %v2569
    %v2571 = vrot.slane %v2557, %v2570
    %v2574 = vadd.f32 %v2370, %v2564
    %v2575 = vadd.f32 %v2371, %v2571
    %s2576 = sld [smem:[#allocation2 + $0x79]]
    %v2577 = vstv %s2576
    %v2578 = vmul.f32 %v2442, %v2577
    %v2579 = vmul.f32 %v2443, %v2577
    %v2582 = vcombine.low %v2578, %v2579
    %v2584 = vunpack.c.l.s4 1966171168
    %v2585 = vunpack.c.0.s8 %v2584
    %v2586 = vlaneseq
    %v2587 = vshrl.u32 %v2586, 7
    %v2588 = vsub.s32 %v2585, %v2587
    %v2589 = vrot.slane %v2582, %v2588
    %v2590 = vcombine.high %v2589, %v2589
    %v2592 = vunpack.c.l.s4 1966171168
    %v2593 = vunpack.c.0.s8 %v2592
    %v2594 = vlaneseq
    %v2595 = vshrl.u32 %v2594, 7
    %v2596 = vsub.s32 %v2593, %v2595
    %v2597 = vrot.slane %v2589, %v2596
    %v2599 = vunpack.c.l.s4 1966171168
    %v2600 = vunpack.c.0.s8 %v2599
    %v2601 = vlaneseq
    %v2602 = vshrl.u32 %v2601, 7
    %v2603 = vsub.s32 %v2600, %v2602
    %v2604 = vrot.slane %v2590, %v2603
    %v2607 = vadd.f32 %v2403, %v2597
    %v2608 = vadd.f32 %v2404, %v2604
    %s2609 = sld [smem:[#allocation2 + $0x94]]
    %v2610 = vstv %s2609
    %v2611 = vmul.f32 %v2442, %v2610
    %v2612 = vmul.f32 %v2443, %v2610
    %v2615 = vcombine.low %v2611, %v2612
    %v2617 = vunpack.c.l.s4 1966171168
    %v2618 = vunpack.c.0.s8 %v2617
    %v2619 = vlaneseq
    %v2620 = vshrl.u32 %v2619, 7
    %v2621 = vsub.s32 %v2618, %v2620
    %v2622 = vrot.slane %v2615, %v2621
    %v2623 = vcombine.high %v2622, %v2622
    %v2625 = vunpack.c.l.s4 1966171168
    %v2626 = vunpack.c.0.s8 %v2625
    %v2627 = vlaneseq
    %v2628 = vshrl.u32 %v2627, 7
    %v2629 = vsub.s32 %v2626, %v2628
    %v2630 = vrot.slane %v2622, %v2629
    %v2632 = vunpack.c.l.s4 1966171168
    %v2633 = vunpack.c.0.s8 %v2632
    %v2634 = vlaneseq
    %v2635 = vshrl.u32 %v2634, 7
    %v2636 = vsub.s32 %v2633, %v2635
    %v2637 = vrot.slane %v2623, %v2636
    %v2640 = vadd.f32 %v2436, %v2630
    %v2641 = vadd.f32 %v2437, %v2637
    %2642 = vrot.lane.b32.xlu0 %v1816, 110
    %v2643 = vpop.permute.xlu0 %2642
    %2644 = vrot.lane.b32.xlu0 %v1823, 110
    %v2645 = vpop.permute.xlu0 %2644
    %v2646 = vsel %vm943, %v2643, %v2645
    %v2647 = vsel %vm943, %v2645, %v2643
    %s2648 = sld [smem:[#allocation2 + $0xe]]
    %v2649 = vstv %s2648
    %v2650 = vmul.f32 %v2646, %v2649
    %v2651 = vmul.f32 %v2647, %v2649
    %v2654 = vcombine.low %v2650, %v2651
    %v2656 = vunpack.c.l.s4 1966171168
    %v2657 = vunpack.c.0.s8 %v2656
    %v2658 = vlaneseq
    %v2659 = vshrl.u32 %v2658, 7
    %v2660 = vsub.s32 %v2657, %v2659
    %v2661 = vrot.slane %v2654, %v2660
    %v2662 = vcombine.high %v2661, %v2661
    %v2664 = vunpack.c.l.s4 1966171168
    %v2665 = vunpack.c.0.s8 %v2664
    %v2666 = vlaneseq
    %v2667 = vshrl.u32 %v2666, 7
    %v2668 = vsub.s32 %v2665, %v2667
    %v2669 = vrot.slane %v2661, %v2668
    %v2671 = vunpack.c.l.s4 1966171168
    %v2672 = vunpack.c.0.s8 %v2671
    %v2673 = vlaneseq
    %v2674 = vshrl.u32 %v2673, 7
    %v2675 = vsub.s32 %v2672, %v2674
    %v2676 = vrot.slane %v2662, %v2675
    %v2679 = vadd.f32 %v2475, %v2669
    %v2680 = vadd.f32 %v2476, %v2676
    %s2681 = sld [smem:[#allocation2 + $0x29]]
    %v2682 = vstv %s2681
    %v2683 = vmul.f32 %v2646, %v2682
    %v2684 = vmul.f32 %v2647, %v2682
    %v2687 = vcombine.low %v2683, %v2684
    %v2689 = vunpack.c.l.s4 1966171168
    %v2690 = vunpack.c.0.s8 %v2689
    %v2691 = vlaneseq
    %v2692 = vshrl.u32 %v2691, 7
    %v2693 = vsub.s32 %v2690, %v2692
    %v2694 = vrot.slane %v2687, %v2693
    %v2695 = vcombine.high %v2694, %v2694
    %v2697 = vunpack.c.l.s4 1966171168
    %v2698 = vunpack.c.0.s8 %v2697
    %v2699 = vlaneseq
    %v2700 = vshrl.u32 %v2699, 7
    %v2701 = vsub.s32 %v2698, %v2700
    %v2702 = vrot.slane %v2694, %v2701
    %v2704 = vunpack.c.l.s4 1966171168
    %v2705 = vunpack.c.0.s8 %v2704
    %v2706 = vlaneseq
    %v2707 = vshrl.u32 %v2706, 7
    %v2708 = vsub.s32 %v2705, %v2707
    %v2709 = vrot.slane %v2695, %v2708
    %v2712 = vadd.f32 %v2508, %v2702
    %v2713 = vadd.f32 %v2509, %v2709
    %s2714 = sld [smem:[#allocation2 + $0x44]]
    %v2715 = vstv %s2714
    %v2716 = vmul.f32 %v2646, %v2715
    %v2717 = vmul.f32 %v2647, %v2715
    %v2720 = vcombine.low %v2716, %v2717
    %v2722 = vunpack.c.l.s4 1966171168
    %v2723 = vunpack.c.0.s8 %v2722
    %v2724 = vlaneseq
    %v2725 = vshrl.u32 %v2724, 7
    %v2726 = vsub.s32 %v2723, %v2725
    %v2727 = vrot.slane %v2720, %v2726
    %v2728 = vcombine.high %v2727, %v2727
    %v2730 = vunpack.c.l.s4 1966171168
    %v2731 = vunpack.c.0.s8 %v2730
    %v2732 = vlaneseq
    %v2733 = vshrl.u32 %v2732, 7
    %v2734 = vsub.s32 %v2731, %v2733
    %v2735 = vrot.slane %v2727, %v2734
    %v2737 = vunpack.c.l.s4 1966171168
    %v2738 = vunpack.c.0.s8 %v2737
    %v2739 = vlaneseq
    %v2740 = vshrl.u32 %v2739, 7
    %v2741 = vsub.s32 %v2738, %v2740
    %v2742 = vrot.slane %v2728, %v2741
    %v2745 = vadd.f32 %v2541, %v2735
    %v2746 = vadd.f32 %v2542, %v2742
    %s2747 = sld [smem:[#allocation2 + $0x5f]]
    %v2748 = vstv %s2747
    %v2749 = vmul.f32 %v2646, %v2748
    %v2750 = vmul.f32 %v2647, %v2748
    %v2753 = vcombine.low %v2749, %v2750
    %v2755 = vunpack.c.l.s4 1966171168
    %v2756 = vunpack.c.0.s8 %v2755
    %v2757 = vlaneseq
    %v2758 = vshrl.u32 %v2757, 7
    %v2759 = vsub.s32 %v2756, %v2758
    %v2760 = vrot.slane %v2753, %v2759
    %v2761 = vcombine.high %v2760, %v2760
    %v2763 = vunpack.c.l.s4 1966171168
    %v2764 = vunpack.c.0.s8 %v2763
    %v2765 = vlaneseq
    %v2766 = vshrl.u32 %v2765, 7
    %v2767 = vsub.s32 %v2764, %v2766
    %v2768 = vrot.slane %v2760, %v2767
    %v2770 = vunpack.c.l.s4 1966171168
    %v2771 = vunpack.c.0.s8 %v2770
    %v2772 = vlaneseq
    %v2773 = vshrl.u32 %v2772, 7
    %v2774 = vsub.s32 %v2771, %v2773
    %v2775 = vrot.slane %v2761, %v2774
    %v2778 = vadd.f32 %v2574, %v2768
    %v2779 = vadd.f32 %v2575, %v2775
    %s2780 = sld [smem:[#allocation2 + $0x7a]]
    %v2781 = vstv %s2780
    %v2782 = vmul.f32 %v2646, %v2781
    %v2783 = vmul.f32 %v2647, %v2781
    %v2786 = vcombine.low %v2782, %v2783
    %v2788 = vunpack.c.l.s4 1966171168
    %v2789 = vunpack.c.0.s8 %v2788
    %v2790 = vlaneseq
    %v2791 = vshrl.u32 %v2790, 7
    %v2792 = vsub.s32 %v2789, %v2791
    %v2793 = vrot.slane %v2786, %v2792
    %v2794 = vcombine.high %v2793, %v2793
    %v2796 = vunpack.c.l.s4 1966171168
    %v2797 = vunpack.c.0.s8 %v2796
    %v2798 = vlaneseq
    %v2799 = vshrl.u32 %v2798, 7
    %v2800 = vsub.s32 %v2797, %v2799
    %v2801 = vrot.slane %v2793, %v2800
    %v2803 = vunpack.c.l.s4 1966171168
    %v2804 = vunpack.c.0.s8 %v2803
    %v2805 = vlaneseq
    %v2806 = vshrl.u32 %v2805, 7
    %v2807 = vsub.s32 %v2804, %v2806
    %v2808 = vrot.slane %v2794, %v2807
    %v2811 = vadd.f32 %v2607, %v2801
    %v2812 = vadd.f32 %v2608, %v2808
    %s2813 = sld [smem:[#allocation2 + $0x95]]
    %v2814 = vstv %s2813
    %v2815 = vmul.f32 %v2646, %v2814
    %v2816 = vmul.f32 %v2647, %v2814
    %v2819 = vcombine.low %v2815, %v2816
    %v2821 = vunpack.c.l.s4 1966171168
    %v2822 = vunpack.c.0.s8 %v2821
    %v2823 = vlaneseq
    %v2824 = vshrl.u32 %v2823, 7
    %v2825 = vsub.s32 %v2822, %v2824
    %v2826 = vrot.slane %v2819, %v2825
    %v2827 = vcombine.high %v2826, %v2826
    %v2829 = vunpack.c.l.s4 1966171168
    %v2830 = vunpack.c.0.s8 %v2829
    %v2831 = vlaneseq
    %v2832 = vshrl.u32 %v2831, 7
    %v2833 = vsub.s32 %v2830, %v2832
    %v2834 = vrot.slane %v2826, %v2833
    %v2836 = vunpack.c.l.s4 1966171168
    %v2837 = vunpack.c.0.s8 %v2836
    %v2838 = vlaneseq
    %v2839 = vshrl.u32 %v2838, 7
    %v2840 = vsub.s32 %v2837, %v2839
    %v2841 = vrot.slane %v2827, %v2840
    %v2844 = vadd.f32 %v2640, %v2834
    %v2845 = vadd.f32 %v2641, %v2841
    %2846 = vrot.lane.b32.xlu0 %v1816, 96
    %v2847 = vpop.permute.xlu0 %2846
    %2848 = vrot.lane.b32.xlu0 %v1823, 96
    %v2849 = vpop.permute.xlu0 %2848
    %v2850 = vsel %vm1148, %v2847, %v2849
    %v2851 = vsel %vm1148, %v2849, %v2847
    %s2852 = sld [smem:[#allocation2 + $0xf]]
    %v2853 = vstv %s2852
    %v2854 = vmul.f32 %v2850, %v2853
    %v2855 = vmul.f32 %v2851, %v2853
    %v2858 = vcombine.low %v2854, %v2855
    %v2860 = vunpack.c.l.s4 1966171168
    %v2861 = vunpack.c.0.s8 %v2860
    %v2862 = vlaneseq
    %v2863 = vshrl.u32 %v2862, 7
    %v2864 = vsub.s32 %v2861, %v2863
    %v2865 = vrot.slane %v2858, %v2864
    %v2866 = vcombine.high %v2865, %v2865
    %v2868 = vunpack.c.l.s4 1966171168
    %v2869 = vunpack.c.0.s8 %v2868
    %v2870 = vlaneseq
    %v2871 = vshrl.u32 %v2870, 7
    %v2872 = vsub.s32 %v2869, %v2871
    %v2873 = vrot.slane %v2865, %v2872
    %v2875 = vunpack.c.l.s4 1966171168
    %v2876 = vunpack.c.0.s8 %v2875
    %v2877 = vlaneseq
    %v2878 = vshrl.u32 %v2877, 7
    %v2879 = vsub.s32 %v2876, %v2878
    %v2880 = vrot.slane %v2866, %v2879
    %v2883 = vadd.f32 %v2679, %v2873
    %v2884 = vadd.f32 %v2680, %v2880
    %s2885 = sld [smem:[#allocation2 + $0x2a]]
    %v2886 = vstv %s2885
    %v2887 = vmul.f32 %v2850, %v2886
    %v2888 = vmul.f32 %v2851, %v2886
    %v2891 = vcombine.low %v2887, %v2888
    %v2893 = vunpack.c.l.s4 1966171168
    %v2894 = vunpack.c.0.s8 %v2893
    %v2895 = vlaneseq
    %v2896 = vshrl.u32 %v2895, 7
    %v2897 = vsub.s32 %v2894, %v2896
    %v2898 = vrot.slane %v2891, %v2897
    %v2899 = vcombine.high %v2898, %v2898
    %v2901 = vunpack.c.l.s4 1966171168
    %v2902 = vunpack.c.0.s8 %v2901
    %v2903 = vlaneseq
    %v2904 = vshrl.u32 %v2903, 7
    %v2905 = vsub.s32 %v2902, %v2904
    %v2906 = vrot.slane %v2898, %v2905
    %v2908 = vunpack.c.l.s4 1966171168
    %v2909 = vunpack.c.0.s8 %v2908
    %v2910 = vlaneseq
    %v2911 = vshrl.u32 %v2910, 7
    %v2912 = vsub.s32 %v2909, %v2911
    %v2913 = vrot.slane %v2899, %v2912
    %v2916 = vadd.f32 %v2712, %v2906
    %v2917 = vadd.f32 %v2713, %v2913
    %s2918 = sld [smem:[#allocation2 + $0x45]]
    %v2919 = vstv %s2918
    %v2920 = vmul.f32 %v2850, %v2919
    %v2921 = vmul.f32 %v2851, %v2919
    %v2924 = vcombine.low %v2920, %v2921
    %v2926 = vunpack.c.l.s4 1966171168
    %v2927 = vunpack.c.0.s8 %v2926
    %v2928 = vlaneseq
    %v2929 = vshrl.u32 %v2928, 7
    %v2930 = vsub.s32 %v2927, %v2929
    %v2931 = vrot.slane %v2924, %v2930
    %v2932 = vcombine.high %v2931, %v2931
    %v2934 = vunpack.c.l.s4 1966171168
    %v2935 = vunpack.c.0.s8 %v2934
    %v2936 = vlaneseq
    %v2937 = vshrl.u32 %v2936, 7
    %v2938 = vsub.s32 %v2935, %v2937
    %v2939 = vrot.slane %v2931, %v2938
    %v2941 = vunpack.c.l.s4 1966171168
    %v2942 = vunpack.c.0.s8 %v2941
    %v2943 = vlaneseq
    %v2944 = vshrl.u32 %v2943, 7
    %v2945 = vsub.s32 %v2942, %v2944
    %v2946 = vrot.slane %v2932, %v2945
    %v2949 = vadd.f32 %v2745, %v2939
    %v2950 = vadd.f32 %v2746, %v2946
    %s2951 = sld [smem:[#allocation2 + $0x60]]
    %v2952 = vstv %s2951
    %v2953 = vmul.f32 %v2850, %v2952
    %v2954 = vmul.f32 %v2851, %v2952
    %v2957 = vcombine.low %v2953, %v2954
    %v2959 = vunpack.c.l.s4 1966171168
    %v2960 = vunpack.c.0.s8 %v2959
    %v2961 = vlaneseq
    %v2962 = vshrl.u32 %v2961, 7
    %v2963 = vsub.s32 %v2960, %v2962
    %v2964 = vrot.slane %v2957, %v2963
    %v2965 = vcombine.high %v2964, %v2964
    %v2967 = vunpack.c.l.s4 1966171168
    %v2968 = vunpack.c.0.s8 %v2967
    %v2969 = vlaneseq
    %v2970 = vshrl.u32 %v2969, 7
    %v2971 = vsub.s32 %v2968, %v2970
    %v2972 = vrot.slane %v2964, %v2971
    %v2974 = vunpack.c.l.s4 1966171168
    %v2975 = vunpack.c.0.s8 %v2974
    %v2976 = vlaneseq
    %v2977 = vshrl.u32 %v2976, 7
    %v2978 = vsub.s32 %v2975, %v2977
    %v2979 = vrot.slane %v2965, %v2978
    %v2982 = vadd.f32 %v2778, %v2972
    %v2983 = vadd.f32 %v2779, %v2979
    %s2984 = sld [smem:[#allocation2 + $0x7b]]
    %v2985 = vstv %s2984
    %v2986 = vmul.f32 %v2850, %v2985
    %v2987 = vmul.f32 %v2851, %v2985
    %v2990 = vcombine.low %v2986, %v2987
    %v2992 = vunpack.c.l.s4 1966171168
    %v2993 = vunpack.c.0.s8 %v2992
    %v2994 = vlaneseq
    %v2995 = vshrl.u32 %v2994, 7
    %v2996 = vsub.s32 %v2993, %v2995
    %v2997 = vrot.slane %v2990, %v2996
    %v2998 = vcombine.high %v2997, %v2997
    %v3000 = vunpack.c.l.s4 1966171168
    %v3001 = vunpack.c.0.s8 %v3000
    %v3002 = vlaneseq
    %v3003 = vshrl.u32 %v3002, 7
    %v3004 = vsub.s32 %v3001, %v3003
    %v3005 = vrot.slane %v2997, %v3004
    %v3007 = vunpack.c.l.s4 1966171168
    %v3008 = vunpack.c.0.s8 %v3007
    %v3009 = vlaneseq
    %v3010 = vshrl.u32 %v3009, 7
    %v3011 = vsub.s32 %v3008, %v3010
    %v3012 = vrot.slane %v2998, %v3011
    %v3015 = vadd.f32 %v2811, %v3005
    %v3016 = vadd.f32 %v2812, %v3012
    %s3017 = sld [smem:[#allocation2 + $0x96]]
    %v3018 = vstv %s3017
    %v3019 = vmul.f32 %v2850, %v3018
    %v3020 = vmul.f32 %v2851, %v3018
    %v3023 = vcombine.low %v3019, %v3020
    %v3025 = vunpack.c.l.s4 1966171168
    %v3026 = vunpack.c.0.s8 %v3025
    %v3027 = vlaneseq
    %v3028 = vshrl.u32 %v3027, 7
    %v3029 = vsub.s32 %v3026, %v3028
    %v3030 = vrot.slane %v3023, %v3029
    %v3031 = vcombine.high %v3030, %v3030
    %v3033 = vunpack.c.l.s4 1966171168
    %v3034 = vunpack.c.0.s8 %v3033
    %v3035 = vlaneseq
    %v3036 = vshrl.u32 %v3035, 7
    %v3037 = vsub.s32 %v3034, %v3036
    %v3038 = vrot.slane %v3030, %v3037
    %v3040 = vunpack.c.l.s4 1966171168
    %v3041 = vunpack.c.0.s8 %v3040
    %v3042 = vlaneseq
    %v3043 = vshrl.u32 %v3042, 7
    %v3044 = vsub.s32 %v3041, %v3043
    %v3045 = vrot.slane %v3031, %v3044
    %v3048 = vadd.f32 %v2844, %v3038
    %v3049 = vadd.f32 %v2845, %v3045
    %3050 = vrot.lane.b32.xlu0 %v1816, 95
    %v3051 = vpop.permute.xlu0 %3050
    %3052 = vrot.lane.b32.xlu0 %v1823, 95
    %v3053 = vpop.permute.xlu0 %3052
    %v3054 = vsel %vm1353, %v3051, %v3053
    %v3055 = vsel %vm1353, %v3053, %v3051
    %s3056 = sld [smem:[#allocation2 + $0x10]]
    %v3057 = vstv %s3056
    %v3058 = vmul.f32 %v3054, %v3057
    %v3059 = vmul.f32 %v3055, %v3057
    %v3062 = vcombine.low %v3058, %v3059
    %v3064 = vunpack.c.l.s4 1966171168
    %v3065 = vunpack.c.0.s8 %v3064
    %v3066 = vlaneseq
    %v3067 = vshrl.u32 %v3066, 7
    %v3068 = vsub.s32 %v3065, %v3067
    %v3069 = vrot.slane %v3062, %v3068
    %v3070 = vcombine.high %v3069, %v3069
    %v3072 = vunpack.c.l.s4 1966171168
    %v3073 = vunpack.c.0.s8 %v3072
    %v3074 = vlaneseq
    %v3075 = vshrl.u32 %v3074, 7
    %v3076 = vsub.s32 %v3073, %v3075
    %v3077 = vrot.slane %v3069, %v3076
    %v3079 = vunpack.c.l.s4 1966171168
    %v3080 = vunpack.c.0.s8 %v3079
    %v3081 = vlaneseq
    %v3082 = vshrl.u32 %v3081, 7
    %v3083 = vsub.s32 %v3080, %v3082
    %v3084 = vrot.slane %v3070, %v3083
    %v3087 = vadd.f32 %v2883, %v3077
    %v3088 = vadd.f32 %v2884, %v3084
    %s3089 = sld [smem:[#allocation2 + $0x2b]]
    %v3090 = vstv %s3089
    %v3091 = vmul.f32 %v3054, %v3090
    %v3092 = vmul.f32 %v3055, %v3090
    %v3095 = vcombine.low %v3091, %v3092
    %v3097 = vunpack.c.l.s4 1966171168
    %v3098 = vunpack.c.0.s8 %v3097
    %v3099 = vlaneseq
    %v3100 = vshrl.u32 %v3099, 7
    %v3101 = vsub.s32 %v3098, %v3100
    %v3102 = vrot.slane %v3095, %v3101
    %v3103 = vcombine.high %v3102, %v3102
    %v3105 = vunpack.c.l.s4 1966171168
    %v3106 = vunpack.c.0.s8 %v3105
    %v3107 = vlaneseq
    %v3108 = vshrl.u32 %v3107, 7
    %v3109 = vsub.s32 %v3106, %v3108
    %v3110 = vrot.slane %v3102, %v3109
    %v3112 = vunpack.c.l.s4 1966171168
    %v3113 = vunpack.c.0.s8 %v3112
    %v3114 = vlaneseq
    %v3115 = vshrl.u32 %v3114, 7
    %v3116 = vsub.s32 %v3113, %v3115
    %v3117 = vrot.slane %v3103, %v3116
    %v3120 = vadd.f32 %v2916, %v3110
    %v3121 = vadd.f32 %v2917, %v3117
    %s3122 = sld [smem:[#allocation2 + $0x46]]
    %v3123 = vstv %s3122
    %v3124 = vmul.f32 %v3054, %v3123
    %v3125 = vmul.f32 %v3055, %v3123
    %v3128 = vcombine.low %v3124, %v3125
    %v3130 = vunpack.c.l.s4 1966171168
    %v3131 = vunpack.c.0.s8 %v3130
    %v3132 = vlaneseq
    %v3133 = vshrl.u32 %v3132, 7
    %v3134 = vsub.s32 %v3131, %v3133
    %v3135 = vrot.slane %v3128, %v3134
    %v3136 = vcombine.high %v3135, %v3135
    %v3138 = vunpack.c.l.s4 1966171168
    %v3139 = vunpack.c.0.s8 %v3138
    %v3140 = vlaneseq
    %v3141 = vshrl.u32 %v3140, 7
    %v3142 = vsub.s32 %v3139, %v3141
    %v3143 = vrot.slane %v3135, %v3142
    %v3145 = vunpack.c.l.s4 1966171168
    %v3146 = vunpack.c.0.s8 %v3145
    %v3147 = vlaneseq
    %v3148 = vshrl.u32 %v3147, 7
    %v3149 = vsub.s32 %v3146, %v3148
    %v3150 = vrot.slane %v3136, %v3149
    %v3153 = vadd.f32 %v2949, %v3143
    %v3154 = vadd.f32 %v2950, %v3150
    %s3155 = sld [smem:[#allocation2 + $0x61]]
    %v3156 = vstv %s3155
    %v3157 = vmul.f32 %v3054, %v3156
    %v3158 = vmul.f32 %v3055, %v3156
    %v3161 = vcombine.low %v3157, %v3158
    %v3163 = vunpack.c.l.s4 1966171168
    %v3164 = vunpack.c.0.s8 %v3163
    %v3165 = vlaneseq
    %v3166 = vshrl.u32 %v3165, 7
    %v3167 = vsub.s32 %v3164, %v3166
    %v3168 = vrot.slane %v3161, %v3167
    %v3169 = vcombine.high %v3168, %v3168
    %v3171 = vunpack.c.l.s4 1966171168
    %v3172 = vunpack.c.0.s8 %v3171
    %v3173 = vlaneseq
    %v3174 = vshrl.u32 %v3173, 7
    %v3175 = vsub.s32 %v3172, %v3174
    %v3176 = vrot.slane %v3168, %v3175
    %v3178 = vunpack.c.l.s4 1966171168
    %v3179 = vunpack.c.0.s8 %v3178
    %v3180 = vlaneseq
    %v3181 = vshrl.u32 %v3180, 7
    %v3182 = vsub.s32 %v3179, %v3181
    %v3183 = vrot.slane %v3169, %v3182
    %v3186 = vadd.f32 %v2982, %v3176
    %v3187 = vadd.f32 %v2983, %v3183
    %s3188 = sld [smem:[#allocation2 + $0x7c]]
    %v3189 = vstv %s3188
    %v3190 = vmul.f32 %v3054, %v3189
    %v3191 = vmul.f32 %v3055, %v3189
    %v3194 = vcombine.low %v3190, %v3191
    %v3196 = vunpack.c.l.s4 1966171168
    %v3197 = vunpack.c.0.s8 %v3196
    %v3198 = vlaneseq
    %v3199 = vshrl.u32 %v3198, 7
    %v3200 = vsub.s32 %v3197, %v3199
    %v3201 = vrot.slane %v3194, %v3200
    %v3202 = vcombine.high %v3201, %v3201
    %v3204 = vunpack.c.l.s4 1966171168
    %v3205 = vunpack.c.0.s8 %v3204
    %v3206 = vlaneseq
    %v3207 = vshrl.u32 %v3206, 7
    %v3208 = vsub.s32 %v3205, %v3207
    %v3209 = vrot.slane %v3201, %v3208
    %v3211 = vunpack.c.l.s4 1966171168
    %v3212 = vunpack.c.0.s8 %v3211
    %v3213 = vlaneseq
    %v3214 = vshrl.u32 %v3213, 7
    %v3215 = vsub.s32 %v3212, %v3214
    %v3216 = vrot.slane %v3202, %v3215
    %v3219 = vadd.f32 %v3015, %v3209
    %v3220 = vadd.f32 %v3016, %v3216
    %s3221 = sld [smem:[#allocation2 + $0x97]]
    %v3222 = vstv %s3221
    %v3223 = vmul.f32 %v3054, %v3222
    %v3224 = vmul.f32 %v3055, %v3222
    %v3227 = vcombine.low %v3223, %v3224
    %v3229 = vunpack.c.l.s4 1966171168
    %v3230 = vunpack.c.0.s8 %v3229
    %v3231 = vlaneseq
    %v3232 = vshrl.u32 %v3231, 7
    %v3233 = vsub.s32 %v3230, %v3232
    %v3234 = vrot.slane %v3227, %v3233
    %v3235 = vcombine.high %v3234, %v3234
    %v3237 = vunpack.c.l.s4 1966171168
    %v3238 = vunpack.c.0.s8 %v3237
    %v3239 = vlaneseq
    %v3240 = vshrl.u32 %v3239, 7
    %v3241 = vsub.s32 %v3238, %v3240
    %v3242 = vrot.slane %v3234, %v3241
    %v3244 = vunpack.c.l.s4 1966171168
    %v3245 = vunpack.c.0.s8 %v3244
    %v3246 = vlaneseq
    %v3247 = vshrl.u32 %v3246, 7
    %v3248 = vsub.s32 %v3245, %v3247
    %v3249 = vrot.slane %v3235, %v3248
    %v3252 = vadd.f32 %v3048, %v3242
    %v3253 = vadd.f32 %v3049, %v3249
    %3254 = vrot.lane.b32.xlu0 %v1816, 94
    %v3255 = vpop.permute.xlu0 %3254
    %3256 = vrot.lane.b32.xlu0 %v1823, 94
    %v3257 = vpop.permute.xlu0 %3256
    %v3258 = vsel %vm1558, %v3255, %v3257
    %v3259 = vsel %vm1558, %v3257, %v3255
    %s3260 = sld [smem:[#allocation2 + $0x11]]
    %v3261 = vstv %s3260
    %v3262 = vmul.f32 %v3258, %v3261
    %v3263 = vmul.f32 %v3259, %v3261
    %v3266 = vcombine.low %v3262, %v3263
    %v3268 = vunpack.c.l.s4 1966171168
    %v3269 = vunpack.c.0.s8 %v3268
    %v3270 = vlaneseq
    %v3271 = vshrl.u32 %v3270, 7
    %v3272 = vsub.s32 %v3269, %v3271
    %v3273 = vrot.slane %v3266, %v3272
    %v3274 = vcombine.high %v3273, %v3273
    %v3276 = vunpack.c.l.s4 1966171168
    %v3277 = vunpack.c.0.s8 %v3276
    %v3278 = vlaneseq
    %v3279 = vshrl.u32 %v3278, 7
    %v3280 = vsub.s32 %v3277, %v3279
    %v3281 = vrot.slane %v3273, %v3280
    %v3283 = vunpack.c.l.s4 1966171168
    %v3284 = vunpack.c.0.s8 %v3283
    %v3285 = vlaneseq
    %v3286 = vshrl.u32 %v3285, 7
    %v3287 = vsub.s32 %v3284, %v3286
    %v3288 = vrot.slane %v3274, %v3287
    %v3291 = vadd.f32 %v3087, %v3281
    %v3292 = vadd.f32 %v3088, %v3288
    %s3293 = sld [smem:[#allocation2 + $0x2c]]
    %v3294 = vstv %s3293
    %v3295 = vmul.f32 %v3258, %v3294
    %v3296 = vmul.f32 %v3259, %v3294
    %v3299 = vcombine.low %v3295, %v3296
    %v3301 = vunpack.c.l.s4 1966171168
    %v3302 = vunpack.c.0.s8 %v3301
    %v3303 = vlaneseq
    %v3304 = vshrl.u32 %v3303, 7
    %v3305 = vsub.s32 %v3302, %v3304
    %v3306 = vrot.slane %v3299, %v3305
    %v3307 = vcombine.high %v3306, %v3306
    %v3309 = vunpack.c.l.s4 1966171168
    %v3310 = vunpack.c.0.s8 %v3309
    %v3311 = vlaneseq
    %v3312 = vshrl.u32 %v3311, 7
    %v3313 = vsub.s32 %v3310, %v3312
    %v3314 = vrot.slane %v3306, %v3313
    %v3316 = vunpack.c.l.s4 1966171168
    %v3317 = vunpack.c.0.s8 %v3316
    %v3318 = vlaneseq
    %v3319 = vshrl.u32 %v3318, 7
    %v3320 = vsub.s32 %v3317, %v3319
    %v3321 = vrot.slane %v3307, %v3320
    %v3324 = vadd.f32 %v3120, %v3314
    %v3325 = vadd.f32 %v3121, %v3321
    %s3326 = sld [smem:[#allocation2 + $0x47]]
    %v3327 = vstv %s3326
    %v3328 = vmul.f32 %v3258, %v3327
    %v3329 = vmul.f32 %v3259, %v3327
    %v3332 = vcombine.low %v3328, %v3329
    %v3334 = vunpack.c.l.s4 1966171168
    %v3335 = vunpack.c.0.s8 %v3334
    %v3336 = vlaneseq
    %v3337 = vshrl.u32 %v3336, 7
    %v3338 = vsub.s32 %v3335, %v3337
    %v3339 = vrot.slane %v3332, %v3338
    %v3340 = vcombine.high %v3339, %v3339
    %v3342 = vunpack.c.l.s4 1966171168
    %v3343 = vunpack.c.0.s8 %v3342
    %v3344 = vlaneseq
    %v3345 = vshrl.u32 %v3344, 7
    %v3346 = vsub.s32 %v3343, %v3345
    %v3347 = vrot.slane %v3339, %v3346
    %v3349 = vunpack.c.l.s4 1966171168
    %v3350 = vunpack.c.0.s8 %v3349
    %v3351 = vlaneseq
    %v3352 = vshrl.u32 %v3351, 7
    %v3353 = vsub.s32 %v3350, %v3352
    %v3354 = vrot.slane %v3340, %v3353
    %v3357 = vadd.f32 %v3153, %v3347
    %v3358 = vadd.f32 %v3154, %v3354
    %s3359 = sld [smem:[#allocation2 + $0x62]]
    %v3360 = vstv %s3359
    %v3361 = vmul.f32 %v3258, %v3360
    %v3362 = vmul.f32 %v3259, %v3360
    %v3365 = vcombine.low %v3361, %v3362
    %v3367 = vunpack.c.l.s4 1966171168
    %v3368 = vunpack.c.0.s8 %v3367
    %v3369 = vlaneseq
    %v3370 = vshrl.u32 %v3369, 7
    %v3371 = vsub.s32 %v3368, %v3370
    %v3372 = vrot.slane %v3365, %v3371
    %v3373 = vcombine.high %v3372, %v3372
    %v3375 = vunpack.c.l.s4 1966171168
    %v3376 = vunpack.c.0.s8 %v3375
    %v3377 = vlaneseq
    %v3378 = vshrl.u32 %v3377, 7
    %v3379 = vsub.s32 %v3376, %v3378
    %v3380 = vrot.slane %v3372, %v3379
    %v3382 = vunpack.c.l.s4 1966171168
    %v3383 = vunpack.c.0.s8 %v3382
    %v3384 = vlaneseq
    %v3385 = vshrl.u32 %v3384, 7
    %v3386 = vsub.s32 %v3383, %v3385
    %v3387 = vrot.slane %v3373, %v3386
    %v3390 = vadd.f32 %v3186, %v3380
    %v3391 = vadd.f32 %v3187, %v3387
    %s3392 = sld [smem:[#allocation2 + $0x7d]]
    %v3393 = vstv %s3392
    %v3394 = vmul.f32 %v3258, %v3393
    %v3395 = vmul.f32 %v3259, %v3393
    %v3398 = vcombine.low %v3394, %v3395
    %v3400 = vunpack.c.l.s4 1966171168
    %v3401 = vunpack.c.0.s8 %v3400
    %v3402 = vlaneseq
    %v3403 = vshrl.u32 %v3402, 7
    %v3404 = vsub.s32 %v3401, %v3403
    %v3405 = vrot.slane %v3398, %v3404
    %v3406 = vcombine.high %v3405, %v3405
    %v3408 = vunpack.c.l.s4 1966171168
    %v3409 = vunpack.c.0.s8 %v3408
    %v3410 = vlaneseq
    %v3411 = vshrl.u32 %v3410, 7
    %v3412 = vsub.s32 %v3409, %v3411
    %v3413 = vrot.slane %v3405, %v3412
    %v3415 = vunpack.c.l.s4 1966171168
    %v3416 = vunpack.c.0.s8 %v3415
    %v3417 = vlaneseq
    %v3418 = vshrl.u32 %v3417, 7
    %v3419 = vsub.s32 %v3416, %v3418
    %v3420 = vrot.slane %v3406, %v3419
    %v3423 = vadd.f32 %v3219, %v3413
    %v3424 = vadd.f32 %v3220, %v3420
    %s3425 = sld [smem:[#allocation2 + $0x98]]
    %v3426 = vstv %s3425
    %v3427 = vmul.f32 %v3258, %v3426
    %v3428 = vmul.f32 %v3259, %v3426
    %v3431 = vcombine.low %v3427, %v3428
    %v3433 = vunpack.c.l.s4 1966171168
    %v3434 = vunpack.c.0.s8 %v3433
    %v3435 = vlaneseq
    %v3436 = vshrl.u32 %v3435, 7
    %v3437 = vsub.s32 %v3434, %v3436
    %v3438 = vrot.slane %v3431, %v3437
    %v3439 = vcombine.high %v3438, %v3438
    %v3441 = vunpack.c.l.s4 1966171168
    %v3442 = vunpack.c.0.s8 %v3441
    %v3443 = vlaneseq
    %v3444 = vshrl.u32 %v3443, 7
    %v3445 = vsub.s32 %v3442, %v3444
    %v3446 = vrot.slane %v3438, %v3445
    %v3448 = vunpack.c.l.s4 1966171168
    %v3449 = vunpack.c.0.s8 %v3448
    %v3450 = vlaneseq
    %v3451 = vshrl.u32 %v3450, 7
    %v3452 = vsub.s32 %v3449, %v3451
    %v3453 = vrot.slane %v3439, %v3452
    %v3456 = vadd.f32 %v3252, %v3446
    %v3457 = vadd.f32 %v3253, %v3453
    %s3458 = scalar_lea.vmem %s0, 2
    %v3459 = vld [vmem:[%s3458] ss:$4 sm:$0x3]
    %s3460 = scalar_lea.vmem %s0, 10
    %v3461 = vld [vmem:[%s3460] ss:$4 sm:$0x3]
    %s3462 = sld [smem:[#allocation2 + $0x12]]
    %v3463 = vstv %s3462
    %v3464 = vmul.f32 %v3459, %v3463
    %v3465 = vmul.f32 %v3461, %v3463
    %v3466 = vadd.f32 %v3291, %v3464
    %v3467 = vadd.f32 %v3292, %v3465
    %s3468 = sld [smem:[#allocation2 + $0x2d]]
    %v3469 = vstv %s3468
    %v3470 = vmul.f32 %v3459, %v3469
    %v3471 = vmul.f32 %v3461, %v3469
    %v3472 = vadd.f32 %v3324, %v3470
    %v3473 = vadd.f32 %v3325, %v3471
    %s3474 = sld [smem:[#allocation2 + $0x48]]
    %v3475 = vstv %s3474
    %v3476 = vmul.f32 %v3459, %v3475
    %v3477 = vmul.f32 %v3461, %v3475
    %v3478 = vadd.f32 %v3357, %v3476
    %v3479 = vadd.f32 %v3358, %v3477
    %s3480 = sld [smem:[#allocation2 + $0x63]]
    %v3481 = vstv %s3480
    %v3482 = vmul.f32 %v3459, %v3481
    %v3483 = vmul.f32 %v3461, %v3481
    %v3484 = vadd.f32 %v3390, %v3482
    %v3485 = vadd.f32 %v3391, %v3483
    %s3486 = sld [smem:[#allocation2 + $0x7e]]
    %v3487 = vstv %s3486
    %v3488 = vmul.f32 %v3459, %v3487
    %v3489 = vmul.f32 %v3461, %v3487
    %v3490 = vadd.f32 %v3423, %v3488
    %v3491 = vadd.f32 %v3424, %v3489
    %s3492 = sld [smem:[#allocation2 + $0x99]]
    %v3493 = vstv %s3492
    %v3494 = vmul.f32 %v3459, %v3493
    %v3495 = vmul.f32 %v3461, %v3493
    %v3496 = vadd.f32 %v3456, %v3494
    %v3497 = vadd.f32 %v3457, %v3495
    %v3500 = vcombine.low %v3459, %v3461
    %v3502 = vunpack.c.l.s4 1966171168
    %v3503 = vunpack.c.0.s8 %v3502
    %v3504 = vlaneseq
    %v3505 = vshrl.u32 %v3504, 7
    %v3506 = vsub.s32 %v3503, %v3505
    %v3507 = vrot.slane %v3500, %v3506
    %v3508 = vcombine.high %v3507, %v3507
    %v3510 = vunpack.c.l.s4 1966171168
    %v3511 = vunpack.c.0.s8 %v3510
    %v3512 = vlaneseq
    %v3513 = vshrl.u32 %v3512, 7
    %v3514 = vsub.s32 %v3511, %v3513
    %v3515 = vrot.slane %v3507, %v3514
    %v3517 = vunpack.c.l.s4 1966171168
    %v3518 = vunpack.c.0.s8 %v3517
    %v3519 = vlaneseq
    %v3520 = vshrl.u32 %v3519, 7
    %v3521 = vsub.s32 %v3518, %v3520
    %v3522 = vrot.slane %v3508, %v3521
    %3525 = vrot.lane.b32.xlu0 %v3515, 127
    %v3526 = vpop.permute.xlu0 %3525
    %3527 = vrot.lane.b32.xlu0 %v3522, 127
    %v3528 = vpop.permute.xlu0 %3527
    %v3529 = vsel %vm123, %v3526, %v3528
    %v3530 = vsel %vm123, %v3528, %v3526
    %s3531 = sld [smem:[#allocation2 + $0x13]]
    %v3532 = vstv %s3531
    %v3533 = vmul.f32 %v3529, %v3532
    %v3534 = vmul.f32 %v3530, %v3532
    %v3537 = vcombine.low %v3533, %v3534
    %v3539 = vunpack.c.l.s4 1966171168
    %v3540 = vunpack.c.0.s8 %v3539
    %v3541 = vlaneseq
    %v3542 = vshrl.u32 %v3541, 7
    %v3543 = vsub.s32 %v3540, %v3542
    %v3544 = vrot.slane %v3537, %v3543
    %v3545 = vcombine.high %v3544, %v3544
    %v3547 = vunpack.c.l.s4 1966171168
    %v3548 = vunpack.c.0.s8 %v3547
    %v3549 = vlaneseq
    %v3550 = vshrl.u32 %v3549, 7
    %v3551 = vsub.s32 %v3548, %v3550
    %v3552 = vrot.slane %v3544, %v3551
    %v3554 = vunpack.c.l.s4 1966171168
    %v3555 = vunpack.c.0.s8 %v3554
    %v3556 = vlaneseq
    %v3557 = vshrl.u32 %v3556, 7
    %v3558 = vsub.s32 %v3555, %v3557
    %v3559 = vrot.slane %v3545, %v3558
    %v3562 = vadd.f32 %v3466, %v3552
    %v3563 = vadd.f32 %v3467, %v3559
    %s3564 = sld [smem:[#allocation2 + $0x2e]]
    %v3565 = vstv %s3564
    %v3566 = vmul.f32 %v3529, %v3565
    %v3567 = vmul.f32 %v3530, %v3565
    %v3570 = vcombine.low %v3566, %v3567
    %v3572 = vunpack.c.l.s4 1966171168
    %v3573 = vunpack.c.0.s8 %v3572
    %v3574 = vlaneseq
    %v3575 = vshrl.u32 %v3574, 7
    %v3576 = vsub.s32 %v3573, %v3575
    %v3577 = vrot.slane %v3570, %v3576
    %v3578 = vcombine.high %v3577, %v3577
    %v3580 = vunpack.c.l.s4 1966171168
    %v3581 = vunpack.c.0.s8 %v3580
    %v3582 = vlaneseq
    %v3583 = vshrl.u32 %v3582, 7
    %v3584 = vsub.s32 %v3581, %v3583
    %v3585 = vrot.slane %v3577, %v3584
    %v3587 = vunpack.c.l.s4 1966171168
    %v3588 = vunpack.c.0.s8 %v3587
    %v3589 = vlaneseq
    %v3590 = vshrl.u32 %v3589, 7
    %v3591 = vsub.s32 %v3588, %v3590
    %v3592 = vrot.slane %v3578, %v3591
    %v3595 = vadd.f32 %v3472, %v3585
    %v3596 = vadd.f32 %v3473, %v3592
    %s3597 = sld [smem:[#allocation2 + $0x49]]
    %v3598 = vstv %s3597
    %v3599 = vmul.f32 %v3529, %v3598
    %v3600 = vmul.f32 %v3530, %v3598
    %v3603 = vcombine.low %v3599, %v3600
    %v3605 = vunpack.c.l.s4 1966171168
    %v3606 = vunpack.c.0.s8 %v3605
    %v3607 = vlaneseq
    %v3608 = vshrl.u32 %v3607, 7
    %v3609 = vsub.s32 %v3606, %v3608
    %v3610 = vrot.slane %v3603, %v3609
    %v3611 = vcombine.high %v3610, %v3610
    %v3613 = vunpack.c.l.s4 1966171168
    %v3614 = vunpack.c.0.s8 %v3613
    %v3615 = vlaneseq
    %v3616 = vshrl.u32 %v3615, 7
    %v3617 = vsub.s32 %v3614, %v3616
    %v3618 = vrot.slane %v3610, %v3617
    %v3620 = vunpack.c.l.s4 1966171168
    %v3621 = vunpack.c.0.s8 %v3620
    %v3622 = vlaneseq
    %v3623 = vshrl.u32 %v3622, 7
    %v3624 = vsub.s32 %v3621, %v3623
    %v3625 = vrot.slane %v3611, %v3624
    %v3628 = vadd.f32 %v3478, %v3618
    %v3629 = vadd.f32 %v3479, %v3625
    %s3630 = sld [smem:[#allocation2 + $0x64]]
    %v3631 = vstv %s3630
    %v3632 = vmul.f32 %v3529, %v3631
    %v3633 = vmul.f32 %v3530, %v3631
    %v3636 = vcombine.low %v3632, %v3633
    %v3638 = vunpack.c.l.s4 1966171168
    %v3639 = vunpack.c.0.s8 %v3638
    %v3640 = vlaneseq
    %v3641 = vshrl.u32 %v3640, 7
    %v3642 = vsub.s32 %v3639, %v3641
    %v3643 = vrot.slane %v3636, %v3642
    %v3644 = vcombine.high %v3643, %v3643
    %v3646 = vunpack.c.l.s4 1966171168
    %v3647 = vunpack.c.0.s8 %v3646
    %v3648 = vlaneseq
    %v3649 = vshrl.u32 %v3648, 7
    %v3650 = vsub.s32 %v3647, %v3649
    %v3651 = vrot.slane %v3643, %v3650
    %v3653 = vunpack.c.l.s4 1966171168
    %v3654 = vunpack.c.0.s8 %v3653
    %v3655 = vlaneseq
    %v3656 = vshrl.u32 %v3655, 7
    %v3657 = vsub.s32 %v3654, %v3656
    %v3658 = vrot.slane %v3644, %v3657
    %v3661 = vadd.f32 %v3484, %v3651
    %v3662 = vadd.f32 %v3485, %v3658
    %s3663 = sld [smem:[#allocation2 + $0x7f]]
    %v3664 = vstv %s3663
    %v3665 = vmul.f32 %v3529, %v3664
    %v3666 = vmul.f32 %v3530, %v3664
    %v3669 = vcombine.low %v3665, %v3666
    %v3671 = vunpack.c.l.s4 1966171168
    %v3672 = vunpack.c.0.s8 %v3671
    %v3673 = vlaneseq
    %v3674 = vshrl.u32 %v3673, 7
    %v3675 = vsub.s32 %v3672, %v3674
    %v3676 = vrot.slane %v3669, %v3675
    %v3677 = vcombine.high %v3676, %v3676
    %v3679 = vunpack.c.l.s4 1966171168
    %v3680 = vunpack.c.0.s8 %v3679
    %v3681 = vlaneseq
    %v3682 = vshrl.u32 %v3681, 7
    %v3683 = vsub.s32 %v3680, %v3682
    %v3684 = vrot.slane %v3676, %v3683
    %v3686 = vunpack.c.l.s4 1966171168
    %v3687 = vunpack.c.0.s8 %v3686
    %v3688 = vlaneseq
    %v3689 = vshrl.u32 %v3688, 7
    %v3690 = vsub.s32 %v3687, %v3689
    %v3691 = vrot.slane %v3677, %v3690
    %v3694 = vadd.f32 %v3490, %v3684
    %v3695 = vadd.f32 %v3491, %v3691
    %s3696 = sld [smem:[#allocation2 + $0x9a]]
    %v3697 = vstv %s3696
    %v3698 = vmul.f32 %v3529, %v3697
    %v3699 = vmul.f32 %v3530, %v3697
    %v3702 = vcombine.low %v3698, %v3699
    %v3704 = vunpack.c.l.s4 1966171168
    %v3705 = vunpack.c.0.s8 %v3704
    %v3706 = vlaneseq
    %v3707 = vshrl.u32 %v3706, 7
    %v3708 = vsub.s32 %v3705, %v3707
    %v3709 = vrot.slane %v3702, %v3708
    %v3710 = vcombine.high %v3709, %v3709
    %v3712 = vunpack.c.l.s4 1966171168
    %v3713 = vunpack.c.0.s8 %v3712
    %v3714 = vlaneseq
    %v3715 = vshrl.u32 %v3714, 7
    %v3716 = vsub.s32 %v3713, %v3715
    %v3717 = vrot.slane %v3709, %v3716
    %v3719 = vunpack.c.l.s4 1966171168
    %v3720 = vunpack.c.0.s8 %v3719
    %v3721 = vlaneseq
    %v3722 = vshrl.u32 %v3721, 7
    %v3723 = vsub.s32 %v3720, %v3722
    %v3724 = vrot.slane %v3710, %v3723
    %v3727 = vadd.f32 %v3496, %v3717
    %v3728 = vadd.f32 %v3497, %v3724
    %3729 = vrot.lane.b32.xlu0 %v3515, 126
    %v3730 = vpop.permute.xlu0 %3729
    %3731 = vrot.lane.b32.xlu0 %v3522, 126
    %v3732 = vpop.permute.xlu0 %3731
    %v3733 = vsel %vm328, %v3730, %v3732
    %v3734 = vsel %vm328, %v3732, %v3730
    %s3735 = sld [smem:[#allocation2 + $0x14]]
    %v3736 = vstv %s3735
    %v3737 = vmul.f32 %v3733, %v3736
    %v3738 = vmul.f32 %v3734, %v3736
    %v3741 = vcombine.low %v3737, %v3738
    %v3743 = vunpack.c.l.s4 1966171168
    %v3744 = vunpack.c.0.s8 %v3743
    %v3745 = vlaneseq
    %v3746 = vshrl.u32 %v3745, 7
    %v3747 = vsub.s32 %v3744, %v3746
    %v3748 = vrot.slane %v3741, %v3747
    %v3749 = vcombine.high %v3748, %v3748
    %v3751 = vunpack.c.l.s4 1966171168
    %v3752 = vunpack.c.0.s8 %v3751
    %v3753 = vlaneseq
    %v3754 = vshrl.u32 %v3753, 7
    %v3755 = vsub.s32 %v3752, %v3754
    %v3756 = vrot.slane %v3748, %v3755
    %v3758 = vunpack.c.l.s4 1966171168
    %v3759 = vunpack.c.0.s8 %v3758
    %v3760 = vlaneseq
    %v3761 = vshrl.u32 %v3760, 7
    %v3762 = vsub.s32 %v3759, %v3761
    %v3763 = vrot.slane %v3749, %v3762
    %v3766 = vadd.f32 %v3562, %v3756
    %v3767 = vadd.f32 %v3563, %v3763
    %s3768 = sld [smem:[#allocation2 + $0x2f]]
    %v3769 = vstv %s3768
    %v3770 = vmul.f32 %v3733, %v3769
    %v3771 = vmul.f32 %v3734, %v3769
    %v3774 = vcombine.low %v3770, %v3771
    %v3776 = vunpack.c.l.s4 1966171168
    %v3777 = vunpack.c.0.s8 %v3776
    %v3778 = vlaneseq
    %v3779 = vshrl.u32 %v3778, 7
    %v3780 = vsub.s32 %v3777, %v3779
    %v3781 = vrot.slane %v3774, %v3780
    %v3782 = vcombine.high %v3781, %v3781
    %v3784 = vunpack.c.l.s4 1966171168
    %v3785 = vunpack.c.0.s8 %v3784
    %v3786 = vlaneseq
    %v3787 = vshrl.u32 %v3786, 7
    %v3788 = vsub.s32 %v3785, %v3787
    %v3789 = vrot.slane %v3781, %v3788
    %v3791 = vunpack.c.l.s4 1966171168
    %v3792 = vunpack.c.0.s8 %v3791
    %v3793 = vlaneseq
    %v3794 = vshrl.u32 %v3793, 7
    %v3795 = vsub.s32 %v3792, %v3794
    %v3796 = vrot.slane %v3782, %v3795
    %v3799 = vadd.f32 %v3595, %v3789
    %v3800 = vadd.f32 %v3596, %v3796
    %s3801 = sld [smem:[#allocation2 + $0x4a]]
    %v3802 = vstv %s3801
    %v3803 = vmul.f32 %v3733, %v3802
    %v3804 = vmul.f32 %v3734, %v3802
    %v3807 = vcombine.low %v3803, %v3804
    %v3809 = vunpack.c.l.s4 1966171168
    %v3810 = vunpack.c.0.s8 %v3809
    %v3811 = vlaneseq
    %v3812 = vshrl.u32 %v3811, 7
    %v3813 = vsub.s32 %v3810, %v3812
    %v3814 = vrot.slane %v3807, %v3813
    %v3815 = vcombine.high %v3814, %v3814
    %v3817 = vunpack.c.l.s4 1966171168
    %v3818 = vunpack.c.0.s8 %v3817
    %v3819 = vlaneseq
    %v3820 = vshrl.u32 %v3819, 7
    %v3821 = vsub.s32 %v3818, %v3820
    %v3822 = vrot.slane %v3814, %v3821
    %v3824 = vunpack.c.l.s4 1966171168
    %v3825 = vunpack.c.0.s8 %v3824
    %v3826 = vlaneseq
    %v3827 = vshrl.u32 %v3826, 7
    %v3828 = vsub.s32 %v3825, %v3827
    %v3829 = vrot.slane %v3815, %v3828
    %v3832 = vadd.f32 %v3628, %v3822
    %v3833 = vadd.f32 %v3629, %v3829
    %s3834 = sld [smem:[#allocation2 + $0x65]]
    %v3835 = vstv %s3834
    %v3836 = vmul.f32 %v3733, %v3835
    %v3837 = vmul.f32 %v3734, %v3835
    %v3840 = vcombine.low %v3836, %v3837
    %v3842 = vunpack.c.l.s4 1966171168
    %v3843 = vunpack.c.0.s8 %v3842
    %v3844 = vlaneseq
    %v3845 = vshrl.u32 %v3844, 7
    %v3846 = vsub.s32 %v3843, %v3845
    %v3847 = vrot.slane %v3840, %v3846
    %v3848 = vcombine.high %v3847, %v3847
    %v3850 = vunpack.c.l.s4 1966171168
    %v3851 = vunpack.c.0.s8 %v3850
    %v3852 = vlaneseq
    %v3853 = vshrl.u32 %v3852, 7
    %v3854 = vsub.s32 %v3851, %v3853
    %v3855 = vrot.slane %v3847, %v3854
    %v3857 = vunpack.c.l.s4 1966171168
    %v3858 = vunpack.c.0.s8 %v3857
    %v3859 = vlaneseq
    %v3860 = vshrl.u32 %v3859, 7
    %v3861 = vsub.s32 %v3858, %v3860
    %v3862 = vrot.slane %v3848, %v3861
    %v3865 = vadd.f32 %v3661, %v3855
    %v3866 = vadd.f32 %v3662, %v3862
    %s3867 = sld [smem:[#allocation2 + $0x80]]
    %v3868 = vstv %s3867
    %v3869 = vmul.f32 %v3733, %v3868
    %v3870 = vmul.f32 %v3734, %v3868
    %v3873 = vcombine.low %v3869, %v3870
    %v3875 = vunpack.c.l.s4 1966171168
    %v3876 = vunpack.c.0.s8 %v3875
    %v3877 = vlaneseq
    %v3878 = vshrl.u32 %v3877, 7
    %v3879 = vsub.s32 %v3876, %v3878
    %v3880 = vrot.slane %v3873, %v3879
    %v3881 = vcombine.high %v3880, %v3880
    %v3883 = vunpack.c.l.s4 1966171168
    %v3884 = vunpack.c.0.s8 %v3883
    %v3885 = vlaneseq
    %v3886 = vshrl.u32 %v3885, 7
    %v3887 = vsub.s32 %v3884, %v3886
    %v3888 = vrot.slane %v3880, %v3887
    %v3890 = vunpack.c.l.s4 1966171168
    %v3891 = vunpack.c.0.s8 %v3890
    %v3892 = vlaneseq
    %v3893 = vshrl.u32 %v3892, 7
    %v3894 = vsub.s32 %v3891, %v3893
    %v3895 = vrot.slane %v3881, %v3894
    %v3898 = vadd.f32 %v3694, %v3888
    %v3899 = vadd.f32 %v3695, %v3895
    %s3900 = sld [smem:[#allocation2 + $0x9b]]
    %v3901 = vstv %s3900
    %v3902 = vmul.f32 %v3733, %v3901
    %v3903 = vmul.f32 %v3734, %v3901
    %v3906 = vcombine.low %v3902, %v3903
    %v3908 = vunpack.c.l.s4 1966171168
    %v3909 = vunpack.c.0.s8 %v3908
    %v3910 = vlaneseq
    %v3911 = vshrl.u32 %v3910, 7
    %v3912 = vsub.s32 %v3909, %v3911
    %v3913 = vrot.slane %v3906, %v3912
    %v3914 = vcombine.high %v3913, %v3913
    %v3916 = vunpack.c.l.s4 1966171168
    %v3917 = vunpack.c.0.s8 %v3916
    %v3918 = vlaneseq
    %v3919 = vshrl.u32 %v3918, 7
    %v3920 = vsub.s32 %v3917, %v3919
    %v3921 = vrot.slane %v3913, %v3920
    %v3923 = vunpack.c.l.s4 1966171168
    %v3924 = vunpack.c.0.s8 %v3923
    %v3925 = vlaneseq
    %v3926 = vshrl.u32 %v3925, 7
    %v3927 = vsub.s32 %v3924, %v3926
    %v3928 = vrot.slane %v3914, %v3927
    %v3931 = vadd.f32 %v3727, %v3921
    %v3932 = vadd.f32 %v3728, %v3928
    %3933 = vrot.lane.b32.xlu0 %v3515, 112
    %v3934 = vpop.permute.xlu0 %3933
    %3935 = vrot.lane.b32.xlu0 %v3522, 112
    %v3936 = vpop.permute.xlu0 %3935
    %v3937 = vsel %vm533, %v3934, %v3936
    %v3938 = vsel %vm533, %v3936, %v3934
    %s3939 = sld [smem:[#allocation2 + $0x15]]
    %v3940 = vstv %s3939
    %v3941 = vmul.f32 %v3937, %v3940
    %v3942 = vmul.f32 %v3938, %v3940
    %v3945 = vcombine.low %v3941, %v3942
    %v3947 = vunpack.c.l.s4 1966171168
    %v3948 = vunpack.c.0.s8 %v3947
    %v3949 = vlaneseq
    %v3950 = vshrl.u32 %v3949, 7
    %v3951 = vsub.s32 %v3948, %v3950
    %v3952 = vrot.slane %v3945, %v3951
    %v3953 = vcombine.high %v3952, %v3952
    %v3955 = vunpack.c.l.s4 1966171168
    %v3956 = vunpack.c.0.s8 %v3955
    %v3957 = vlaneseq
    %v3958 = vshrl.u32 %v3957, 7
    %v3959 = vsub.s32 %v3956, %v3958
    %v3960 = vrot.slane %v3952, %v3959
    %v3962 = vunpack.c.l.s4 1966171168
    %v3963 = vunpack.c.0.s8 %v3962
    %v3964 = vlaneseq
    %v3965 = vshrl.u32 %v3964, 7
    %v3966 = vsub.s32 %v3963, %v3965
    %v3967 = vrot.slane %v3953, %v3966
    %v3970 = vadd.f32 %v3766, %v3960
    %v3971 = vadd.f32 %v3767, %v3967
    %s3972 = sld [smem:[#allocation2 + $0x30]]
    %v3973 = vstv %s3972
    %v3974 = vmul.f32 %v3937, %v3973
    %v3975 = vmul.f32 %v3938, %v3973
    %v3978 = vcombine.low %v3974, %v3975
    %v3980 = vunpack.c.l.s4 1966171168
    %v3981 = vunpack.c.0.s8 %v3980
    %v3982 = vlaneseq
    %v3983 = vshrl.u32 %v3982, 7
    %v3984 = vsub.s32 %v3981, %v3983
    %v3985 = vrot.slane %v3978, %v3984
    %v3986 = vcombine.high %v3985, %v3985
    %v3988 = vunpack.c.l.s4 1966171168
    %v3989 = vunpack.c.0.s8 %v3988
    %v3990 = vlaneseq
    %v3991 = vshrl.u32 %v3990, 7
    %v3992 = vsub.s32 %v3989, %v3991
    %v3993 = vrot.slane %v3985, %v3992
    %v3995 = vunpack.c.l.s4 1966171168
    %v3996 = vunpack.c.0.s8 %v3995
    %v3997 = vlaneseq
    %v3998 = vshrl.u32 %v3997, 7
    %v3999 = vsub.s32 %v3996, %v3998
    %v4000 = vrot.slane %v3986, %v3999
    %v4003 = vadd.f32 %v3799, %v3993
    %v4004 = vadd.f32 %v3800, %v4000
    %s4005 = sld [smem:[#allocation2 + $0x4b]]
    %v4006 = vstv %s4005
    %v4007 = vmul.f32 %v3937, %v4006
    %v4008 = vmul.f32 %v3938, %v4006
    %v4011 = vcombine.low %v4007, %v4008
    %v4013 = vunpack.c.l.s4 1966171168
    %v4014 = vunpack.c.0.s8 %v4013
    %v4015 = vlaneseq
    %v4016 = vshrl.u32 %v4015, 7
    %v4017 = vsub.s32 %v4014, %v4016
    %v4018 = vrot.slane %v4011, %v4017
    %v4019 = vcombine.high %v4018, %v4018
    %v4021 = vunpack.c.l.s4 1966171168
    %v4022 = vunpack.c.0.s8 %v4021
    %v4023 = vlaneseq
    %v4024 = vshrl.u32 %v4023, 7
    %v4025 = vsub.s32 %v4022, %v4024
    %v4026 = vrot.slane %v4018, %v4025
    %v4028 = vunpack.c.l.s4 1966171168
    %v4029 = vunpack.c.0.s8 %v4028
    %v4030 = vlaneseq
    %v4031 = vshrl.u32 %v4030, 7
    %v4032 = vsub.s32 %v4029, %v4031
    %v4033 = vrot.slane %v4019, %v4032
    %v4036 = vadd.f32 %v3832, %v4026
    %v4037 = vadd.f32 %v3833, %v4033
    %s4038 = sld [smem:[#allocation2 + $0x66]]
    %v4039 = vstv %s4038
    %v4040 = vmul.f32 %v3937, %v4039
    %v4041 = vmul.f32 %v3938, %v4039
    %v4044 = vcombine.low %v4040, %v4041
    %v4046 = vunpack.c.l.s4 1966171168
    %v4047 = vunpack.c.0.s8 %v4046
    %v4048 = vlaneseq
    %v4049 = vshrl.u32 %v4048, 7
    %v4050 = vsub.s32 %v4047, %v4049
    %v4051 = vrot.slane %v4044, %v4050
    %v4052 = vcombine.high %v4051, %v4051
    %v4054 = vunpack.c.l.s4 1966171168
    %v4055 = vunpack.c.0.s8 %v4054
    %v4056 = vlaneseq
    %v4057 = vshrl.u32 %v4056, 7
    %v4058 = vsub.s32 %v4055, %v4057
    %v4059 = vrot.slane %v4051, %v4058
    %v4061 = vunpack.c.l.s4 1966171168
    %v4062 = vunpack.c.0.s8 %v4061
    %v4063 = vlaneseq
    %v4064 = vshrl.u32 %v4063, 7
    %v4065 = vsub.s32 %v4062, %v4064
    %v4066 = vrot.slane %v4052, %v4065
    %v4069 = vadd.f32 %v3865, %v4059
    %v4070 = vadd.f32 %v3866, %v4066
    %s4071 = sld [smem:[#allocation2 + $0x81]]
    %v4072 = vstv %s4071
    %v4073 = vmul.f32 %v3937, %v4072
    %v4074 = vmul.f32 %v3938, %v4072
    %v4077 = vcombine.low %v4073, %v4074
    %v4079 = vunpack.c.l.s4 1966171168
    %v4080 = vunpack.c.0.s8 %v4079
    %v4081 = vlaneseq
    %v4082 = vshrl.u32 %v4081, 7
    %v4083 = vsub.s32 %v4080, %v4082
    %v4084 = vrot.slane %v4077, %v4083
    %v4085 = vcombine.high %v4084, %v4084
    %v4087 = vunpack.c.l.s4 1966171168
    %v4088 = vunpack.c.0.s8 %v4087
    %v4089 = vlaneseq
    %v4090 = vshrl.u32 %v4089, 7
    %v4091 = vsub.s32 %v4088, %v4090
    %v4092 = vrot.slane %v4084, %v4091
    %v4094 = vunpack.c.l.s4 1966171168
    %v4095 = vunpack.c.0.s8 %v4094
    %v4096 = vlaneseq
    %v4097 = vshrl.u32 %v4096, 7
    %v4098 = vsub.s32 %v4095, %v4097
    %v4099 = vrot.slane %v4085, %v4098
    %v4102 = vadd.f32 %v3898, %v4092
    %v4103 = vadd.f32 %v3899, %v4099
    %s4104 = sld [smem:[#allocation2 + $0x9c]]
    %v4105 = vstv %s4104
    %v4106 = vmul.f32 %v3937, %v4105
    %v4107 = vmul.f32 %v3938, %v4105
    %v4110 = vcombine.low %v4106, %v4107
    %v4112 = vunpack.c.l.s4 1966171168
    %v4113 = vunpack.c.0.s8 %v4112
    %v4114 = vlaneseq
    %v4115 = vshrl.u32 %v4114, 7
    %v4116 = vsub.s32 %v4113, %v4115
    %v4117 = vrot.slane %v4110, %v4116
    %v4118 = vcombine.high %v4117, %v4117
    %v4120 = vunpack.c.l.s4 1966171168
    %v4121 = vunpack.c.0.s8 %v4120
    %v4122 = vlaneseq
    %v4123 = vshrl.u32 %v4122, 7
    %v4124 = vsub.s32 %v4121, %v4123
    %v4125 = vrot.slane %v4117, %v4124
    %v4127 = vunpack.c.l.s4 1966171168
    %v4128 = vunpack.c.0.s8 %v4127
    %v4129 = vlaneseq
    %v4130 = vshrl.u32 %v4129, 7
    %v4131 = vsub.s32 %v4128, %v4130
    %v4132 = vrot.slane %v4118, %v4131
    %v4135 = vadd.f32 %v3931, %v4125
    %v4136 = vadd.f32 %v3932, %v4132
    %4137 = vrot.lane.b32.xlu0 %v3515, 111
    %v4138 = vpop.permute.xlu0 %4137
    %4139 = vrot.lane.b32.xlu0 %v3522, 111
    %v4140 = vpop.permute.xlu0 %4139
    %v4141 = vsel %vm738, %v4138, %v4140
    %v4142 = vsel %vm738, %v4140, %v4138
    %s4143 = sld [smem:[#allocation2 + $0x16]]
    %v4144 = vstv %s4143
    %v4145 = vmul.f32 %v4141, %v4144
    %v4146 = vmul.f32 %v4142, %v4144
    %v4149 = vcombine.low %v4145, %v4146
    %v4151 = vunpack.c.l.s4 1966171168
    %v4152 = vunpack.c.0.s8 %v4151
    %v4153 = vlaneseq
    %v4154 = vshrl.u32 %v4153, 7
    %v4155 = vsub.s32 %v4152, %v4154
    %v4156 = vrot.slane %v4149, %v4155
    %v4157 = vcombine.high %v4156, %v4156
    %v4159 = vunpack.c.l.s4 1966171168
    %v4160 = vunpack.c.0.s8 %v4159
    %v4161 = vlaneseq
    %v4162 = vshrl.u32 %v4161, 7
    %v4163 = vsub.s32 %v4160, %v4162
    %v4164 = vrot.slane %v4156, %v4163
    %v4166 = vunpack.c.l.s4 1966171168
    %v4167 = vunpack.c.0.s8 %v4166
    %v4168 = vlaneseq
    %v4169 = vshrl.u32 %v4168, 7
    %v4170 = vsub.s32 %v4167, %v4169
    %v4171 = vrot.slane %v4157, %v4170
    %v4174 = vadd.f32 %v3970, %v4164
    %v4175 = vadd.f32 %v3971, %v4171
    %s4176 = sld [smem:[#allocation2 + $0x31]]
    %v4177 = vstv %s4176
    %v4178 = vmul.f32 %v4141, %v4177
    %v4179 = vmul.f32 %v4142, %v4177
    %v4182 = vcombine.low %v4178, %v4179
    %v4184 = vunpack.c.l.s4 1966171168
    %v4185 = vunpack.c.0.s8 %v4184
    %v4186 = vlaneseq
    %v4187 = vshrl.u32 %v4186, 7
    %v4188 = vsub.s32 %v4185, %v4187
    %v4189 = vrot.slane %v4182, %v4188
    %v4190 = vcombine.high %v4189, %v4189
    %v4192 = vunpack.c.l.s4 1966171168
    %v4193 = vunpack.c.0.s8 %v4192
    %v4194 = vlaneseq
    %v4195 = vshrl.u32 %v4194, 7
    %v4196 = vsub.s32 %v4193, %v4195
    %v4197 = vrot.slane %v4189, %v4196
    %v4199 = vunpack.c.l.s4 1966171168
    %v4200 = vunpack.c.0.s8 %v4199
    %v4201 = vlaneseq
    %v4202 = vshrl.u32 %v4201, 7
    %v4203 = vsub.s32 %v4200, %v4202
    %v4204 = vrot.slane %v4190, %v4203
    %v4207 = vadd.f32 %v4003, %v4197
    %v4208 = vadd.f32 %v4004, %v4204
    %s4209 = sld [smem:[#allocation2 + $0x4c]]
    %v4210 = vstv %s4209
    %v4211 = vmul.f32 %v4141, %v4210
    %v4212 = vmul.f32 %v4142, %v4210
    %v4215 = vcombine.low %v4211, %v4212
    %v4217 = vunpack.c.l.s4 1966171168
    %v4218 = vunpack.c.0.s8 %v4217
    %v4219 = vlaneseq
    %v4220 = vshrl.u32 %v4219, 7
    %v4221 = vsub.s32 %v4218, %v4220
    %v4222 = vrot.slane %v4215, %v4221
    %v4223 = vcombine.high %v4222, %v4222
    %v4225 = vunpack.c.l.s4 1966171168
    %v4226 = vunpack.c.0.s8 %v4225
    %v4227 = vlaneseq
    %v4228 = vshrl.u32 %v4227, 7
    %v4229 = vsub.s32 %v4226, %v4228
    %v4230 = vrot.slane %v4222, %v4229
    %v4232 = vunpack.c.l.s4 1966171168
    %v4233 = vunpack.c.0.s8 %v4232
    %v4234 = vlaneseq
    %v4235 = vshrl.u32 %v4234, 7
    %v4236 = vsub.s32 %v4233, %v4235
    %v4237 = vrot.slane %v4223, %v4236
    %v4240 = vadd.f32 %v4036, %v4230
    %v4241 = vadd.f32 %v4037, %v4237
    %s4242 = sld [smem:[#allocation2 + $0x67]]
    %v4243 = vstv %s4242
    %v4244 = vmul.f32 %v4141, %v4243
    %v4245 = vmul.f32 %v4142, %v4243
    %v4248 = vcombine.low %v4244, %v4245
    %v4250 = vunpack.c.l.s4 1966171168
    %v4251 = vunpack.c.0.s8 %v4250
    %v4252 = vlaneseq
    %v4253 = vshrl.u32 %v4252, 7
    %v4254 = vsub.s32 %v4251, %v4253
    %v4255 = vrot.slane %v4248, %v4254
    %v4256 = vcombine.high %v4255, %v4255
    %v4258 = vunpack.c.l.s4 1966171168
    %v4259 = vunpack.c.0.s8 %v4258
    %v4260 = vlaneseq
    %v4261 = vshrl.u32 %v4260, 7
    %v4262 = vsub.s32 %v4259, %v4261
    %v4263 = vrot.slane %v4255, %v4262
    %v4265 = vunpack.c.l.s4 1966171168
    %v4266 = vunpack.c.0.s8 %v4265
    %v4267 = vlaneseq
    %v4268 = vshrl.u32 %v4267, 7
    %v4269 = vsub.s32 %v4266, %v4268
    %v4270 = vrot.slane %v4256, %v4269
    %v4273 = vadd.f32 %v4069, %v4263
    %v4274 = vadd.f32 %v4070, %v4270
    %s4275 = sld [smem:[#allocation2 + $0x82]]
    %v4276 = vstv %s4275
    %v4277 = vmul.f32 %v4141, %v4276
    %v4278 = vmul.f32 %v4142, %v4276
    %v4281 = vcombine.low %v4277, %v4278
    %v4283 = vunpack.c.l.s4 1966171168
    %v4284 = vunpack.c.0.s8 %v4283
    %v4285 = vlaneseq
    %v4286 = vshrl.u32 %v4285, 7
    %v4287 = vsub.s32 %v4284, %v4286
    %v4288 = vrot.slane %v4281, %v4287
    %v4289 = vcombine.high %v4288, %v4288
    %v4291 = vunpack.c.l.s4 1966171168
    %v4292 = vunpack.c.0.s8 %v4291
    %v4293 = vlaneseq
    %v4294 = vshrl.u32 %v4293, 7
    %v4295 = vsub.s32 %v4292, %v4294
    %v4296 = vrot.slane %v4288, %v4295
    %v4298 = vunpack.c.l.s4 1966171168
    %v4299 = vunpack.c.0.s8 %v4298
    %v4300 = vlaneseq
    %v4301 = vshrl.u32 %v4300, 7
    %v4302 = vsub.s32 %v4299, %v4301
    %v4303 = vrot.slane %v4289, %v4302
    %v4306 = vadd.f32 %v4102, %v4296
    %v4307 = vadd.f32 %v4103, %v4303
    %s4308 = sld [smem:[#allocation2 + $0x9d]]
    %v4309 = vstv %s4308
    %v4310 = vmul.f32 %v4141, %v4309
    %v4311 = vmul.f32 %v4142, %v4309
    %v4314 = vcombine.low %v4310, %v4311
    %v4316 = vunpack.c.l.s4 1966171168
    %v4317 = vunpack.c.0.s8 %v4316
    %v4318 = vlaneseq
    %v4319 = vshrl.u32 %v4318, 7
    %v4320 = vsub.s32 %v4317, %v4319
    %v4321 = vrot.slane %v4314, %v4320
    %v4322 = vcombine.high %v4321, %v4321
    %v4324 = vunpack.c.l.s4 1966171168
    %v4325 = vunpack.c.0.s8 %v4324
    %v4326 = vlaneseq
    %v4327 = vshrl.u32 %v4326, 7
    %v4328 = vsub.s32 %v4325, %v4327
    %v4329 = vrot.slane %v4321, %v4328
    %v4331 = vunpack.c.l.s4 1966171168
    %v4332 = vunpack.c.0.s8 %v4331
    %v4333 = vlaneseq
    %v4334 = vshrl.u32 %v4333, 7
    %v4335 = vsub.s32 %v4332, %v4334
    %v4336 = vrot.slane %v4322, %v4335
    %v4339 = vadd.f32 %v4135, %v4329
    %v4340 = vadd.f32 %v4136, %v4336
    %4341 = vrot.lane.b32.xlu0 %v3515, 110
    %v4342 = vpop.permute.xlu0 %4341
    %4343 = vrot.lane.b32.xlu0 %v3522, 110
    %v4344 = vpop.permute.xlu0 %4343
    %v4345 = vsel %vm943, %v4342, %v4344
    %v4346 = vsel %vm943, %v4344, %v4342
    %s4347 = sld [smem:[#allocation2 + $0x17]]
    %v4348 = vstv %s4347
    %v4349 = vmul.f32 %v4345, %v4348
    %v4350 = vmul.f32 %v4346, %v4348
    %v4353 = vcombine.low %v4349, %v4350
    %v4355 = vunpack.c.l.s4 1966171168
    %v4356 = vunpack.c.0.s8 %v4355
    %v4357 = vlaneseq
    %v4358 = vshrl.u32 %v4357, 7
    %v4359 = vsub.s32 %v4356, %v4358
    %v4360 = vrot.slane %v4353, %v4359
    %v4361 = vcombine.high %v4360, %v4360
    %v4363 = vunpack.c.l.s4 1966171168
    %v4364 = vunpack.c.0.s8 %v4363
    %v4365 = vlaneseq
    %v4366 = vshrl.u32 %v4365, 7
    %v4367 = vsub.s32 %v4364, %v4366
    %v4368 = vrot.slane %v4360, %v4367
    %v4370 = vunpack.c.l.s4 1966171168
    %v4371 = vunpack.c.0.s8 %v4370
    %v4372 = vlaneseq
    %v4373 = vshrl.u32 %v4372, 7
    %v4374 = vsub.s32 %v4371, %v4373
    %v4375 = vrot.slane %v4361, %v4374
    %v4378 = vadd.f32 %v4174, %v4368
    %v4379 = vadd.f32 %v4175, %v4375
    %s4380 = sld [smem:[#allocation2 + $0x32]]
    %v4381 = vstv %s4380
    %v4382 = vmul.f32 %v4345, %v4381
    %v4383 = vmul.f32 %v4346, %v4381
    %v4386 = vcombine.low %v4382, %v4383
    %v4388 = vunpack.c.l.s4 1966171168
    %v4389 = vunpack.c.0.s8 %v4388
    %v4390 = vlaneseq
    %v4391 = vshrl.u32 %v4390, 7
    %v4392 = vsub.s32 %v4389, %v4391
    %v4393 = vrot.slane %v4386, %v4392
    %v4394 = vcombine.high %v4393, %v4393
    %v4396 = vunpack.c.l.s4 1966171168
    %v4397 = vunpack.c.0.s8 %v4396
    %v4398 = vlaneseq
    %v4399 = vshrl.u32 %v4398, 7
    %v4400 = vsub.s32 %v4397, %v4399
    %v4401 = vrot.slane %v4393, %v4400
    %v4403 = vunpack.c.l.s4 1966171168
    %v4404 = vunpack.c.0.s8 %v4403
    %v4405 = vlaneseq
    %v4406 = vshrl.u32 %v4405, 7
    %v4407 = vsub.s32 %v4404, %v4406
    %v4408 = vrot.slane %v4394, %v4407
    %v4411 = vadd.f32 %v4207, %v4401
    %v4412 = vadd.f32 %v4208, %v4408
    %s4413 = sld [smem:[#allocation2 + $0x4d]]
    %v4414 = vstv %s4413
    %v4415 = vmul.f32 %v4345, %v4414
    %v4416 = vmul.f32 %v4346, %v4414
    %v4419 = vcombine.low %v4415, %v4416
    %v4421 = vunpack.c.l.s4 1966171168
    %v4422 = vunpack.c.0.s8 %v4421
    %v4423 = vlaneseq
    %v4424 = vshrl.u32 %v4423, 7
    %v4425 = vsub.s32 %v4422, %v4424
    %v4426 = vrot.slane %v4419, %v4425
    %v4427 = vcombine.high %v4426, %v4426
    %v4429 = vunpack.c.l.s4 1966171168
    %v4430 = vunpack.c.0.s8 %v4429
    %v4431 = vlaneseq
    %v4432 = vshrl.u32 %v4431, 7
    %v4433 = vsub.s32 %v4430, %v4432
    %v4434 = vrot.slane %v4426, %v4433
    %v4436 = vunpack.c.l.s4 1966171168
    %v4437 = vunpack.c.0.s8 %v4436
    %v4438 = vlaneseq
    %v4439 = vshrl.u32 %v4438, 7
    %v4440 = vsub.s32 %v4437, %v4439
    %v4441 = vrot.slane %v4427, %v4440
    %v4444 = vadd.f32 %v4240, %v4434
    %v4445 = vadd.f32 %v4241, %v4441
    %s4446 = sld [smem:[#allocation2 + $0x68]]
    %v4447 = vstv %s4446
    %v4448 = vmul.f32 %v4345, %v4447
    %v4449 = vmul.f32 %v4346, %v4447
    %v4452 = vcombine.low %v4448, %v4449
    %v4454 = vunpack.c.l.s4 1966171168
    %v4455 = vunpack.c.0.s8 %v4454
    %v4456 = vlaneseq
    %v4457 = vshrl.u32 %v4456, 7
    %v4458 = vsub.s32 %v4455, %v4457
    %v4459 = vrot.slane %v4452, %v4458
    %v4460 = vcombine.high %v4459, %v4459
    %v4462 = vunpack.c.l.s4 1966171168
    %v4463 = vunpack.c.0.s8 %v4462
    %v4464 = vlaneseq
    %v4465 = vshrl.u32 %v4464, 7
    %v4466 = vsub.s32 %v4463, %v4465
    %v4467 = vrot.slane %v4459, %v4466
    %v4469 = vunpack.c.l.s4 1966171168
    %v4470 = vunpack.c.0.s8 %v4469
    %v4471 = vlaneseq
    %v4472 = vshrl.u32 %v4471, 7
    %v4473 = vsub.s32 %v4470, %v4472
    %v4474 = vrot.slane %v4460, %v4473
    %v4477 = vadd.f32 %v4273, %v4467
    %v4478 = vadd.f32 %v4274, %v4474
    %s4479 = sld [smem:[#allocation2 + $0x83]]
    %v4480 = vstv %s4479
    %v4481 = vmul.f32 %v4345, %v4480
    %v4482 = vmul.f32 %v4346, %v4480
    %v4485 = vcombine.low %v4481, %v4482
    %v4487 = vunpack.c.l.s4 1966171168
    %v4488 = vunpack.c.0.s8 %v4487
    %v4489 = vlaneseq
    %v4490 = vshrl.u32 %v4489, 7
    %v4491 = vsub.s32 %v4488, %v4490
    %v4492 = vrot.slane %v4485, %v4491
    %v4493 = vcombine.high %v4492, %v4492
    %v4495 = vunpack.c.l.s4 1966171168
    %v4496 = vunpack.c.0.s8 %v4495
    %v4497 = vlaneseq
    %v4498 = vshrl.u32 %v4497, 7
    %v4499 = vsub.s32 %v4496, %v4498
    %v4500 = vrot.slane %v4492, %v4499
    %v4502 = vunpack.c.l.s4 1966171168
    %v4503 = vunpack.c.0.s8 %v4502
    %v4504 = vlaneseq
    %v4505 = vshrl.u32 %v4504, 7
    %v4506 = vsub.s32 %v4503, %v4505
    %v4507 = vrot.slane %v4493, %v4506
    %v4510 = vadd.f32 %v4306, %v4500
    %v4511 = vadd.f32 %v4307, %v4507
    %s4512 = sld [smem:[#allocation2 + $0x9e]]
    %v4513 = vstv %s4512
    %v4514 = vmul.f32 %v4345, %v4513
    %v4515 = vmul.f32 %v4346, %v4513
    %v4518 = vcombine.low %v4514, %v4515
    %v4520 = vunpack.c.l.s4 1966171168
    %v4521 = vunpack.c.0.s8 %v4520
    %v4522 = vlaneseq
    %v4523 = vshrl.u32 %v4522, 7
    %v4524 = vsub.s32 %v4521, %v4523
    %v4525 = vrot.slane %v4518, %v4524
    %v4526 = vcombine.high %v4525, %v4525
    %v4528 = vunpack.c.l.s4 1966171168
    %v4529 = vunpack.c.0.s8 %v4528
    %v4530 = vlaneseq
    %v4531 = vshrl.u32 %v4530, 7
    %v4532 = vsub.s32 %v4529, %v4531
    %v4533 = vrot.slane %v4525, %v4532
    %v4535 = vunpack.c.l.s4 1966171168
    %v4536 = vunpack.c.0.s8 %v4535
    %v4537 = vlaneseq
    %v4538 = vshrl.u32 %v4537, 7
    %v4539 = vsub.s32 %v4536, %v4538
    %v4540 = vrot.slane %v4526, %v4539
    %v4543 = vadd.f32 %v4339, %v4533
    %v4544 = vadd.f32 %v4340, %v4540
    %4545 = vrot.lane.b32.xlu0 %v3515, 96
    %v4546 = vpop.permute.xlu0 %4545
    %4547 = vrot.lane.b32.xlu0 %v3522, 96
    %v4548 = vpop.permute.xlu0 %4547
    %v4549 = vsel %vm1148, %v4546, %v4548
    %v4550 = vsel %vm1148, %v4548, %v4546
    %s4551 = sld [smem:[#allocation2 + $0x18]]
    %v4552 = vstv %s4551
    %v4553 = vmul.f32 %v4549, %v4552
    %v4554 = vmul.f32 %v4550, %v4552
    %v4557 = vcombine.low %v4553, %v4554
    %v4559 = vunpack.c.l.s4 1966171168
    %v4560 = vunpack.c.0.s8 %v4559
    %v4561 = vlaneseq
    %v4562 = vshrl.u32 %v4561, 7
    %v4563 = vsub.s32 %v4560, %v4562
    %v4564 = vrot.slane %v4557, %v4563
    %v4565 = vcombine.high %v4564, %v4564
    %v4567 = vunpack.c.l.s4 1966171168
    %v4568 = vunpack.c.0.s8 %v4567
    %v4569 = vlaneseq
    %v4570 = vshrl.u32 %v4569, 7
    %v4571 = vsub.s32 %v4568, %v4570
    %v4572 = vrot.slane %v4564, %v4571
    %v4574 = vunpack.c.l.s4 1966171168
    %v4575 = vunpack.c.0.s8 %v4574
    %v4576 = vlaneseq
    %v4577 = vshrl.u32 %v4576, 7
    %v4578 = vsub.s32 %v4575, %v4577
    %v4579 = vrot.slane %v4565, %v4578
    %v4582 = vadd.f32 %v4378, %v4572
    %v4583 = vadd.f32 %v4379, %v4579
    %s4584 = sld [smem:[#allocation2 + $0x33]]
    %v4585 = vstv %s4584
    %v4586 = vmul.f32 %v4549, %v4585
    %v4587 = vmul.f32 %v4550, %v4585
    %v4590 = vcombine.low %v4586, %v4587
    %v4592 = vunpack.c.l.s4 1966171168
    %v4593 = vunpack.c.0.s8 %v4592
    %v4594 = vlaneseq
    %v4595 = vshrl.u32 %v4594, 7
    %v4596 = vsub.s32 %v4593, %v4595
    %v4597 = vrot.slane %v4590, %v4596
    %v4598 = vcombine.high %v4597, %v4597
    %v4600 = vunpack.c.l.s4 1966171168
    %v4601 = vunpack.c.0.s8 %v4600
    %v4602 = vlaneseq
    %v4603 = vshrl.u32 %v4602, 7
    %v4604 = vsub.s32 %v4601, %v4603
    %v4605 = vrot.slane %v4597, %v4604
    %v4607 = vunpack.c.l.s4 1966171168
    %v4608 = vunpack.c.0.s8 %v4607
    %v4609 = vlaneseq
    %v4610 = vshrl.u32 %v4609, 7
    %v4611 = vsub.s32 %v4608, %v4610
    %v4612 = vrot.slane %v4598, %v4611
    %v4615 = vadd.f32 %v4411, %v4605
    %v4616 = vadd.f32 %v4412, %v4612
    %s4617 = sld [smem:[#allocation2 + $0x4e]]
    %v4618 = vstv %s4617
    %v4619 = vmul.f32 %v4549, %v4618
    %v4620 = vmul.f32 %v4550, %v4618
    %v4623 = vcombine.low %v4619, %v4620
    %v4625 = vunpack.c.l.s4 1966171168
    %v4626 = vunpack.c.0.s8 %v4625
    %v4627 = vlaneseq
    %v4628 = vshrl.u32 %v4627, 7
    %v4629 = vsub.s32 %v4626, %v4628
    %v4630 = vrot.slane %v4623, %v4629
    %v4631 = vcombine.high %v4630, %v4630
    %v4633 = vunpack.c.l.s4 1966171168
    %v4634 = vunpack.c.0.s8 %v4633
    %v4635 = vlaneseq
    %v4636 = vshrl.u32 %v4635, 7
    %v4637 = vsub.s32 %v4634, %v4636
    %v4638 = vrot.slane %v4630, %v4637
    %v4640 = vunpack.c.l.s4 1966171168
    %v4641 = vunpack.c.0.s8 %v4640
    %v4642 = vlaneseq
    %v4643 = vshrl.u32 %v4642, 7
    %v4644 = vsub.s32 %v4641, %v4643
    %v4645 = vrot.slane %v4631, %v4644
    %v4648 = vadd.f32 %v4444, %v4638
    %v4649 = vadd.f32 %v4445, %v4645
    %s4650 = sld [smem:[#allocation2 + $0x69]]
    %v4651 = vstv %s4650
    %v4652 = vmul.f32 %v4549, %v4651
    %v4653 = vmul.f32 %v4550, %v4651
    %v4656 = vcombine.low %v4652, %v4653
    %v4658 = vunpack.c.l.s4 1966171168
    %v4659 = vunpack.c.0.s8 %v4658
    %v4660 = vlaneseq
    %v4661 = vshrl.u32 %v4660, 7
    %v4662 = vsub.s32 %v4659, %v4661
    %v4663 = vrot.slane %v4656, %v4662
    %v4664 = vcombine.high %v4663, %v4663
    %v4666 = vunpack.c.l.s4 1966171168
    %v4667 = vunpack.c.0.s8 %v4666
    %v4668 = vlaneseq
    %v4669 = vshrl.u32 %v4668, 7
    %v4670 = vsub.s32 %v4667, %v4669
    %v4671 = vrot.slane %v4663, %v4670
    %v4673 = vunpack.c.l.s4 1966171168
    %v4674 = vunpack.c.0.s8 %v4673
    %v4675 = vlaneseq
    %v4676 = vshrl.u32 %v4675, 7
    %v4677 = vsub.s32 %v4674, %v4676
    %v4678 = vrot.slane %v4664, %v4677
    %v4681 = vadd.f32 %v4477, %v4671
    %v4682 = vadd.f32 %v4478, %v4678
    %s4683 = sld [smem:[#allocation2 + $0x84]]
    %v4684 = vstv %s4683
    %v4685 = vmul.f32 %v4549, %v4684
    %v4686 = vmul.f32 %v4550, %v4684
    %v4689 = vcombine.low %v4685, %v4686
    %v4691 = vunpack.c.l.s4 1966171168
    %v4692 = vunpack.c.0.s8 %v4691
    %v4693 = vlaneseq
    %v4694 = vshrl.u32 %v4693, 7
    %v4695 = vsub.s32 %v4692, %v4694
    %v4696 = vrot.slane %v4689, %v4695
    %v4697 = vcombine.high %v4696, %v4696
    %v4699 = vunpack.c.l.s4 1966171168
    %v4700 = vunpack.c.0.s8 %v4699
    %v4701 = vlaneseq
    %v4702 = vshrl.u32 %v4701, 7
    %v4703 = vsub.s32 %v4700, %v4702
    %v4704 = vrot.slane %v4696, %v4703
    %v4706 = vunpack.c.l.s4 1966171168
    %v4707 = vunpack.c.0.s8 %v4706
    %v4708 = vlaneseq
    %v4709 = vshrl.u32 %v4708, 7
    %v4710 = vsub.s32 %v4707, %v4709
    %v4711 = vrot.slane %v4697, %v4710
    %v4714 = vadd.f32 %v4510, %v4704
    %v4715 = vadd.f32 %v4511, %v4711
    %s4716 = sld [smem:[#allocation2 + $0x9f]]
    %v4717 = vstv %s4716
    %v4718 = vmul.f32 %v4549, %v4717
    %v4719 = vmul.f32 %v4550, %v4717
    %v4722 = vcombine.low %v4718, %v4719
    %v4724 = vunpack.c.l.s4 1966171168
    %v4725 = vunpack.c.0.s8 %v4724
    %v4726 = vlaneseq
    %v4727 = vshrl.u32 %v4726, 7
    %v4728 = vsub.s32 %v4725, %v4727
    %v4729 = vrot.slane %v4722, %v4728
    %v4730 = vcombine.high %v4729, %v4729
    %v4732 = vunpack.c.l.s4 1966171168
    %v4733 = vunpack.c.0.s8 %v4732
    %v4734 = vlaneseq
    %v4735 = vshrl.u32 %v4734, 7
    %v4736 = vsub.s32 %v4733, %v4735
    %v4737 = vrot.slane %v4729, %v4736
    %v4739 = vunpack.c.l.s4 1966171168
    %v4740 = vunpack.c.0.s8 %v4739
    %v4741 = vlaneseq
    %v4742 = vshrl.u32 %v4741, 7
    %v4743 = vsub.s32 %v4740, %v4742
    %v4744 = vrot.slane %v4730, %v4743
    %v4747 = vadd.f32 %v4543, %v4737
    %v4748 = vadd.f32 %v4544, %v4744
    %4749 = vrot.lane.b32.xlu0 %v3515, 95
    %v4750 = vpop.permute.xlu0 %4749
    %4751 = vrot.lane.b32.xlu0 %v3522, 95
    %v4752 = vpop.permute.xlu0 %4751
    %v4753 = vsel %vm1353, %v4750, %v4752
    %v4754 = vsel %vm1353, %v4752, %v4750
    %s4755 = sld [smem:[#allocation2 + $0x19]]
    %v4756 = vstv %s4755
    %v4757 = vmul.f32 %v4753, %v4756
    %v4758 = vmul.f32 %v4754, %v4756
    %v4761 = vcombine.low %v4757, %v4758
    %v4763 = vunpack.c.l.s4 1966171168
    %v4764 = vunpack.c.0.s8 %v4763
    %v4765 = vlaneseq
    %v4766 = vshrl.u32 %v4765, 7
    %v4767 = vsub.s32 %v4764, %v4766
    %v4768 = vrot.slane %v4761, %v4767
    %v4769 = vcombine.high %v4768, %v4768
    %v4771 = vunpack.c.l.s4 1966171168
    %v4772 = vunpack.c.0.s8 %v4771
    %v4773 = vlaneseq
    %v4774 = vshrl.u32 %v4773, 7
    %v4775 = vsub.s32 %v4772, %v4774
    %v4776 = vrot.slane %v4768, %v4775
    %v4778 = vunpack.c.l.s4 1966171168
    %v4779 = vunpack.c.0.s8 %v4778
    %v4780 = vlaneseq
    %v4781 = vshrl.u32 %v4780, 7
    %v4782 = vsub.s32 %v4779, %v4781
    %v4783 = vrot.slane %v4769, %v4782
    %v4786 = vadd.f32 %v4582, %v4776
    %v4787 = vadd.f32 %v4583, %v4783
    %s4788 = sld [smem:[#allocation2 + $0x34]]
    %v4789 = vstv %s4788
    %v4790 = vmul.f32 %v4753, %v4789
    %v4791 = vmul.f32 %v4754, %v4789
    %v4794 = vcombine.low %v4790, %v4791
    %v4796 = vunpack.c.l.s4 1966171168
    %v4797 = vunpack.c.0.s8 %v4796
    %v4798 = vlaneseq
    %v4799 = vshrl.u32 %v4798, 7
    %v4800 = vsub.s32 %v4797, %v4799
    %v4801 = vrot.slane %v4794, %v4800
    %v4802 = vcombine.high %v4801, %v4801
    %v4804 = vunpack.c.l.s4 1966171168
    %v4805 = vunpack.c.0.s8 %v4804
    %v4806 = vlaneseq
    %v4807 = vshrl.u32 %v4806, 7
    %v4808 = vsub.s32 %v4805, %v4807
    %v4809 = vrot.slane %v4801, %v4808
    %v4811 = vunpack.c.l.s4 1966171168
    %v4812 = vunpack.c.0.s8 %v4811
    %v4813 = vlaneseq
    %v4814 = vshrl.u32 %v4813, 7
    %v4815 = vsub.s32 %v4812, %v4814
    %v4816 = vrot.slane %v4802, %v4815
    %v4819 = vadd.f32 %v4615, %v4809
    %v4820 = vadd.f32 %v4616, %v4816
    %s4821 = sld [smem:[#allocation2 + $0x4f]]
    %v4822 = vstv %s4821
    %v4823 = vmul.f32 %v4753, %v4822
    %v4824 = vmul.f32 %v4754, %v4822
    %v4827 = vcombine.low %v4823, %v4824
    %v4829 = vunpack.c.l.s4 1966171168
    %v4830 = vunpack.c.0.s8 %v4829
    %v4831 = vlaneseq
    %v4832 = vshrl.u32 %v4831, 7
    %v4833 = vsub.s32 %v4830, %v4832
    %v4834 = vrot.slane %v4827, %v4833
    %v4835 = vcombine.high %v4834, %v4834
    %v4837 = vunpack.c.l.s4 1966171168
    %v4838 = vunpack.c.0.s8 %v4837
    %v4839 = vlaneseq
    %v4840 = vshrl.u32 %v4839, 7
    %v4841 = vsub.s32 %v4838, %v4840
    %v4842 = vrot.slane %v4834, %v4841
    %v4844 = vunpack.c.l.s4 1966171168
    %v4845 = vunpack.c.0.s8 %v4844
    %v4846 = vlaneseq
    %v4847 = vshrl.u32 %v4846, 7
    %v4848 = vsub.s32 %v4845, %v4847
    %v4849 = vrot.slane %v4835, %v4848
    %v4852 = vadd.f32 %v4648, %v4842
    %v4853 = vadd.f32 %v4649, %v4849
    %s4854 = sld [smem:[#allocation2 + $0x6a]]
    %v4855 = vstv %s4854
    %v4856 = vmul.f32 %v4753, %v4855
    %v4857 = vmul.f32 %v4754, %v4855
    %v4860 = vcombine.low %v4856, %v4857
    %v4862 = vunpack.c.l.s4 1966171168
    %v4863 = vunpack.c.0.s8 %v4862
    %v4864 = vlaneseq
    %v4865 = vshrl.u32 %v4864, 7
    %v4866 = vsub.s32 %v4863, %v4865
    %v4867 = vrot.slane %v4860, %v4866
    %v4868 = vcombine.high %v4867, %v4867
    %v4870 = vunpack.c.l.s4 1966171168
    %v4871 = vunpack.c.0.s8 %v4870
    %v4872 = vlaneseq
    %v4873 = vshrl.u32 %v4872, 7
    %v4874 = vsub.s32 %v4871, %v4873
    %v4875 = vrot.slane %v4867, %v4874
    %v4877 = vunpack.c.l.s4 1966171168
    %v4878 = vunpack.c.0.s8 %v4877
    %v4879 = vlaneseq
    %v4880 = vshrl.u32 %v4879, 7
    %v4881 = vsub.s32 %v4878, %v4880
    %v4882 = vrot.slane %v4868, %v4881
    %v4885 = vadd.f32 %v4681, %v4875
    %v4886 = vadd.f32 %v4682, %v4882
    %s4887 = sld [smem:[#allocation2 + $0x85]]
    %v4888 = vstv %s4887
    %v4889 = vmul.f32 %v4753, %v4888
    %v4890 = vmul.f32 %v4754, %v4888
    %v4893 = vcombine.low %v4889, %v4890
    %v4895 = vunpack.c.l.s4 1966171168
    %v4896 = vunpack.c.0.s8 %v4895
    %v4897 = vlaneseq
    %v4898 = vshrl.u32 %v4897, 7
    %v4899 = vsub.s32 %v4896, %v4898
    %v4900 = vrot.slane %v4893, %v4899
    %v4901 = vcombine.high %v4900, %v4900
    %v4903 = vunpack.c.l.s4 1966171168
    %v4904 = vunpack.c.0.s8 %v4903
    %v4905 = vlaneseq
    %v4906 = vshrl.u32 %v4905, 7
    %v4907 = vsub.s32 %v4904, %v4906
    %v4908 = vrot.slane %v4900, %v4907
    %v4910 = vunpack.c.l.s4 1966171168
    %v4911 = vunpack.c.0.s8 %v4910
    %v4912 = vlaneseq
    %v4913 = vshrl.u32 %v4912, 7
    %v4914 = vsub.s32 %v4911, %v4913
    %v4915 = vrot.slane %v4901, %v4914
    %v4918 = vadd.f32 %v4714, %v4908
    %v4919 = vadd.f32 %v4715, %v4915
    %s4920 = sld [smem:[#allocation2 + $0xa0]]
    %v4921 = vstv %s4920
    %v4922 = vmul.f32 %v4753, %v4921
    %v4923 = vmul.f32 %v4754, %v4921
    %v4926 = vcombine.low %v4922, %v4923
    %v4928 = vunpack.c.l.s4 1966171168
    %v4929 = vunpack.c.0.s8 %v4928
    %v4930 = vlaneseq
    %v4931 = vshrl.u32 %v4930, 7
    %v4932 = vsub.s32 %v4929, %v4931
    %v4933 = vrot.slane %v4926, %v4932
    %v4934 = vcombine.high %v4933, %v4933
    %v4936 = vunpack.c.l.s4 1966171168
    %v4937 = vunpack.c.0.s8 %v4936
    %v4938 = vlaneseq
    %v4939 = vshrl.u32 %v4938, 7
    %v4940 = vsub.s32 %v4937, %v4939
    %v4941 = vrot.slane %v4933, %v4940
    %v4943 = vunpack.c.l.s4 1966171168
    %v4944 = vunpack.c.0.s8 %v4943
    %v4945 = vlaneseq
    %v4946 = vshrl.u32 %v4945, 7
    %v4947 = vsub.s32 %v4944, %v4946
    %v4948 = vrot.slane %v4934, %v4947
    %v4951 = vadd.f32 %v4747, %v4941
    %v4952 = vadd.f32 %v4748, %v4948
    %4953 = vrot.lane.b32.xlu0 %v3515, 94
    %v4954 = vpop.permute.xlu0 %4953
    %4955 = vrot.lane.b32.xlu0 %v3522, 94
    %v4956 = vpop.permute.xlu0 %4955
    %v4957 = vsel %vm1558, %v4954, %v4956
    %v4958 = vsel %vm1558, %v4956, %v4954
    %s4959 = sld [smem:[#allocation2 + $0x1a]]
    %v4960 = vstv %s4959
    %v4961 = vmul.f32 %v4957, %v4960
    %v4962 = vmul.f32 %v4958, %v4960
    %v4965 = vcombine.low %v4961, %v4962
    %v4967 = vunpack.c.l.s4 1966171168
    %v4968 = vunpack.c.0.s8 %v4967
    %v4969 = vlaneseq
    %v4970 = vshrl.u32 %v4969, 7
    %v4971 = vsub.s32 %v4968, %v4970
    %v4972 = vrot.slane %v4965, %v4971
    %v4973 = vcombine.high %v4972, %v4972
    %v4975 = vunpack.c.l.s4 1966171168
    %v4976 = vunpack.c.0.s8 %v4975
    %v4977 = vlaneseq
    %v4978 = vshrl.u32 %v4977, 7
    %v4979 = vsub.s32 %v4976, %v4978
    %v4980 = vrot.slane %v4972, %v4979
    %v4982 = vunpack.c.l.s4 1966171168
    %v4983 = vunpack.c.0.s8 %v4982
    %v4984 = vlaneseq
    %v4985 = vshrl.u32 %v4984, 7
    %v4986 = vsub.s32 %v4983, %v4985
    %v4987 = vrot.slane %v4973, %v4986
    %v4990 = vadd.f32 %v4786, %v4980
    %v4991 = vadd.f32 %v4787, %v4987
    %s4992 = sld [smem:[#allocation2 + $0x35]]
    %v4993 = vstv %s4992
    %v4994 = vmul.f32 %v4957, %v4993
    %v4995 = vmul.f32 %v4958, %v4993
    %v4998 = vcombine.low %v4994, %v4995
    %v5000 = vunpack.c.l.s4 1966171168
    %v5001 = vunpack.c.0.s8 %v5000
    %v5002 = vlaneseq
    %v5003 = vshrl.u32 %v5002, 7
    %v5004 = vsub.s32 %v5001, %v5003
    %v5005 = vrot.slane %v4998, %v5004
    %v5006 = vcombine.high %v5005, %v5005
    %v5008 = vunpack.c.l.s4 1966171168
    %v5009 = vunpack.c.0.s8 %v5008
    %v5010 = vlaneseq
    %v5011 = vshrl.u32 %v5010, 7
    %v5012 = vsub.s32 %v5009, %v5011
    %v5013 = vrot.slane %v5005, %v5012
    %v5015 = vunpack.c.l.s4 1966171168
    %v5016 = vunpack.c.0.s8 %v5015
    %v5017 = vlaneseq
    %v5018 = vshrl.u32 %v5017, 7
    %v5019 = vsub.s32 %v5016, %v5018
    %v5020 = vrot.slane %v5006, %v5019
    %v5023 = vadd.f32 %v4819, %v5013
    %v5024 = vadd.f32 %v4820, %v5020
    %s5025 = sld [smem:[#allocation2 + $0x50]]
    %v5026 = vstv %s5025
    %v5027 = vmul.f32 %v4957, %v5026
    %v5028 = vmul.f32 %v4958, %v5026
    %v5031 = vcombine.low %v5027, %v5028
    %v5033 = vunpack.c.l.s4 1966171168
    %v5034 = vunpack.c.0.s8 %v5033
    %v5035 = vlaneseq
    %v5036 = vshrl.u32 %v5035, 7
    %v5037 = vsub.s32 %v5034, %v5036
    %v5038 = vrot.slane %v5031, %v5037
    %v5039 = vcombine.high %v5038, %v5038
    %v5041 = vunpack.c.l.s4 1966171168
    %v5042 = vunpack.c.0.s8 %v5041
    %v5043 = vlaneseq
    %v5044 = vshrl.u32 %v5043, 7
    %v5045 = vsub.s32 %v5042, %v5044
    %v5046 = vrot.slane %v5038, %v5045
    %v5048 = vunpack.c.l.s4 1966171168
    %v5049 = vunpack.c.0.s8 %v5048
    %v5050 = vlaneseq
    %v5051 = vshrl.u32 %v5050, 7
    %v5052 = vsub.s32 %v5049, %v5051
    %v5053 = vrot.slane %v5039, %v5052
    %v5056 = vadd.f32 %v4852, %v5046
    %v5057 = vadd.f32 %v4853, %v5053
    %s5058 = sld [smem:[#allocation2 + $0x6b]]
    %v5059 = vstv %s5058
    %v5060 = vmul.f32 %v4957, %v5059
    %v5061 = vmul.f32 %v4958, %v5059
    %v5064 = vcombine.low %v5060, %v5061
    %v5066 = vunpack.c.l.s4 1966171168
    %v5067 = vunpack.c.0.s8 %v5066
    %v5068 = vlaneseq
    %v5069 = vshrl.u32 %v5068, 7
    %v5070 = vsub.s32 %v5067, %v5069
    %v5071 = vrot.slane %v5064, %v5070
    %v5072 = vcombine.high %v5071, %v5071
    %v5074 = vunpack.c.l.s4 1966171168
    %v5075 = vunpack.c.0.s8 %v5074
    %v5076 = vlaneseq
    %v5077 = vshrl.u32 %v5076, 7
    %v5078 = vsub.s32 %v5075, %v5077
    %v5079 = vrot.slane %v5071, %v5078
    %v5081 = vunpack.c.l.s4 1966171168
    %v5082 = vunpack.c.0.s8 %v5081
    %v5083 = vlaneseq
    %v5084 = vshrl.u32 %v5083, 7
    %v5085 = vsub.s32 %v5082, %v5084
    %v5086 = vrot.slane %v5072, %v5085
    %v5089 = vadd.f32 %v4885, %v5079
    %v5090 = vadd.f32 %v4886, %v5086
    %s5091 = sld [smem:[#allocation2 + $0x86]]
    %v5092 = vstv %s5091
    %v5093 = vmul.f32 %v4957, %v5092
    %v5094 = vmul.f32 %v4958, %v5092
    %v5097 = vcombine.low %v5093, %v5094
    %v5099 = vunpack.c.l.s4 1966171168
    %v5100 = vunpack.c.0.s8 %v5099
    %v5101 = vlaneseq
    %v5102 = vshrl.u32 %v5101, 7
    %v5103 = vsub.s32 %v5100, %v5102
    %v5104 = vrot.slane %v5097, %v5103
    %v5105 = vcombine.high %v5104, %v5104
    %v5107 = vunpack.c.l.s4 1966171168
    %v5108 = vunpack.c.0.s8 %v5107
    %v5109 = vlaneseq
    %v5110 = vshrl.u32 %v5109, 7
    %v5111 = vsub.s32 %v5108, %v5110
    %v5112 = vrot.slane %v5104, %v5111
    %v5114 = vunpack.c.l.s4 1966171168
    %v5115 = vunpack.c.0.s8 %v5114
    %v5116 = vlaneseq
    %v5117 = vshrl.u32 %v5116, 7
    %v5118 = vsub.s32 %v5115, %v5117
    %v5119 = vrot.slane %v5105, %v5118
    %v5122 = vadd.f32 %v4918, %v5112
    %v5123 = vadd.f32 %v4919, %v5119
    %s5124 = sld [smem:[#allocation2 + $0xa1]]
    %v5125 = vstv %s5124
    %v5126 = vmul.f32 %v4957, %v5125
    %v5127 = vmul.f32 %v4958, %v5125
    %v5130 = vcombine.low %v5126, %v5127
    %v5132 = vunpack.c.l.s4 1966171168
    %v5133 = vunpack.c.0.s8 %v5132
    %v5134 = vlaneseq
    %v5135 = vshrl.u32 %v5134, 7
    %v5136 = vsub.s32 %v5133, %v5135
    %v5137 = vrot.slane %v5130, %v5136
    %v5138 = vcombine.high %v5137, %v5137
    %v5140 = vunpack.c.l.s4 1966171168
    %v5141 = vunpack.c.0.s8 %v5140
    %v5142 = vlaneseq
    %v5143 = vshrl.u32 %v5142, 7
    %v5144 = vsub.s32 %v5141, %v5143
    %v5145 = vrot.slane %v5137, %v5144
    %v5147 = vunpack.c.l.s4 1966171168
    %v5148 = vunpack.c.0.s8 %v5147
    %v5149 = vlaneseq
    %v5150 = vshrl.u32 %v5149, 7
    %v5151 = vsub.s32 %v5148, %v5150
    %v5152 = vrot.slane %v5138, %v5151
    %v5155 = vadd.f32 %v4951, %v5145
    %v5156 = vadd.f32 %v4952, %v5152
    %v5159 = vlaneseq
    %v5160 = vshrl.u32 %v5159, 7
    %v5161 = vsub.s32 0, %v5160
    %v5162 = vrot.slane %v4990, %v5161
    %v5163 = vlaneseq
    %v5164 = vshrl.u32 %v5163, 7
    %v5165 = vsub.s32 1, %v5164
    %v5166 = vrot.slane %v4990, %v5165
    %v5167 = vlaneseq
    %v5168 = vshrl.u32 %v5167, 7
    %v5169 = vsub.s32 0, %v5168
    %v5170 = vrot.slane %v4991, %v5169
    %v5171 = vlaneseq
    %v5172 = vshrl.u32 %v5171, 7
    %v5173 = vsub.s32 1, %v5172
    %v5174 = vrot.slane %v4991, %v5173
    %v5181 = vlaneseq
    %v5182 = vshrl.u32 %v5181, 7
    %v5183 = vsub.s32 0, %v5182
    %v5184 = vrot.slane %v5023, %v5183
    %v5185 = vlaneseq
    %v5186 = vshrl.u32 %v5185, 7
    %v5187 = vsub.s32 1, %v5186
    %v5188 = vrot.slane %v5023, %v5187
    %v5189 = vlaneseq
    %v5190 = vshrl.u32 %v5189, 7
    %v5191 = vsub.s32 0, %v5190
    %v5192 = vrot.slane %v5024, %v5191
    %v5193 = vlaneseq
    %v5194 = vshrl.u32 %v5193, 7
    %v5195 = vsub.s32 1, %v5194
    %v5196 = vrot.slane %v5024, %v5195
    %v5203 = vlaneseq
    %v5204 = vshrl.u32 %v5203, 7
    %v5205 = vsub.s32 0, %v5204
    %v5206 = vrot.slane %v5056, %v5205
    %v5207 = vlaneseq
    %v5208 = vshrl.u32 %v5207, 7
    %v5209 = vsub.s32 1, %v5208
    %v5210 = vrot.slane %v5056, %v5209
    %v5211 = vlaneseq
    %v5212 = vshrl.u32 %v5211, 7
    %v5213 = vsub.s32 0, %v5212
    %v5214 = vrot.slane %v5057, %v5213
    %v5215 = vlaneseq
    %v5216 = vshrl.u32 %v5215, 7
    %v5217 = vsub.s32 1, %v5216
    %v5218 = vrot.slane %v5057, %v5217
    %v5225 = vlaneseq
    %v5226 = vshrl.u32 %v5225, 7
    %v5227 = vsub.s32 0, %v5226
    %v5228 = vrot.slane %v5089, %v5227
    %v5229 = vlaneseq
    %v5230 = vshrl.u32 %v5229, 7
    %v5231 = vsub.s32 1, %v5230
    %v5232 = vrot.slane %v5089, %v5231
    %v5233 = vlaneseq
    %v5234 = vshrl.u32 %v5233, 7
    %v5235 = vsub.s32 0, %v5234
    %v5236 = vrot.slane %v5090, %v5235
    %v5237 = vlaneseq
    %v5238 = vshrl.u32 %v5237, 7
    %v5239 = vsub.s32 1, %v5238
    %v5240 = vrot.slane %v5090, %v5239
    %v5247 = vlaneseq
    %v5248 = vshrl.u32 %v5247, 7
    %v5249 = vsub.s32 0, %v5248
    %v5250 = vrot.slane %v5122, %v5249
    %v5251 = vlaneseq
    %v5252 = vshrl.u32 %v5251, 7
    %v5253 = vsub.s32 1, %v5252
    %v5254 = vrot.slane %v5122, %v5253
    %v5255 = vlaneseq
    %v5256 = vshrl.u32 %v5255, 7
    %v5257 = vsub.s32 0, %v5256
    %v5258 = vrot.slane %v5123, %v5257
    %v5259 = vlaneseq
    %v5260 = vshrl.u32 %v5259, 7
    %v5261 = vsub.s32 1, %v5260
    %v5262 = vrot.slane %v5123, %v5261
    %v5269 = vlaneseq
    %v5270 = vshrl.u32 %v5269, 7
    %v5271 = vsub.s32 0, %v5270
    %v5272 = vrot.slane %v5155, %v5271
    %v5273 = vlaneseq
    %v5274 = vshrl.u32 %v5273, 7
    %v5275 = vsub.s32 1, %v5274
    %v5276 = vrot.slane %v5155, %v5275
    %v5277 = vlaneseq
    %v5278 = vshrl.u32 %v5277, 7
    %v5279 = vsub.s32 0, %v5278
    %v5280 = vrot.slane %v5156, %v5279
    %v5281 = vlaneseq
    %v5282 = vshrl.u32 %v5281, 7
    %v5283 = vsub.s32 1, %v5282
    %v5284 = vrot.slane %v5156, %v5283
    %vm5289 = vcmask 1040384
    %v5290 = vsel %vm5289, %v5162, %v5184
    %v5291 = vsel %vm5289, %v5166, %v5188
    %v5292 = vsel %vm5289, %v5170, %v5192
    %v5293 = vsel %vm5289, %v5174, %v5196
    %vm5294 = vcmask 1041408
    %v5295 = vsel %vm5294, %v5290, %v5206
    %v5296 = vsel %vm5294, %v5291, %v5210
    %v5297 = vsel %vm5294, %v5292, %v5214
    %v5298 = vsel %vm5294, %v5293, %v5218
    %vm5299 = vcmask 1042432
    %v5300 = vsel %vm5299, %v5295, %v5228
    %v5301 = vsel %vm5299, %v5296, %v5232
    %v5302 = vsel %vm5299, %v5297, %v5236
    %v5303 = vsel %vm5299, %v5298, %v5240
    %vm5304 = vcmask 1043456
    %v5305 = vsel %vm5304, %v5300, %v5250
    %v5306 = vsel %vm5304, %v5301, %v5254
    %v5307 = vsel %vm5304, %v5302, %v5258
    %v5308 = vsel %vm5304, %v5303, %v5262
    %vm5309 = vcmask 1044480
    %v5310 = vsel %vm5309, %v5305, %v5272
    %v5311 = vsel %vm5309, %v5306, %v5276
    %v5312 = vsel %vm5309, %v5307, %v5280
    %v5313 = vsel %vm5309, %v5308, %v5284
    %5314 = vst [vmem:[%s3] sm:$0x3f] %v5310
    %5315 = vst [vmem:[%s3 + $0x8] sm:$0x3f] %v5311
    %5316 = vst [vmem:[%s3 + $0x10] sm:$0x3f] %v5312
    %5317 = vst [vmem:[%s3 + $0x18] sm:$0x3f] %v5313
    // Predicated region
    $region22: #{tpu_custom_call.1} parent=1 // pred_check
      _
    $region23: #{tpu_custom_call.1} parent=1 // pred_check_branch
      %5319 = sbr.rel (0) target = $region25
    $region24: #{tpu_custom_call.1} parent=1 // pred_region
      _
    $region25: #{tpu_custom_call.1} parent=1 // pred_fallthru
      _
    // Predicated region
    $region26: #{tpu_custom_call.1} parent=1 // pred_check
      _
    $region27: #{tpu_custom_call.1} parent=1 // pred_check_branch
      %5321 = sbr.rel (0) target = $region29
    $region28: #{tpu_custom_call.1} parent=1 // pred_region
      _
    $region29: #{tpu_custom_call.1} parent=1 // pred_fallthru
      _
    %5322 = vsyncpa [#allocation3], 1
    %5323 = vsyncpa [#allocation5], 1

</llo_original>
